<compile_context>
chip_gen: v7x
topology: tpu7x:2x2x1
jax: 0.10.0
libtpu: 0.0.40
codegen_flags: <defaults>
</compile_context>

<pallas_src>
import jax
import jax.numpy as jnp
from jax import lax
from jax.experimental import pallas as pl
from jax.experimental.pallas import tpu as pltpu

INPUT_DIM = 28
HIDDEN = 10          # real hidden size of the PyTorch module
HP = 16              # hidden size padded to an 8-sublane multiple
G4 = 4 * HP          # padded gate dim (i|f|g|o) = 64
N_CLASSES = 10


def _round_up(n, m):
    return ((n + m - 1) // m) * m


def _batch_tiling(B):
    """(padded_batch, batch_tile): batch lives on lanes -> multiples of 128.

    The recurrence is latency-bound, so a single max-size block is best on
    1-TC chips (v5e/v6e).  Past ~512 lanes the per-step matmuls become
    throughput-bound, so we split into >=2 blocks of <=512 lanes, which also
    lets v7x's two TensorCores each take blocks via the parallel grid axis.
    """
    Bp = _round_up(max(B, 1), 128)
    if Bp <= 512:
        return Bp, Bp
    TB = 512
    return _round_up(Bp, TB), TB


def _lstm_rnn_kernel(x_ref,      # (1, 28, T*TB) bf16  t-major / batch-minor cols
                     wih0_ref,   # (64, 28) bf16   layer0 W_ih, gate-row padded
                     whh0_ref,   # (64, 16) bf16   layer0 W_hh, padded
                     b0_ref,     # (64, 1)  f32    layer0 b_ih + b_hh, padded
                     wih1_ref,   # (64, 16) bf16   layer1 W_ih, padded
                     whh1_ref,   # (64, 16) bf16   layer1 W_hh, padded
                     b1_ref,     # (64, 1)  f32    layer1 b_ih + b_hh, padded
                     wc_ref,     # (10, 16) bf16   classifier W, padded cols
                     bc_ref,     # (10, 1)  f32    classifier bias
                     out_ref,    # (10, TB) f32    logits block (batch on lanes)
                     xp_ref):    # VMEM scratch (T, 64, TB) f32: hoisted x proj
    T, g4, TB = xp_ref.shape
    Hp = g4 // 4

    whh0 = whh0_ref[...]
    wih1 = wih1_ref[...]
    whh1 = whh1_ref[...]
    # hoist the (.,1) -> (.,TB) bias broadcasts out of all loops
    b0b = jnp.broadcast_to(b0_ref[...], (g4, TB))
    b1b = jnp.broadcast_to(b1_ref[...], (g4, TB))

    # ---- hoisted layer-0 input projection: ONE fused matmul over all T -----
    xp_all = jnp.dot(wih0_ref[...], x_ref[0],
                     preferred_element_type=jnp.float32)        # (64, T*TB) f32
    for t in range(T):  # static, 128-aligned lane slices; off the serial chain
        xp_ref[t] = xp_all[:, t * TB:(t + 1) * TB] + b0b

    def sig(v):
        # sigmoid(x) = 0.5*tanh(0.5*x) + 0.5 : one EUP op instead of exp+recip
        return 0.5 * jnp.tanh(0.5 * v) + 0.5

    def gates(g, c_prev):
        # PyTorch gate order [i | f | g | o]; padded rows keep exactly-zero state
        i_g = sig(g[0 * Hp:1 * Hp, :])
        f_g = sig(g[1 * Hp:2 * Hp, :])
        g_g = jnp.tanh(g[2 * Hp:3 * Hp, :])
        o_g = sig(g[3 * Hp:4 * Hp, :])
        c_new = f_g * c_prev + i_g * g_g
        h_new = o_g * jnp.tanh(c_new)
        return h_new, c_new

    def step(t, carry):
        h0, c0, h1, c1 = carry                     # (Hp, TB) f32 vreg carries
        # layer-1 recurrent dot depends only on h1_prev -> issues early,
        # overlapping the layer-0 gate math
        g1_rec = jnp.dot(whh1, h1.astype(jnp.bfloat16),
                         preferred_element_type=jnp.float32)
        # layer 0: only the recurrent matmul is on the serial chain
        g0 = xp_ref[t] + jnp.dot(whh0, h0.astype(jnp.bfloat16),
                                 preferred_element_type=jnp.float32)
        h0, c0 = gates(g0, c0)
        # layer 1: de-fused (no per-step concat); adds land on matmul results
        g1 = g1_rec + jnp.dot(wih1, h0.astype(jnp.bfloat16),
                              preferred_element_type=jnp.float32) + b1b
        h1, c1 = gates(g1, c1)
        return (h0, c0, h1, c1)

    z = jnp.zeros((Hp, TB), jnp.float32)
    unroll = True if T <= 32 else 8
    _, _, h1, _ = lax.fori_loop(0, T, step, (z, z, z, z), unroll=unroll)

    # classifier on h_n of the top layer; output is lane-dense (TB >= 128)
    out_ref[...] = (jnp.dot(wc_ref[...], h1.astype(jnp.bfloat16),
                            preferred_element_type=jnp.float32)
                    + bc_ref[...]).astype(out_ref.dtype)


def _pad_gate_rows(w):
    """(4H, C) -> (4*HP, C): zero-pad each gate's H rows up to HP rows."""
    c = w.shape[-1]
    w4 = w.reshape(4, HIDDEN, c)
    return jnp.pad(w4, ((0, 0), (0, HP - HIDDEN), (0, 0))).reshape(4 * HP, c)


def _pad_cols(w):
    """(..., H) -> (..., HP): zero-pad the hidden (contraction) columns."""
    return jnp.pad(w, ((0, 0), (0, HP - HIDDEN)))


def init_params(key):
    """Deterministic params with PyTorch-style U(-1/sqrt(H), 1/sqrt(H)) init."""
    H = HIDDEN
    bound = 1.0 / jnp.sqrt(jnp.float32(H))
    shapes = {
        "w_ih0": (4 * H, INPUT_DIM), "w_hh0": (4 * H, H),
        "b_ih0": (4 * H,), "b_hh0": (4 * H,),
        "w_ih1": (4 * H, H), "w_hh1": (4 * H, H),
        "b_ih1": (4 * H,), "b_hh1": (4 * H,),
        "w_cls": (N_CLASSES, H), "b_cls": (N_CLASSES,),
    }
    keys = jax.random.split(key, len(shapes))
    params = {}
    for k, (name, shp) in zip(keys, shapes.items()):
        params[name] = jax.random.uniform(k, shp, jnp.float32, -bound, bound)
    return params


@jax.jit
def mnist_rnn_forward(x, params):
    """x: (B, T, 28) float32 (batch_first, like the PyTorch module)."""
    B, T, I = x.shape
    assert I == INPUT_DIM
    Bp, TB = _batch_tiling(B)
    G = Bp // TB

    # batch-on-lanes packing: x4[g, c, t*TB + b] == x[g*TB + b, t, c]
    xpad = jnp.pad(x.astype(jnp.float32), ((0, Bp - B), (0, 0), (0, 0)))
    x4 = (xpad.reshape(G, TB, T, I)
               .transpose(0, 3, 2, 1)
               .reshape(G, I, T * TB)
               .astype(jnp.bfloat16))

    wih0 = _pad_gate_rows(params["w_ih0"]).astype(jnp.bfloat16)             # (64,28)
    whh0 = _pad_cols(_pad_gate_rows(params["w_hh0"])).astype(jnp.bfloat16)  # (64,16)
    wih1 = _pad_cols(_pad_gate_rows(params["w_ih1"])).astype(jnp.bfloat16)  # (64,16)
    whh1 = _pad_cols(_pad_gate_rows(params["w_hh1"])).astype(jnp.bfloat16)  # (64,16)
    b0 = _pad_gate_rows((params["b_ih0"] + params["b_hh0"])
                        .reshape(4 * HIDDEN, 1)).astype(jnp.float32)        # (64,1)
    b1 = _pad_gate_rows((params["b_ih1"] + params["b_hh1"])
                        .reshape(4 * HIDDEN, 1)).astype(jnp.float32)        # (64,1)
    wc = _pad_cols(params["w_cls"]).astype(jnp.bfloat16)                    # (10,16)
    bc = params["b_cls"].reshape(N_CLASSES, 1).astype(jnp.float32)          # (10,1)

    full = lambda shape: pl.BlockSpec(shape, lambda i, _s=shape: (0,) * len(_s))

    out = pl.pallas_call(
        _lstm_rnn_kernel,
        out_shape=jax.ShapeDtypeStruct((N_CLASSES, Bp), jnp.float32),
        grid=(G,),
        in_specs=[
            pl.BlockSpec((1, INPUT_DIM, T * TB), lambda i: (i, 0, 0)),
            full((G4, INPUT_DIM)),
            full((G4, HP)),
            full((G4, 1)),
            full((G4, HP)),
            full((G4, HP)),
            full((G4, 1)),
            full((N_CLASSES, HP)),
            full((N_CLASSES, 1)),
        ],
        out_specs=pl.BlockSpec((N_CLASSES, TB), lambda i: (0, i)),
        scratch_shapes=[
            pltpu.VMEM((T, G4, TB), jnp.float32),   # hoisted x-projection
        ],
        compiler_params=pltpu.CompilerParams(
            dimension_semantics=("parallel",),
            vmem_limit_bytes=40 * 1024 * 1024),     # safe on v5e default / v7x phys
    )(x4, wih0, whh0, b0, wih1, whh1, b1, wc, bc)

    return out[:, :B].T   # (B, 10)


def _reference_forward(x, params):
    """Pure-JAX reference of the PyTorch forward (for correctness check)."""
    H = HIDDEN
    B, T, _ = x.shape

    def cell(x_t, h, c, w_ih, w_hh, b_ih, b_hh):
        g = x_t @ w_ih.T + h @ w_hh.T + b_ih + b_hh
        i = jax.nn.sigmoid(g[:, 0 * H:1 * H])
        f = jax.nn.sigmoid(g[:, 1 * H:2 * H])
        gg = jnp.tanh(g[:, 2 * H:3 * H])
        o = jax.nn.sigmoid(g[:, 3 * H:4 * H])
        c = f * c + i * gg
        h = o * jnp.tanh(c)
        return h, c

    h0 = jnp.zeros((B, H), jnp.float32)
    c0 = jnp.zeros((B, H), jnp.float32)
    h1 = jnp.zeros((B, H), jnp.float32)
    c1 = jnp.zeros((B, H), jnp.float32)
    for t in range(T):
        h0, c0 = cell(x[:, t, :], h0, c0, params["w_ih0"], params["w_hh0"],
                      params["b_ih0"], params["b_hh0"])
        h1, c1 = cell(h0, h1, c1, params["w_ih1"], params["w_hh1"],
                      params["b_ih1"], params["b_hh1"])
    return h1 @ params["w_cls"].T + params["b_cls"]


if __name__ == "__main__":
    key = jax.random.PRNGKey(0)
    k_param, k_x = jax.random.split(key)
    params = init_params(k_param)

    B, T = 2, 8
    x = jax.random.normal(k_x, (B, T, INPUT_DIM), jnp.float32)

    out = jax.block_until_ready(mnist_rnn_forward(x, params))
    ref = _reference_forward(x, params)

    assert out.shape == (B, N_CLASSES)
    # bf16 MXU operands -> loosened tolerance (gate math / accumulation stay f32)
    assert jnp.allclose(out, ref, atol=5e-2, rtol=5e-2), "mismatch vs reference"

    print("KERNEL_OK")
</pallas_src>

<mosaic_0001>
module attributes {stable_mosaic.version = 11 : i64} {
  func.func @_lstm_rnn_kernel(%arg0: i32, %arg1: memref<1x28x1024xbf16, #tpu.memory_space<vmem>>, %arg2: memref<64x28xbf16, #tpu.memory_space<vmem>>, %arg3: memref<64x16xbf16, #tpu.memory_space<vmem>>, %arg4: memref<64x1xf32, #tpu.memory_space<vmem>>, %arg5: memref<64x16xbf16, #tpu.memory_space<vmem>>, %arg6: memref<64x16xbf16, #tpu.memory_space<vmem>>, %arg7: memref<64x1xf32, #tpu.memory_space<vmem>>, %arg8: memref<10x16xbf16, #tpu.memory_space<vmem>>, %arg9: memref<10x1xf32, #tpu.memory_space<vmem>>, %arg10: memref<10x128xf32, #tpu.memory_space<vmem>>, %arg11: memref<8x64x128xf32, #tpu.memory_space<vmem>>) attributes {dimension_semantics = [#tpu.dimension_semantics<parallel>], iteration_bounds = array<i64: 1>, scalar_prefetch = 0 : i64, scratch_operands = 1 : i64, tpu.core_type = #tpu.core_type<tc>, window_params = [{transform_indices = @transform_0, window_bounds = array<i64: 1, 28, 1024>}, {pipeline_mode = #tpu.pipeline_mode<synchronous>, transform_indices = @transform_1, window_bounds = array<i64: 64, 28>}, {pipeline_mode = #tpu.pipeline_mode<synchronous>, transform_indices = @transform_2, window_bounds = array<i64: 64, 16>}, {pipeline_mode = #tpu.pipeline_mode<synchronous>, transform_indices = @transform_3, window_bounds = array<i64: 64, 1>}, {pipeline_mode = #tpu.pipeline_mode<synchronous>, transform_indices = @transform_4, window_bounds = array<i64: 64, 16>}, {pipeline_mode = #tpu.pipeline_mode<synchronous>, transform_indices = @transform_5, window_bounds = array<i64: 64, 16>}, {pipeline_mode = #tpu.pipeline_mode<synchronous>, transform_indices = @transform_6, window_bounds = array<i64: 64, 1>}, {pipeline_mode = #tpu.pipeline_mode<synchronous>, transform_indices = @transform_7, window_bounds = array<i64: 10, 16>}, {pipeline_mode = #tpu.pipeline_mode<synchronous>, transform_indices = @transform_8, window_bounds = array<i64: 10, 1>}, {transform_indices = @transform_9, window_bounds = array<i64: 10, 128>}]} {
    %c0 = arith.constant 0 : index
    %c0_0 = arith.constant 0 : index
    %0 = vector.load %arg3[%c0, %c0_0] : memref<64x16xbf16, #tpu.memory_space<vmem>>, vector<64x16xbf16>
    %c0_1 = arith.constant 0 : index
    %c0_2 = arith.constant 0 : index
    %1 = vector.load %arg5[%c0_1, %c0_2] : memref<64x16xbf16, #tpu.memory_space<vmem>>, vector<64x16xbf16>
    %c0_3 = arith.constant 0 : index
    %c0_4 = arith.constant 0 : index
    %2 = vector.load %arg6[%c0_3, %c0_4] : memref<64x16xbf16, #tpu.memory_space<vmem>>, vector<64x16xbf16>
    %c0_5 = arith.constant 0 : index
    %c0_6 = arith.constant 0 : index
    %3 = vector.load %arg4[%c0_5, %c0_6] : memref<64x1xf32, #tpu.memory_space<vmem>>, vector<64x1xf32>
    %4 = vector.shape_cast %3 : vector<64x1xf32> to vector<64x1xf32>
    %5 = vector.broadcast %4 : vector<64x1xf32> to vector<64x128xf32>
    %c0_7 = arith.constant 0 : index
    %c0_8 = arith.constant 0 : index
    %6 = vector.load %arg7[%c0_7, %c0_8] : memref<64x1xf32, #tpu.memory_space<vmem>>, vector<64x1xf32>
    %7 = vector.shape_cast %6 : vector<64x1xf32> to vector<64x1xf32>
    %8 = vector.broadcast %7 : vector<64x1xf32> to vector<64x128xf32>
    %c0_9 = arith.constant 0 : index
    %c0_10 = arith.constant 0 : index
    %9 = vector.load %arg2[%c0_9, %c0_10] : memref<64x28xbf16, #tpu.memory_space<vmem>>, vector<64x28xbf16>
    %c0_11 = arith.constant 0 : index
    %c0_12 = arith.constant 0 : index
    %c0_13 = arith.constant 0 : index
    %10 = vector.load %arg1[%c0_11, %c0_12, %c0_13] : memref<1x28x1024xbf16, #tpu.memory_space<vmem>>, vector<1x28x1024xbf16>
    %11 = vector.shape_cast %10 : vector<1x28x1024xbf16> to vector<28x1024xbf16>
    %cst = arith.constant dense<0.000000e+00> : vector<64x1024xf32>
    %12 = tpu.matmul %9, %11, %cst {dimension_numbers = #tpu.dot_dimension_numbers<[1], [0], [0], [1], [0, 0, 1, 1], [], []>} : vector<64x28xbf16>, vector<28x1024xbf16>, vector<64x1024xf32> -> vector<64x1024xf32>
    %13 = vector.extract_strided_slice %12 {offsets = [0, 0], sizes = [64, 128], strides = [1, 1]} : vector<64x1024xf32> to vector<64x128xf32>
    %14 = arith.addf %13, %5 : vector<64x128xf32>
    %c0_14 = arith.constant 0 : index
    %c0_15 = arith.constant 0 : index
    %c0_16 = arith.constant 0 : index
    %15 = vector.load %arg11[%c0_14, %c0_15, %c0_16] : memref<8x64x128xf32, #tpu.memory_space<vmem>>, vector<1x64x128xf32>
    %16 = vector.shape_cast %15 : vector<1x64x128xf32> to vector<64x128xf32>
    %17 = vector.shape_cast %14 : vector<64x128xf32> to vector<1x64x128xf32>
    tpu.vector_store %arg11[%c0_14, %c0_15, %c0_16], %17 {strides = array<i32>} : memref<8x64x128xf32, #tpu.memory_space<vmem>>, vector<1x64x128xf32>,
    %18 = vector.extract_strided_slice %12 {offsets = [0, 128], sizes = [64, 128], strides = [1, 1]} : vector<64x1024xf32> to vector<64x128xf32>
    %19 = arith.addf %18, %5 : vector<64x128xf32>
    %c1 = arith.constant 1 : index
    %c0_17 = arith.constant 0 : index
    %c0_18 = arith.constant 0 : index
    %20 = vector.load %arg11[%c1, %c0_17, %c0_18] : memref<8x64x128xf32, #tpu.memory_space<vmem>>, vector<1x64x128xf32>
    %21 = vector.shape_cast %20 : vector<1x64x128xf32> to vector<64x128xf32>
    %22 = vector.shape_cast %19 : vector<64x128xf32> to vector<1x64x128xf32>
    tpu.vector_store %arg11[%c1, %c0_17, %c0_18], %22 {strides = array<i32>} : memref<8x64x128xf32, #tpu.memory_space<vmem>>, vector<1x64x128xf32>,
    %23 = vector.extract_strided_slice %12 {offsets = [0, 256], sizes = [64, 128], strides = [1, 1]} : vector<64x1024xf32> to vector<64x128xf32>
    %24 = arith.addf %23, %5 : vector<64x128xf32>
    %c2 = arith.constant 2 : index
    %c0_19 = arith.constant 0 : index
    %c0_20 = arith.constant 0 : index
    %25 = vector.load %arg11[%c2, %c0_19, %c0_20] : memref<8x64x128xf32, #tpu.memory_space<vmem>>, vector<1x64x128xf32>
    %26 = vector.shape_cast %25 : vector<1x64x128xf32> to vector<64x128xf32>
    %27 = vector.shape_cast %24 : vector<64x128xf32> to vector<1x64x128xf32>
    tpu.vector_store %arg11[%c2, %c0_19, %c0_20], %27 {strides = array<i32>} : memref<8x64x128xf32, #tpu.memory_space<vmem>>, vector<1x64x128xf32>,
    %28 = vector.extract_strided_slice %12 {offsets = [0, 384], sizes = [64, 128], strides = [1, 1]} : vector<64x1024xf32> to vector<64x128xf32>
    %29 = arith.addf %28, %5 : vector<64x128xf32>
    %c3 = arith.constant 3 : index
    %c0_21 = arith.constant 0 : index
    %c0_22 = arith.constant 0 : index
    %30 = vector.load %arg11[%c3, %c0_21, %c0_22] : memref<8x64x128xf32, #tpu.memory_space<vmem>>, vector<1x64x128xf32>
    %31 = vector.shape_cast %30 : vector<1x64x128xf32> to vector<64x128xf32>
    %32 = vector.shape_cast %29 : vector<64x128xf32> to vector<1x64x128xf32>
    tpu.vector_store %arg11[%c3, %c0_21, %c0_22], %32 {strides = array<i32>} : memref<8x64x128xf32, #tpu.memory_space<vmem>>, vector<1x64x128xf32>,
    %33 = vector.extract_strided_slice %12 {offsets = [0, 512], sizes = [64, 128], strides = [1, 1]} : vector<64x1024xf32> to vector<64x128xf32>
    %34 = arith.addf %33, %5 : vector<64x128xf32>
    %c4 = arith.constant 4 : index
    %c0_23 = arith.constant 0 : index
    %c0_24 = arith.constant 0 : index
    %35 = vector.load %arg11[%c4, %c0_23, %c0_24] : memref<8x64x128xf32, #tpu.memory_space<vmem>>, vector<1x64x128xf32>
    %36 = vector.shape_cast %35 : vector<1x64x128xf32> to vector<64x128xf32>
    %37 = vector.shape_cast %34 : vector<64x128xf32> to vector<1x64x128xf32>
    tpu.vector_store %arg11[%c4, %c0_23, %c0_24], %37 {strides = array<i32>} : memref<8x64x128xf32, #tpu.memory_space<vmem>>, vector<1x64x128xf32>,
    %38 = vector.extract_strided_slice %12 {offsets = [0, 640], sizes = [64, 128], strides = [1, 1]} : vector<64x1024xf32> to vector<64x128xf32>
    %39 = arith.addf %38, %5 : vector<64x128xf32>
    %c5 = arith.constant 5 : index
    %c0_25 = arith.constant 0 : index
    %c0_26 = arith.constant 0 : index
    %40 = vector.load %arg11[%c5, %c0_25, %c0_26] : memref<8x64x128xf32, #tpu.memory_space<vmem>>, vector<1x64x128xf32>
    %41 = vector.shape_cast %40 : vector<1x64x128xf32> to vector<64x128xf32>
    %42 = vector.shape_cast %39 : vector<64x128xf32> to vector<1x64x128xf32>
    tpu.vector_store %arg11[%c5, %c0_25, %c0_26], %42 {strides = array<i32>} : memref<8x64x128xf32, #tpu.memory_space<vmem>>, vector<1x64x128xf32>,
    %43 = vector.extract_strided_slice %12 {offsets = [0, 768], sizes = [64, 128], strides = [1, 1]} : vector<64x1024xf32> to vector<64x128xf32>
    %44 = arith.addf %43, %5 : vector<64x128xf32>
    %c6 = arith.constant 6 : index
    %c0_27 = arith.constant 0 : index
    %c0_28 = arith.constant 0 : index
    %45 = vector.load %arg11[%c6, %c0_27, %c0_28] : memref<8x64x128xf32, #tpu.memory_space<vmem>>, vector<1x64x128xf32>
    %46 = vector.shape_cast %45 : vector<1x64x128xf32> to vector<64x128xf32>
    %47 = vector.shape_cast %44 : vector<64x128xf32> to vector<1x64x128xf32>
    tpu.vector_store %arg11[%c6, %c0_27, %c0_28], %47 {strides = array<i32>} : memref<8x64x128xf32, #tpu.memory_space<vmem>>, vector<1x64x128xf32>,
    %48 = vector.extract_strided_slice %12 {offsets = [0, 896], sizes = [64, 128], strides = [1, 1]} : vector<64x1024xf32> to vector<64x128xf32>
    %49 = arith.addf %48, %5 : vector<64x128xf32>
    %c7 = arith.constant 7 : index
    %c0_29 = arith.constant 0 : index
    %c0_30 = arith.constant 0 : index
    %50 = vector.load %arg11[%c7, %c0_29, %c0_30] : memref<8x64x128xf32, #tpu.memory_space<vmem>>, vector<1x64x128xf32>
    %51 = vector.shape_cast %50 : vector<1x64x128xf32> to vector<64x128xf32>
    %52 = vector.shape_cast %49 : vector<64x128xf32> to vector<1x64x128xf32>
    tpu.vector_store %arg11[%c7, %c0_29, %c0_30], %52 {strides = array<i32>} : memref<8x64x128xf32, #tpu.memory_space<vmem>>, vector<1x64x128xf32>,
    %cst_31 = arith.constant 0.000000e+00 : f32
    %53 = vector.broadcast %cst_31 : f32 to vector<16x128xf32>
    %c0_i32 = arith.constant 0 : i32
    %54 = arith.truncf %53 : vector<16x128xf32> to vector<16x128xbf16>
    %cst_32 = arith.constant dense<0.000000e+00> : vector<64x128xf32>
    %55 = tpu.matmul %2, %54, %cst_32 {dimension_numbers = #tpu.dot_dimension_numbers<[1], [0], [0], [1], [0, 0, 1, 1], [], []>} : vector<64x16xbf16>, vector<16x128xbf16>, vector<64x128xf32> -> vector<64x128xf32>
    %56 = arith.index_cast %c0_i32 : i32 to index
    %c0_33 = arith.constant 0 : index
    %c0_34 = arith.constant 0 : index
    %57 = vector.load %arg11[%56, %c0_33, %c0_34] : memref<8x64x128xf32, #tpu.memory_space<vmem>>, vector<1x64x128xf32>
    %58 = vector.shape_cast %57 : vector<1x64x128xf32> to vector<64x128xf32>
    %59 = arith.truncf %53 : vector<16x128xf32> to vector<16x128xbf16>
    %cst_35 = arith.constant dense<0.000000e+00> : vector<64x128xf32>
    %60 = tpu.matmul %0, %59, %cst_35 {dimension_numbers = #tpu.dot_dimension_numbers<[1], [0], [0], [1], [0, 0, 1, 1], [], []>} : vector<64x16xbf16>, vector<16x128xbf16>, vector<64x128xf32> -> vector<64x128xf32>
    %61 = arith.addf %58, %60 : vector<64x128xf32>
    %62 = vector.extract_strided_slice %61 {offsets = [0, 0], sizes = [16, 128], strides = [1, 1]} : vector<64x128xf32> to vector<16x128xf32>
    %cst_36 = arith.constant 5.000000e-01 : f32
    %63 = vector.broadcast %cst_36 : f32 to vector<16x128xf32>
    %64 = arith.mulf %63, %62 : vector<16x128xf32>
    %65 = math.tanh %64 : vector<16x128xf32>
    %cst_37 = arith.constant 5.000000e-01 : f32
    %66 = vector.broadcast %cst_37 : f32 to vector<16x128xf32>
    %67 = arith.mulf %66, %65 : vector<16x128xf32>
    %cst_38 = arith.constant 5.000000e-01 : f32
    %68 = vector.broadcast %cst_38 : f32 to vector<16x128xf32>
    %69 = arith.addf %67, %68 : vector<16x128xf32>
    %70 = vector.extract_strided_slice %61 {offsets = [16, 0], sizes = [16, 128], strides = [1, 1]} : vector<64x128xf32> to vector<16x128xf32>
    %cst_39 = arith.constant 5.000000e-01 : f32
    %71 = vector.broadcast %cst_39 : f32 to vector<16x128xf32>
    %72 = arith.mulf %71, %70 : vector<16x128xf32>
    %73 = math.tanh %72 : vector<16x128xf32>
    %cst_40 = arith.constant 5.000000e-01 : f32
    %74 = vector.broadcast %cst_40 : f32 to vector<16x128xf32>
    %75 = arith.mulf %74, %73 : vector<16x128xf32>
    %cst_41 = arith.constant 5.000000e-01 : f32
    %76 = vector.broadcast %cst_41 : f32 to vector<16x128xf32>
    %77 = arith.addf %75, %76 : vector<16x128xf32>
    %78 = vector.extract_strided_slice %61 {offsets = [32, 0], sizes = [16, 128], strides = [1, 1]} : vector<64x128xf32> to vector<16x128xf32>
    %79 = math.tanh %78 : vector<16x128xf32>
    %80 = vector.extract_strided_slice %61 {offsets = [48, 0], sizes = [16, 128], strides = [1, 1]} : vector<64x128xf32> to vector<16x128xf32>
    %cst_42 = arith.constant 5.000000e-01 : f32
    %81 = vector.broadcast %cst_42 : f32 to vector<16x128xf32>
    %82 = arith.mulf %81, %80 : vector<16x128xf32>
    %83 = math.tanh %82 : vector<16x128xf32>
    %cst_43 = arith.constant 5.000000e-01 : f32
    %84 = vector.broadcast %cst_43 : f32 to vector<16x128xf32>
    %85 = arith.mulf %84, %83 : vector<16x128xf32>
    %cst_44 = arith.constant 5.000000e-01 : f32
    %86 = vector.broadcast %cst_44 : f32 to vector<16x128xf32>
    %87 = arith.addf %85, %86 : vector<16x128xf32>
    %88 = arith.mulf %77, %53 : vector<16x128xf32>
    %89 = arith.mulf %69, %79 : vector<16x128xf32>
    %90 = arith.addf %88, %89 : vector<16x128xf32>
    %91 = math.tanh %90 : vector<16x128xf32>
    %92 = arith.mulf %87, %91 : vector<16x128xf32>
    %93 = arith.truncf %92 : vector<16x128xf32> to vector<16x128xbf16>
    %cst_45 = arith.constant dense<0.000000e+00> : vector<64x128xf32>
    %94 = tpu.matmul %1, %93, %cst_45 {dimension_numbers = #tpu.dot_dimension_numbers<[1], [0], [0], [1], [0, 0, 1, 1], [], []>} : vector<64x16xbf16>, vector<16x128xbf16>, vector<64x128xf32> -> vector<64x128xf32>
    %95 = arith.addf %55, %94 : vector<64x128xf32>
    %96 = arith.addf %95, %8 : vector<64x128xf32>
    %97 = vector.extract_strided_slice %96 {offsets = [0, 0], sizes = [16, 128], strides = [1, 1]} : vector<64x128xf32> to vector<16x128xf32>
    %cst_46 = arith.constant 5.000000e-01 : f32
    %98 = vector.broadcast %cst_46 : f32 to vector<16x128xf32>
    %99 = arith.mulf %98, %97 : vector<16x128xf32>
    %100 = math.tanh %99 : vector<16x128xf32>
    %cst_47 = arith.constant 5.000000e-01 : f32
    %101 = vector.broadcast %cst_47 : f32 to vector<16x128xf32>
    %102 = arith.mulf %101, %100 : vector<16x128xf32>
    %cst_48 = arith.constant 5.000000e-01 : f32
    %103 = vector.broadcast %cst_48 : f32 to vector<16x128xf32>
    %104 = arith.addf %102, %103 : vector<16x128xf32>
    %105 = vector.extract_strided_slice %96 {offsets = [16, 0], sizes = [16, 128], strides = [1, 1]} : vector<64x128xf32> to vector<16x128xf32>
    %cst_49 = arith.constant 5.000000e-01 : f32
    %106 = vector.broadcast %cst_49 : f32 to vector<16x128xf32>
    %107 = arith.mulf %106, %105 : vector<16x128xf32>
    %108 = math.tanh %107 : vector<16x128xf32>
    %cst_50 = arith.constant 5.000000e-01 : f32
    %109 = vector.broadcast %cst_50 : f32 to vector<16x128xf32>
    %110 = arith.mulf %109, %108 : vector<16x128xf32>
    %cst_51 = arith.constant 5.000000e-01 : f32
    %111 = vector.broadcast %cst_51 : f32 to vector<16x128xf32>
    %112 = arith.addf %110, %111 : vector<16x128xf32>
    %113 = vector.extract_strided_slice %96 {offsets = [32, 0], sizes = [16, 128], strides = [1, 1]} : vector<64x128xf32> to vector<16x128xf32>
    %114 = math.tanh %113 : vector<16x128xf32>
    %115 = vector.extract_strided_slice %96 {offsets = [48, 0], sizes = [16, 128], strides = [1, 1]} : vector<64x128xf32> to vector<16x128xf32>
    %cst_52 = arith.constant 5.000000e-01 : f32
    %116 = vector.broadcast %cst_52 : f32 to vector<16x128xf32>
    %117 = arith.mulf %116, %115 : vector<16x128xf32>
    %118 = math.tanh %117 : vector<16x128xf32>
    %cst_53 = arith.constant 5.000000e-01 : f32
    %119 = vector.broadcast %cst_53 : f32 to vector<16x128xf32>
    %120 = arith.mulf %119, %118 : vector<16x128xf32>
    %cst_54 = arith.constant 5.000000e-01 : f32
    %121 = vector.broadcast %cst_54 : f32 to vector<16x128xf32>
    %122 = arith.addf %120, %121 : vector<16x128xf32>
    %123 = arith.mulf %112, %53 : vector<16x128xf32>
    %124 = arith.mulf %104, %114 : vector<16x128xf32>
    %125 = arith.addf %123, %124 : vector<16x128xf32>
    %126 = math.tanh %125 : vector<16x128xf32>
    %127 = arith.mulf %122, %126 : vector<16x128xf32>
    %c1_i32 = arith.constant 1 : i32
    %128 = arith.truncf %127 : vector<16x128xf32> to vector<16x128xbf16>
    %cst_55 = arith.constant dense<0.000000e+00> : vector<64x128xf32>
    %129 = tpu.matmul %2, %128, %cst_55 {dimension_numbers = #tpu.dot_dimension_numbers<[1], [0], [0], [1], [0, 0, 1, 1], [], []>} : vector<64x16xbf16>, vector<16x128xbf16>, vector<64x128xf32> -> vector<64x128xf32>
    %130 = arith.index_cast %c1_i32 : i32 to index
    %c0_56 = arith.constant 0 : index
    %c0_57 = arith.constant 0 : index
    %131 = vector.load %arg11[%130, %c0_56, %c0_57] : memref<8x64x128xf32, #tpu.memory_space<vmem>>, vector<1x64x128xf32>
    %132 = vector.shape_cast %131 : vector<1x64x128xf32> to vector<64x128xf32>
    %133 = arith.truncf %92 : vector<16x128xf32> to vector<16x128xbf16>
    %cst_58 = arith.constant dense<0.000000e+00> : vector<64x128xf32>
    %134 = tpu.matmul %0, %133, %cst_58 {dimension_numbers = #tpu.dot_dimension_numbers<[1], [0], [0], [1], [0, 0, 1, 1], [], []>} : vector<64x16xbf16>, vector<16x128xbf16>, vector<64x128xf32> -> vector<64x128xf32>
    %135 = arith.addf %132, %134 : vector<64x128xf32>
    %136 = vector.extract_strided_slice %135 {offsets = [0, 0], sizes = [16, 128], strides = [1, 1]} : vector<64x128xf32> to vector<16x128xf32>
    %cst_59 = arith.constant 5.000000e-01 : f32
    %137 = vector.broadcast %cst_59 : f32 to vector<16x128xf32>
    %138 = arith.mulf %137, %136 : vector<16x128xf32>
    %139 = math.tanh %138 : vector<16x128xf32>
    %cst_60 = arith.constant 5.000000e-01 : f32
    %140 = vector.broadcast %cst_60 : f32 to vector<16x128xf32>
    %141 = arith.mulf %140, %139 : vector<16x128xf32>
    %cst_61 = arith.constant 5.000000e-01 : f32
    %142 = vector.broadcast %cst_61 : f32 to vector<16x128xf32>
    %143 = arith.addf %141, %142 : vector<16x128xf32>
    %144 = vector.extract_strided_slice %135 {offsets = [16, 0], sizes = [16, 128], strides = [1, 1]} : vector<64x128xf32> to vector<16x128xf32>
    %cst_62 = arith.constant 5.000000e-01 : f32
    %145 = vector.broadcast %cst_62 : f32 to vector<16x128xf32>
    %146 = arith.mulf %145, %144 : vector<16x128xf32>
    %147 = math.tanh %146 : vector<16x128xf32>
    %cst_63 = arith.constant 5.000000e-01 : f32
    %148 = vector.broadcast %cst_63 : f32 to vector<16x128xf32>
    %149 = arith.mulf %148, %147 : vector<16x128xf32>
    %cst_64 = arith.constant 5.000000e-01 : f32
    %150 = vector.broadcast %cst_64 : f32 to vector<16x128xf32>
    %151 = arith.addf %149, %150 : vector<16x128xf32>
    %152 = vector.extract_strided_slice %135 {offsets = [32, 0], sizes = [16, 128], strides = [1, 1]} : vector<64x128xf32> to vector<16x128xf32>
    %153 = math.tanh %152 : vector<16x128xf32>
    %154 = vector.extract_strided_slice %135 {offsets = [48, 0], sizes = [16, 128], strides = [1, 1]} : vector<64x128xf32> to vector<16x128xf32>
    %cst_65 = arith.constant 5.000000e-01 : f32
    %155 = vector.broadcast %cst_65 : f32 to vector<16x128xf32>
    %156 = arith.mulf %155, %154 : vector<16x128xf32>
    %157 = math.tanh %156 : vector<16x128xf32>
    %cst_66 = arith.constant 5.000000e-01 : f32
    %158 = vector.broadcast %cst_66 : f32 to vector<16x128xf32>
    %159 = arith.mulf %158, %157 : vector<16x128xf32>
    %cst_67 = arith.constant 5.000000e-01 : f32
    %160 = vector.broadcast %cst_67 : f32 to vector<16x128xf32>
    %161 = arith.addf %159, %160 : vector<16x128xf32>
    %162 = arith.mulf %151, %90 : vector<16x128xf32>
    %163 = arith.mulf %143, %153 : vector<16x128xf32>
    %164 = arith.addf %162, %163 : vector<16x128xf32>
    %165 = math.tanh %164 : vector<16x128xf32>
    %166 = arith.mulf %161, %165 : vector<16x128xf32>
    %167 = arith.truncf %166 : vector<16x128xf32> to vector<16x128xbf16>
    %cst_68 = arith.constant dense<0.000000e+00> : vector<64x128xf32>
    %168 = tpu.matmul %1, %167, %cst_68 {dimension_numbers = #tpu.dot_dimension_numbers<[1], [0], [0], [1], [0, 0, 1, 1], [], []>} : vector<64x16xbf16>, vector<16x128xbf16>, vector<64x128xf32> -> vector<64x128xf32>
    %169 = arith.addf %129, %168 : vector<64x128xf32>
    %170 = arith.addf %169, %8 : vector<64x128xf32>
    %171 = vector.extract_strided_slice %170 {offsets = [0, 0], sizes = [16, 128], strides = [1, 1]} : vector<64x128xf32> to vector<16x128xf32>
    %cst_69 = arith.constant 5.000000e-01 : f32
    %172 = vector.broadcast %cst_69 : f32 to vector<16x128xf32>
    %173 = arith.mulf %172, %171 : vector<16x128xf32>
    %174 = math.tanh %173 : vector<16x128xf32>
    %cst_70 = arith.constant 5.000000e-01 : f32
    %175 = vector.broadcast %cst_70 : f32 to vector<16x128xf32>
    %176 = arith.mulf %175, %174 : vector<16x128xf32>
    %cst_71 = arith.constant 5.000000e-01 : f32
    %177 = vector.broadcast %cst_71 : f32 to vector<16x128xf32>
    %178 = arith.addf %176, %177 : vector<16x128xf32>
    %179 = vector.extract_strided_slice %170 {offsets = [16, 0], sizes = [16, 128], strides = [1, 1]} : vector<64x128xf32> to vector<16x128xf32>
    %cst_72 = arith.constant 5.000000e-01 : f32
    %180 = vector.broadcast %cst_72 : f32 to vector<16x128xf32>
    %181 = arith.mulf %180, %179 : vector<16x128xf32>
    %182 = math.tanh %181 : vector<16x128xf32>
    %cst_73 = arith.constant 5.000000e-01 : f32
    %183 = vector.broadcast %cst_73 : f32 to vector<16x128xf32>
    %184 = arith.mulf %183, %182 : vector<16x128xf32>
    %cst_74 = arith.constant 5.000000e-01 : f32
    %185 = vector.broadcast %cst_74 : f32 to vector<16x128xf32>
    %186 = arith.addf %184, %185 : vector<16x128xf32>
    %187 = vector.extract_strided_slice %170 {offsets = [32, 0], sizes = [16, 128], strides = [1, 1]} : vector<64x128xf32> to vector<16x128xf32>
    %188 = math.tanh %187 : vector<16x128xf32>
    %189 = vector.extract_strided_slice %170 {offsets = [48, 0], sizes = [16, 128], strides = [1, 1]} : vector<64x128xf32> to vector<16x128xf32>
    %cst_75 = arith.constant 5.000000e-01 : f32
    %190 = vector.broadcast %cst_75 : f32 to vector<16x128xf32>
    %191 = arith.mulf %190, %189 : vector<16x128xf32>
    %192 = math.tanh %191 : vector<16x128xf32>
    %cst_76 = arith.constant 5.000000e-01 : f32
    %193 = vector.broadcast %cst_76 : f32 to vector<16x128xf32>
    %194 = arith.mulf %193, %192 : vector<16x128xf32>
    %cst_77 = arith.constant 5.000000e-01 : f32
    %195 = vector.broadcast %cst_77 : f32 to vector<16x128xf32>
    %196 = arith.addf %194, %195 : vector<16x128xf32>
    %197 = arith.mulf %186, %125 : vector<16x128xf32>
    %198 = arith.mulf %178, %188 : vector<16x128xf32>
    %199 = arith.addf %197, %198 : vector<16x128xf32>
    %200 = math.tanh %199 : vector<16x128xf32>
    %201 = arith.mulf %196, %200 : vector<16x128xf32>
    %c2_i32 = arith.constant 2 : i32
    %202 = arith.truncf %201 : vector<16x128xf32> to vector<16x128xbf16>
    %cst_78 = arith.constant dense<0.000000e+00> : vector<64x128xf32>
    %203 = tpu.matmul %2, %202, %cst_78 {dimension_numbers = #tpu.dot_dimension_numbers<[1], [0], [0], [1], [0, 0, 1, 1], [], []>} : vector<64x16xbf16>, vector<16x128xbf16>, vector<64x128xf32> -> vector<64x128xf32>
    %204 = arith.index_cast %c2_i32 : i32 to index
    %c0_79 = arith.constant 0 : index
    %c0_80 = arith.constant 0 : index
    %205 = vector.load %arg11[%204, %c0_79, %c0_80] : memref<8x64x128xf32, #tpu.memory_space<vmem>>, vector<1x64x128xf32>
    %206 = vector.shape_cast %205 : vector<1x64x128xf32> to vector<64x128xf32>
    %207 = arith.truncf %166 : vector<16x128xf32> to vector<16x128xbf16>
    %cst_81 = arith.constant dense<0.000000e+00> : vector<64x128xf32>
    %208 = tpu.matmul %0, %207, %cst_81 {dimension_numbers = #tpu.dot_dimension_numbers<[1], [0], [0], [1], [0, 0, 1, 1], [], []>} : vector<64x16xbf16>, vector<16x128xbf16>, vector<64x128xf32> -> vector<64x128xf32>
    %209 = arith.addf %206, %208 : vector<64x128xf32>
    %210 = vector.extract_strided_slice %209 {offsets = [0, 0], sizes = [16, 128], strides = [1, 1]} : vector<64x128xf32> to vector<16x128xf32>
    %cst_82 = arith.constant 5.000000e-01 : f32
    %211 = vector.broadcast %cst_82 : f32 to vector<16x128xf32>
    %212 = arith.mulf %211, %210 : vector<16x128xf32>
    %213 = math.tanh %212 : vector<16x128xf32>
    %cst_83 = arith.constant 5.000000e-01 : f32
    %214 = vector.broadcast %cst_83 : f32 to vector<16x128xf32>
    %215 = arith.mulf %214, %213 : vector<16x128xf32>
    %cst_84 = arith.constant 5.000000e-01 : f32
    %216 = vector.broadcast %cst_84 : f32 to vector<16x128xf32>
    %217 = arith.addf %215, %216 : vector<16x128xf32>
    %218 = vector.extract_strided_slice %209 {offsets = [16, 0], sizes = [16, 128], strides = [1, 1]} : vector<64x128xf32> to vector<16x128xf32>
    %cst_85 = arith.constant 5.000000e-01 : f32
    %219 = vector.broadcast %cst_85 : f32 to vector<16x128xf32>
    %220 = arith.mulf %219, %218 : vector<16x128xf32>
    %221 = math.tanh %220 : vector<16x128xf32>
    %cst_86 = arith.constant 5.000000e-01 : f32
    %222 = vector.broadcast %cst_86 : f32 to vector<16x128xf32>
    %223 = arith.mulf %222, %221 : vector<16x128xf32>
    %cst_87 = arith.constant 5.000000e-01 : f32
    %224 = vector.broadcast %cst_87 : f32 to vector<16x128xf32>
    %225 = arith.addf %223, %224 : vector<16x128xf32>
    %226 = vector.extract_strided_slice %209 {offsets = [32, 0], sizes = [16, 128], strides = [1, 1]} : vector<64x128xf32> to vector<16x128xf32>
    %227 = math.tanh %226 : vector<16x128xf32>
    %228 = vector.extract_strided_slice %209 {offsets = [48, 0], sizes = [16, 128], strides = [1, 1]} : vector<64x128xf32> to vector<16x128xf32>
    %cst_88 = arith.constant 5.000000e-01 : f32
    %229 = vector.broadcast %cst_88 : f32 to vector<16x128xf32>
    %230 = arith.mulf %229, %228 : vector<16x128xf32>
    %231 = math.tanh %230 : vector<16x128xf32>
    %cst_89 = arith.constant 5.000000e-01 : f32
    %232 = vector.broadcast %cst_89 : f32 to vector<16x128xf32>
    %233 = arith.mulf %232, %231 : vector<16x128xf32>
    %cst_90 = arith.constant 5.000000e-01 : f32
    %234 = vector.broadcast %cst_90 : f32 to vector<16x128xf32>
    %235 = arith.addf %233, %234 : vector<16x128xf32>
    %236 = arith.mulf %225, %164 : vector<16x128xf32>
    %237 = arith.mulf %217, %227 : vector<16x128xf32>
    %238 = arith.addf %236, %237 : vector<16x128xf32>
    %239 = math.tanh %238 : vector<16x128xf32>
    %240 = arith.mulf %235, %239 : vector<16x128xf32>
    %241 = arith.truncf %240 : vector<16x128xf32> to vector<16x128xbf16>
    %cst_91 = arith.constant dense<0.000000e+00> : vector<64x128xf32>
    %242 = tpu.matmul %1, %241, %cst_91 {dimension_numbers = #tpu.dot_dimension_numbers<[1], [0], [0], [1], [0, 0, 1, 1], [], []>} : vector<64x16xbf16>, vector<16x128xbf16>, vector<64x128xf32> -> vector<64x128xf32>
    %243 = arith.addf %203, %242 : vector<64x128xf32>
    %244 = arith.addf %243, %8 : vector<64x128xf32>
    %245 = vector.extract_strided_slice %244 {offsets = [0, 0], sizes = [16, 128], strides = [1, 1]} : vector<64x128xf32> to vector<16x128xf32>
    %cst_92 = arith.constant 5.000000e-01 : f32
    %246 = vector.broadcast %cst_92 : f32 to vector<16x128xf32>
    %247 = arith.mulf %246, %245 : vector<16x128xf32>
    %248 = math.tanh %247 : vector<16x128xf32>
    %cst_93 = arith.constant 5.000000e-01 : f32
    %249 = vector.broadcast %cst_93 : f32 to vector<16x128xf32>
    %250 = arith.mulf %249, %248 : vector<16x128xf32>
    %cst_94 = arith.constant 5.000000e-01 : f32
    %251 = vector.broadcast %cst_94 : f32 to vector<16x128xf32>
    %252 = arith.addf %250, %251 : vector<16x128xf32>
    %253 = vector.extract_strided_slice %244 {offsets = [16, 0], sizes = [16, 128], strides = [1, 1]} : vector<64x128xf32> to vector<16x128xf32>
    %cst_95 = arith.constant 5.000000e-01 : f32
    %254 = vector.broadcast %cst_95 : f32 to vector<16x128xf32>
    %255 = arith.mulf %254, %253 : vector<16x128xf32>
    %256 = math.tanh %255 : vector<16x128xf32>
    %cst_96 = arith.constant 5.000000e-01 : f32
    %257 = vector.broadcast %cst_96 : f32 to vector<16x128xf32>
    %258 = arith.mulf %257, %256 : vector<16x128xf32>
    %cst_97 = arith.constant 5.000000e-01 : f32
    %259 = vector.broadcast %cst_97 : f32 to vector<16x128xf32>
    %260 = arith.addf %258, %259 : vector<16x128xf32>
    %261 = vector.extract_strided_slice %244 {offsets = [32, 0], sizes = [16, 128], strides = [1, 1]} : vector<64x128xf32> to vector<16x128xf32>
    %262 = math.tanh %261 : vector<16x128xf32>
    %263 = vector.extract_strided_slice %244 {offsets = [48, 0], sizes = [16, 128], strides = [1, 1]} : vector<64x128xf32> to vector<16x128xf32>
    %cst_98 = arith.constant 5.000000e-01 : f32
    %264 = vector.broadcast %cst_98 : f32 to vector<16x128xf32>
    %265 = arith.mulf %264, %263 : vector<16x128xf32>
    %266 = math.tanh %265 : vector<16x128xf32>
    %cst_99 = arith.constant 5.000000e-01 : f32
    %267 = vector.broadcast %cst_99 : f32 to vector<16x128xf32>
    %268 = arith.mulf %267, %266 : vector<16x128xf32>
    %cst_100 = arith.constant 5.000000e-01 : f32
    %269 = vector.broadcast %cst_100 : f32 to vector<16x128xf32>
    %270 = arith.addf %268, %269 : vector<16x128xf32>
    %271 = arith.mulf %260, %199 : vector<16x128xf32>
    %272 = arith.mulf %252, %262 : vector<16x128xf32>
    %273 = arith.addf %271, %272 : vector<16x128xf32>
    %274 = math.tanh %273 : vector<16x128xf32>
    %275 = arith.mulf %270, %274 : vector<16x128xf32>
    %c3_i32 = arith.constant 3 : i32
    %276 = arith.truncf %275 : vector<16x128xf32> to vector<16x128xbf16>
    %cst_101 = arith.constant dense<0.000000e+00> : vector<64x128xf32>
    %277 = tpu.matmul %2, %276, %cst_101 {dimension_numbers = #tpu.dot_dimension_numbers<[1], [0], [0], [1], [0, 0, 1, 1], [], []>} : vector<64x16xbf16>, vector<16x128xbf16>, vector<64x128xf32> -> vector<64x128xf32>
    %278 = arith.index_cast %c3_i32 : i32 to index
    %c0_102 = arith.constant 0 : index
    %c0_103 = arith.constant 0 : index
    %279 = vector.load %arg11[%278, %c0_102, %c0_103] : memref<8x64x128xf32, #tpu.memory_space<vmem>>, vector<1x64x128xf32>
    %280 = vector.shape_cast %279 : vector<1x64x128xf32> to vector<64x128xf32>
    %281 = arith.truncf %240 : vector<16x128xf32> to vector<16x128xbf16>
    %cst_104 = arith.constant dense<0.000000e+00> : vector<64x128xf32>
    %282 = tpu.matmul %0, %281, %cst_104 {dimension_numbers = #tpu.dot_dimension_numbers<[1], [0], [0], [1], [0, 0, 1, 1], [], []>} : vector<64x16xbf16>, vector<16x128xbf16>, vector<64x128xf32> -> vector<64x128xf32>
    %283 = arith.addf %280, %282 : vector<64x128xf32>
    %284 = vector.extract_strided_slice %283 {offsets = [0, 0], sizes = [16, 128], strides = [1, 1]} : vector<64x128xf32> to vector<16x128xf32>
    %cst_105 = arith.constant 5.000000e-01 : f32
    %285 = vector.broadcast %cst_105 : f32 to vector<16x128xf32>
    %286 = arith.mulf %285, %284 : vector<16x128xf32>
    %287 = math.tanh %286 : vector<16x128xf32>
    %cst_106 = arith.constant 5.000000e-01 : f32
    %288 = vector.broadcast %cst_106 : f32 to vector<16x128xf32>
    %289 = arith.mulf %288, %287 : vector<16x128xf32>
    %cst_107 = arith.constant 5.000000e-01 : f32
    %290 = vector.broadcast %cst_107 : f32 to vector<16x128xf32>
    %291 = arith.addf %289, %290 : vector<16x128xf32>
    %292 = vector.extract_strided_slice %283 {offsets = [16, 0], sizes = [16, 128], strides = [1, 1]} : vector<64x128xf32> to vector<16x128xf32>
    %cst_108 = arith.constant 5.000000e-01 : f32
    %293 = vector.broadcast %cst_108 : f32 to vector<16x128xf32>
    %294 = arith.mulf %293, %292 : vector<16x128xf32>
    %295 = math.tanh %294 : vector<16x128xf32>
    %cst_109 = arith.constant 5.000000e-01 : f32
    %296 = vector.broadcast %cst_109 : f32 to vector<16x128xf32>
    %297 = arith.mulf %296, %295 : vector<16x128xf32>
    %cst_110 = arith.constant 5.000000e-01 : f32
    %298 = vector.broadcast %cst_110 : f32 to vector<16x128xf32>
    %299 = arith.addf %297, %298 : vector<16x128xf32>
    %300 = vector.extract_strided_slice %283 {offsets = [32, 0], sizes = [16, 128], strides = [1, 1]} : vector<64x128xf32> to vector<16x128xf32>
    %301 = math.tanh %300 : vector<16x128xf32>
    %302 = vector.extract_strided_slice %283 {offsets = [48, 0], sizes = [16, 128], strides = [1, 1]} : vector<64x128xf32> to vector<16x128xf32>
    %cst_111 = arith.constant 5.000000e-01 : f32
    %303 = vector.broadcast %cst_111 : f32 to vector<16x128xf32>
    %304 = arith.mulf %303, %302 : vector<16x128xf32>
    %305 = math.tanh %304 : vector<16x128xf32>
    %cst_112 = arith.constant 5.000000e-01 : f32
    %306 = vector.broadcast %cst_112 : f32 to vector<16x128xf32>
    %307 = arith.mulf %306, %305 : vector<16x128xf32>
    %cst_113 = arith.constant 5.000000e-01 : f32
    %308 = vector.broadcast %cst_113 : f32 to vector<16x128xf32>
    %309 = arith.addf %307, %308 : vector<16x128xf32>
    %310 = arith.mulf %299, %238 : vector<16x128xf32>
    %311 = arith.mulf %291, %301 : vector<16x128xf32>
    %312 = arith.addf %310, %311 : vector<16x128xf32>
    %313 = math.tanh %312 : vector<16x128xf32>
    %314 = arith.mulf %309, %313 : vector<16x128xf32>
    %315 = arith.truncf %314 : vector<16x128xf32> to vector<16x128xbf16>
    %cst_114 = arith.constant dense<0.000000e+00> : vector<64x128xf32>
    %316 = tpu.matmul %1, %315, %cst_114 {dimension_numbers = #tpu.dot_dimension_numbers<[1], [0], [0], [1], [0, 0, 1, 1], [], []>} : vector<64x16xbf16>, vector<16x128xbf16>, vector<64x128xf32> -> vector<64x128xf32>
    %317 = arith.addf %277, %316 : vector<64x128xf32>
    %318 = arith.addf %317, %8 : vector<64x128xf32>
    %319 = vector.extract_strided_slice %318 {offsets = [0, 0], sizes = [16, 128], strides = [1, 1]} : vector<64x128xf32> to vector<16x128xf32>
    %cst_115 = arith.constant 5.000000e-01 : f32
    %320 = vector.broadcast %cst_115 : f32 to vector<16x128xf32>
    %321 = arith.mulf %320, %319 : vector<16x128xf32>
    %322 = math.tanh %321 : vector<16x128xf32>
    %cst_116 = arith.constant 5.000000e-01 : f32
    %323 = vector.broadcast %cst_116 : f32 to vector<16x128xf32>
    %324 = arith.mulf %323, %322 : vector<16x128xf32>
    %cst_117 = arith.constant 5.000000e-01 : f32
    %325 = vector.broadcast %cst_117 : f32 to vector<16x128xf32>
    %326 = arith.addf %324, %325 : vector<16x128xf32>
    %327 = vector.extract_strided_slice %318 {offsets = [16, 0], sizes = [16, 128], strides = [1, 1]} : vector<64x128xf32> to vector<16x128xf32>
    %cst_118 = arith.constant 5.000000e-01 : f32
    %328 = vector.broadcast %cst_118 : f32 to vector<16x128xf32>
    %329 = arith.mulf %328, %327 : vector<16x128xf32>
    %330 = math.tanh %329 : vector<16x128xf32>
    %cst_119 = arith.constant 5.000000e-01 : f32
    %331 = vector.broadcast %cst_119 : f32 to vector<16x128xf32>
    %332 = arith.mulf %331, %330 : vector<16x128xf32>
    %cst_120 = arith.constant 5.000000e-01 : f32
    %333 = vector.broadcast %cst_120 : f32 to vector<16x128xf32>
    %334 = arith.addf %332, %333 : vector<16x128xf32>
    %335 = vector.extract_strided_slice %318 {offsets = [32, 0], sizes = [16, 128], strides = [1, 1]} : vector<64x128xf32> to vector<16x128xf32>
    %336 = math.tanh %335 : vector<16x128xf32>
    %337 = vector.extract_strided_slice %318 {offsets = [48, 0], sizes = [16, 128], strides = [1, 1]} : vector<64x128xf32> to vector<16x128xf32>
    %cst_121 = arith.constant 5.000000e-01 : f32
    %338 = vector.broadcast %cst_121 : f32 to vector<16x128xf32>
    %339 = arith.mulf %338, %337 : vector<16x128xf32>
    %340 = math.tanh %339 : vector<16x128xf32>
    %cst_122 = arith.constant 5.000000e-01 : f32
    %341 = vector.broadcast %cst_122 : f32 to vector<16x128xf32>
    %342 = arith.mulf %341, %340 : vector<16x128xf32>
    %cst_123 = arith.constant 5.000000e-01 : f32
    %343 = vector.broadcast %cst_123 : f32 to vector<16x128xf32>
    %344 = arith.addf %342, %343 : vector<16x128xf32>
    %345 = arith.mulf %334, %273 : vector<16x128xf32>
    %346 = arith.mulf %326, %336 : vector<16x128xf32>
    %347 = arith.addf %345, %346 : vector<16x128xf32>
    %348 = math.tanh %347 : vector<16x128xf32>
    %349 = arith.mulf %344, %348 : vector<16x128xf32>
    %c4_i32 = arith.constant 4 : i32
    %350 = arith.truncf %349 : vector<16x128xf32> to vector<16x128xbf16>
    %cst_124 = arith.constant dense<0.000000e+00> : vector<64x128xf32>
    %351 = tpu.matmul %2, %350, %cst_124 {dimension_numbers = #tpu.dot_dimension_numbers<[1], [0], [0], [1], [0, 0, 1, 1], [], []>} : vector<64x16xbf16>, vector<16x128xbf16>, vector<64x128xf32> -> vector<64x128xf32>
    %352 = arith.index_cast %c4_i32 : i32 to index
    %c0_125 = arith.constant 0 : index
    %c0_126 = arith.constant 0 : index
    %353 = vector.load %arg11[%352, %c0_125, %c0_126] : memref<8x64x128xf32, #tpu.memory_space<vmem>>, vector<1x64x128xf32>
    %354 = vector.shape_cast %353 : vector<1x64x128xf32> to vector<64x128xf32>
    %355 = arith.truncf %314 : vector<16x128xf32> to vector<16x128xbf16>
    %cst_127 = arith.constant dense<0.000000e+00> : vector<64x128xf32>
    %356 = tpu.matmul %0, %355, %cst_127 {dimension_numbers = #tpu.dot_dimension_numbers<[1], [0], [0], [1], [0, 0, 1, 1], [], []>} : vector<64x16xbf16>, vector<16x128xbf16>, vector<64x128xf32> -> vector<64x128xf32>
    %357 = arith.addf %354, %356 : vector<64x128xf32>
    %358 = vector.extract_strided_slice %357 {offsets = [0, 0], sizes = [16, 128], strides = [1, 1]} : vector<64x128xf32> to vector<16x128xf32>
    %cst_128 = arith.constant 5.000000e-01 : f32
    %359 = vector.broadcast %cst_128 : f32 to vector<16x128xf32>
    %360 = arith.mulf %359, %358 : vector<16x128xf32>
    %361 = math.tanh %360 : vector<16x128xf32>
    %cst_129 = arith.constant 5.000000e-01 : f32
    %362 = vector.broadcast %cst_129 : f32 to vector<16x128xf32>
    %363 = arith.mulf %362, %361 : vector<16x128xf32>
    %cst_130 = arith.constant 5.000000e-01 : f32
    %364 = vector.broadcast %cst_130 : f32 to vector<16x128xf32>
    %365 = arith.addf %363, %364 : vector<16x128xf32>
    %366 = vector.extract_strided_slice %357 {offsets = [16, 0], sizes = [16, 128], strides = [1, 1]} : vector<64x128xf32> to vector<16x128xf32>
    %cst_131 = arith.constant 5.000000e-01 : f32
    %367 = vector.broadcast %cst_131 : f32 to vector<16x128xf32>
    %368 = arith.mulf %367, %366 : vector<16x128xf32>
    %369 = math.tanh %368 : vector<16x128xf32>
    %cst_132 = arith.constant 5.000000e-01 : f32
    %370 = vector.broadcast %cst_132 : f32 to vector<16x128xf32>
    %371 = arith.mulf %370, %369 : vector<16x128xf32>
    %cst_133 = arith.constant 5.000000e-01 : f32
    %372 = vector.broadcast %cst_133 : f32 to vector<16x128xf32>
    %373 = arith.addf %371, %372 : vector<16x128xf32>
    %374 = vector.extract_strided_slice %357 {offsets = [32, 0], sizes = [16, 128], strides = [1, 1]} : vector<64x128xf32> to vector<16x128xf32>
    %375 = math.tanh %374 : vector<16x128xf32>
    %376 = vector.extract_strided_slice %357 {offsets = [48, 0], sizes = [16, 128], strides = [1, 1]} : vector<64x128xf32> to vector<16x128xf32>
    %cst_134 = arith.constant 5.000000e-01 : f32
    %377 = vector.broadcast %cst_134 : f32 to vector<16x128xf32>
    %378 = arith.mulf %377, %376 : vector<16x128xf32>
    %379 = math.tanh %378 : vector<16x128xf32>
    %cst_135 = arith.constant 5.000000e-01 : f32
    %380 = vector.broadcast %cst_135 : f32 to vector<16x128xf32>
    %381 = arith.mulf %380, %379 : vector<16x128xf32>
    %cst_136 = arith.constant 5.000000e-01 : f32
    %382 = vector.broadcast %cst_136 : f32 to vector<16x128xf32>
    %383 = arith.addf %381, %382 : vector<16x128xf32>
    %384 = arith.mulf %373, %312 : vector<16x128xf32>
    %385 = arith.mulf %365, %375 : vector<16x128xf32>
    %386 = arith.addf %384, %385 : vector<16x128xf32>
    %387 = math.tanh %386 : vector<16x128xf32>
    %388 = arith.mulf %383, %387 : vector<16x128xf32>
    %389 = arith.truncf %388 : vector<16x128xf32> to vector<16x128xbf16>
    %cst_137 = arith.constant dense<0.000000e+00> : vector<64x128xf32>
    %390 = tpu.matmul %1, %389, %cst_137 {dimension_numbers = #tpu.dot_dimension_numbers<[1], [0], [0], [1], [0, 0, 1, 1], [], []>} : vector<64x16xbf16>, vector<16x128xbf16>, vector<64x128xf32> -> vector<64x128xf32>
    %391 = arith.addf %351, %390 : vector<64x128xf32>
    %392 = arith.addf %391, %8 : vector<64x128xf32>
    %393 = vector.extract_strided_slice %392 {offsets = [0, 0], sizes = [16, 128], strides = [1, 1]} : vector<64x128xf32> to vector<16x128xf32>
    %cst_138 = arith.constant 5.000000e-01 : f32
    %394 = vector.broadcast %cst_138 : f32 to vector<16x128xf32>
    %395 = arith.mulf %394, %393 : vector<16x128xf32>
    %396 = math.tanh %395 : vector<16x128xf32>
    %cst_139 = arith.constant 5.000000e-01 : f32
    %397 = vector.broadcast %cst_139 : f32 to vector<16x128xf32>
    %398 = arith.mulf %397, %396 : vector<16x128xf32>
    %cst_140 = arith.constant 5.000000e-01 : f32
    %399 = vector.broadcast %cst_140 : f32 to vector<16x128xf32>
    %400 = arith.addf %398, %399 : vector<16x128xf32>
    %401 = vector.extract_strided_slice %392 {offsets = [16, 0], sizes = [16, 128], strides = [1, 1]} : vector<64x128xf32> to vector<16x128xf32>
    %cst_141 = arith.constant 5.000000e-01 : f32
    %402 = vector.broadcast %cst_141 : f32 to vector<16x128xf32>
    %403 = arith.mulf %402, %401 : vector<16x128xf32>
    %404 = math.tanh %403 : vector<16x128xf32>
    %cst_142 = arith.constant 5.000000e-01 : f32
    %405 = vector.broadcast %cst_142 : f32 to vector<16x128xf32>
    %406 = arith.mulf %405, %404 : vector<16x128xf32>
    %cst_143 = arith.constant 5.000000e-01 : f32
    %407 = vector.broadcast %cst_143 : f32 to vector<16x128xf32>
    %408 = arith.addf %406, %407 : vector<16x128xf32>
    %409 = vector.extract_strided_slice %392 {offsets = [32, 0], sizes = [16, 128], strides = [1, 1]} : vector<64x128xf32> to vector<16x128xf32>
    %410 = math.tanh %409 : vector<16x128xf32>
    %411 = vector.extract_strided_slice %392 {offsets = [48, 0], sizes = [16, 128], strides = [1, 1]} : vector<64x128xf32> to vector<16x128xf32>
    %cst_144 = arith.constant 5.000000e-01 : f32
    %412 = vector.broadcast %cst_144 : f32 to vector<16x128xf32>
    %413 = arith.mulf %412, %411 : vector<16x128xf32>
    %414 = math.tanh %413 : vector<16x128xf32>
    %cst_145 = arith.constant 5.000000e-01 : f32
    %415 = vector.broadcast %cst_145 : f32 to vector<16x128xf32>
    %416 = arith.mulf %415, %414 : vector<16x128xf32>
    %cst_146 = arith.constant 5.000000e-01 : f32
    %417 = vector.broadcast %cst_146 : f32 to vector<16x128xf32>
    %418 = arith.addf %416, %417 : vector<16x128xf32>
    %419 = arith.mulf %408, %347 : vector<16x128xf32>
    %420 = arith.mulf %400, %410 : vector<16x128xf32>
    %421 = arith.addf %419, %420 : vector<16x128xf32>
    %422 = math.tanh %421 : vector<16x128xf32>
    %423 = arith.mulf %418, %422 : vector<16x128xf32>
    %c5_i32 = arith.constant 5 : i32
    %424 = arith.truncf %423 : vector<16x128xf32> to vector<16x128xbf16>
    %cst_147 = arith.constant dense<0.000000e+00> : vector<64x128xf32>
    %425 = tpu.matmul %2, %424, %cst_147 {dimension_numbers = #tpu.dot_dimension_numbers<[1], [0], [0], [1], [0, 0, 1, 1], [], []>} : vector<64x16xbf16>, vector<16x128xbf16>, vector<64x128xf32> -> vector<64x128xf32>
    %426 = arith.index_cast %c5_i32 : i32 to index
    %c0_148 = arith.constant 0 : index
    %c0_149 = arith.constant 0 : index
    %427 = vector.load %arg11[%426, %c0_148, %c0_149] : memref<8x64x128xf32, #tpu.memory_space<vmem>>, vector<1x64x128xf32>
    %428 = vector.shape_cast %427 : vector<1x64x128xf32> to vector<64x128xf32>
    %429 = arith.truncf %388 : vector<16x128xf32> to vector<16x128xbf16>
    %cst_150 = arith.constant dense<0.000000e+00> : vector<64x128xf32>
    %430 = tpu.matmul %0, %429, %cst_150 {dimension_numbers = #tpu.dot_dimension_numbers<[1], [0], [0], [1], [0, 0, 1, 1], [], []>} : vector<64x16xbf16>, vector<16x128xbf16>, vector<64x128xf32> -> vector<64x128xf32>
    %431 = arith.addf %428, %430 : vector<64x128xf32>
    %432 = vector.extract_strided_slice %431 {offsets = [0, 0], sizes = [16, 128], strides = [1, 1]} : vector<64x128xf32> to vector<16x128xf32>
    %cst_151 = arith.constant 5.000000e-01 : f32
    %433 = vector.broadcast %cst_151 : f32 to vector<16x128xf32>
    %434 = arith.mulf %433, %432 : vector<16x128xf32>
    %435 = math.tanh %434 : vector<16x128xf32>
    %cst_152 = arith.constant 5.000000e-01 : f32
    %436 = vector.broadcast %cst_152 : f32 to vector<16x128xf32>
    %437 = arith.mulf %436, %435 : vector<16x128xf32>
    %cst_153 = arith.constant 5.000000e-01 : f32
    %438 = vector.broadcast %cst_153 : f32 to vector<16x128xf32>
    %439 = arith.addf %437, %438 : vector<16x128xf32>
    %440 = vector.extract_strided_slice %431 {offsets = [16, 0], sizes = [16, 128], strides = [1, 1]} : vector<64x128xf32> to vector<16x128xf32>
    %cst_154 = arith.constant 5.000000e-01 : f32
    %441 = vector.broadcast %cst_154 : f32 to vector<16x128xf32>
    %442 = arith.mulf %441, %440 : vector<16x128xf32>
    %443 = math.tanh %442 : vector<16x128xf32>
    %cst_155 = arith.constant 5.000000e-01 : f32
    %444 = vector.broadcast %cst_155 : f32 to vector<16x128xf32>
    %445 = arith.mulf %444, %443 : vector<16x128xf32>
    %cst_156 = arith.constant 5.000000e-01 : f32
    %446 = vector.broadcast %cst_156 : f32 to vector<16x128xf32>
    %447 = arith.addf %445, %446 : vector<16x128xf32>
    %448 = vector.extract_strided_slice %431 {offsets = [32, 0], sizes = [16, 128], strides = [1, 1]} : vector<64x128xf32> to vector<16x128xf32>
    %449 = math.tanh %448 : vector<16x128xf32>
    %450 = vector.extract_strided_slice %431 {offsets = [48, 0], sizes = [16, 128], strides = [1, 1]} : vector<64x128xf32> to vector<16x128xf32>
    %cst_157 = arith.constant 5.000000e-01 : f32
    %451 = vector.broadcast %cst_157 : f32 to vector<16x128xf32>
    %452 = arith.mulf %451, %450 : vector<16x128xf32>
    %453 = math.tanh %452 : vector<16x128xf32>
    %cst_158 = arith.constant 5.000000e-01 : f32
    %454 = vector.broadcast %cst_158 : f32 to vector<16x128xf32>
    %455 = arith.mulf %454, %453 : vector<16x128xf32>
    %cst_159 = arith.constant 5.000000e-01 : f32
    %456 = vector.broadcast %cst_159 : f32 to vector<16x128xf32>
    %457 = arith.addf %455, %456 : vector<16x128xf32>
    %458 = arith.mulf %447, %386 : vector<16x128xf32>
    %459 = arith.mulf %439, %449 : vector<16x128xf32>
    %460 = arith.addf %458, %459 : vector<16x128xf32>
    %461 = math.tanh %460 : vector<16x128xf32>
    %462 = arith.mulf %457, %461 : vector<16x128xf32>
    %463 = arith.truncf %462 : vector<16x128xf32> to vector<16x128xbf16>
    %cst_160 = arith.constant dense<0.000000e+00> : vector<64x128xf32>
    %464 = tpu.matmul %1, %463, %cst_160 {dimension_numbers = #tpu.dot_dimension_numbers<[1], [0], [0], [1], [0, 0, 1, 1], [], []>} : vector<64x16xbf16>, vector<16x128xbf16>, vector<64x128xf32> -> vector<64x128xf32>
    %465 = arith.addf %425, %464 : vector<64x128xf32>
    %466 = arith.addf %465, %8 : vector<64x128xf32>
    %467 = vector.extract_strided_slice %466 {offsets = [0, 0], sizes = [16, 128], strides = [1, 1]} : vector<64x128xf32> to vector<16x128xf32>
    %cst_161 = arith.constant 5.000000e-01 : f32
    %468 = vector.broadcast %cst_161 : f32 to vector<16x128xf32>
    %469 = arith.mulf %468, %467 : vector<16x128xf32>
    %470 = math.tanh %469 : vector<16x128xf32>
    %cst_162 = arith.constant 5.000000e-01 : f32
    %471 = vector.broadcast %cst_162 : f32 to vector<16x128xf32>
    %472 = arith.mulf %471, %470 : vector<16x128xf32>
    %cst_163 = arith.constant 5.000000e-01 : f32
    %473 = vector.broadcast %cst_163 : f32 to vector<16x128xf32>
    %474 = arith.addf %472, %473 : vector<16x128xf32>
    %475 = vector.extract_strided_slice %466 {offsets = [16, 0], sizes = [16, 128], strides = [1, 1]} : vector<64x128xf32> to vector<16x128xf32>
    %cst_164 = arith.constant 5.000000e-01 : f32
    %476 = vector.broadcast %cst_164 : f32 to vector<16x128xf32>
    %477 = arith.mulf %476, %475 : vector<16x128xf32>
    %478 = math.tanh %477 : vector<16x128xf32>
    %cst_165 = arith.constant 5.000000e-01 : f32
    %479 = vector.broadcast %cst_165 : f32 to vector<16x128xf32>
    %480 = arith.mulf %479, %478 : vector<16x128xf32>
    %cst_166 = arith.constant 5.000000e-01 : f32
    %481 = vector.broadcast %cst_166 : f32 to vector<16x128xf32>
    %482 = arith.addf %480, %481 : vector<16x128xf32>
    %483 = vector.extract_strided_slice %466 {offsets = [32, 0], sizes = [16, 128], strides = [1, 1]} : vector<64x128xf32> to vector<16x128xf32>
    %484 = math.tanh %483 : vector<16x128xf32>
    %485 = vector.extract_strided_slice %466 {offsets = [48, 0], sizes = [16, 128], strides = [1, 1]} : vector<64x128xf32> to vector<16x128xf32>
    %cst_167 = arith.constant 5.000000e-01 : f32
    %486 = vector.broadcast %cst_167 : f32 to vector<16x128xf32>
    %487 = arith.mulf %486, %485 : vector<16x128xf32>
    %488 = math.tanh %487 : vector<16x128xf32>
    %cst_168 = arith.constant 5.000000e-01 : f32
    %489 = vector.broadcast %cst_168 : f32 to vector<16x128xf32>
    %490 = arith.mulf %489, %488 : vector<16x128xf32>
    %cst_169 = arith.constant 5.000000e-01 : f32
    %491 = vector.broadcast %cst_169 : f32 to vector<16x128xf32>
    %492 = arith.addf %490, %491 : vector<16x128xf32>
    %493 = arith.mulf %482, %421 : vector<16x128xf32>
    %494 = arith.mulf %474, %484 : vector<16x128xf32>
    %495 = arith.addf %493, %494 : vector<16x128xf32>
    %496 = math.tanh %495 : vector<16x128xf32>
    %497 = arith.mulf %492, %496 : vector<16x128xf32>
    %c6_i32 = arith.constant 6 : i32
    %498 = arith.truncf %497 : vector<16x128xf32> to vector<16x128xbf16>
    %cst_170 = arith.constant dense<0.000000e+00> : vector<64x128xf32>
    %499 = tpu.matmul %2, %498, %cst_170 {dimension_numbers = #tpu.dot_dimension_numbers<[1], [0], [0], [1], [0, 0, 1, 1], [], []>} : vector<64x16xbf16>, vector<16x128xbf16>, vector<64x128xf32> -> vector<64x128xf32>
    %500 = arith.index_cast %c6_i32 : i32 to index
    %c0_171 = arith.constant 0 : index
    %c0_172 = arith.constant 0 : index
    %501 = vector.load %arg11[%500, %c0_171, %c0_172] : memref<8x64x128xf32, #tpu.memory_space<vmem>>, vector<1x64x128xf32>
    %502 = vector.shape_cast %501 : vector<1x64x128xf32> to vector<64x128xf32>
    %503 = arith.truncf %462 : vector<16x128xf32> to vector<16x128xbf16>
    %cst_173 = arith.constant dense<0.000000e+00> : vector<64x128xf32>
    %504 = tpu.matmul %0, %503, %cst_173 {dimension_numbers = #tpu.dot_dimension_numbers<[1], [0], [0], [1], [0, 0, 1, 1], [], []>} : vector<64x16xbf16>, vector<16x128xbf16>, vector<64x128xf32> -> vector<64x128xf32>
    %505 = arith.addf %502, %504 : vector<64x128xf32>
    %506 = vector.extract_strided_slice %505 {offsets = [0, 0], sizes = [16, 128], strides = [1, 1]} : vector<64x128xf32> to vector<16x128xf32>
    %cst_174 = arith.constant 5.000000e-01 : f32
    %507 = vector.broadcast %cst_174 : f32 to vector<16x128xf32>
    %508 = arith.mulf %507, %506 : vector<16x128xf32>
    %509 = math.tanh %508 : vector<16x128xf32>
    %cst_175 = arith.constant 5.000000e-01 : f32
    %510 = vector.broadcast %cst_175 : f32 to vector<16x128xf32>
    %511 = arith.mulf %510, %509 : vector<16x128xf32>
    %cst_176 = arith.constant 5.000000e-01 : f32
    %512 = vector.broadcast %cst_176 : f32 to vector<16x128xf32>
    %513 = arith.addf %511, %512 : vector<16x128xf32>
    %514 = vector.extract_strided_slice %505 {offsets = [16, 0], sizes = [16, 128], strides = [1, 1]} : vector<64x128xf32> to vector<16x128xf32>
    %cst_177 = arith.constant 5.000000e-01 : f32
    %515 = vector.broadcast %cst_177 : f32 to vector<16x128xf32>
    %516 = arith.mulf %515, %514 : vector<16x128xf32>
    %517 = math.tanh %516 : vector<16x128xf32>
    %cst_178 = arith.constant 5.000000e-01 : f32
    %518 = vector.broadcast %cst_178 : f32 to vector<16x128xf32>
    %519 = arith.mulf %518, %517 : vector<16x128xf32>
    %cst_179 = arith.constant 5.000000e-01 : f32
    %520 = vector.broadcast %cst_179 : f32 to vector<16x128xf32>
    %521 = arith.addf %519, %520 : vector<16x128xf32>
    %522 = vector.extract_strided_slice %505 {offsets = [32, 0], sizes = [16, 128], strides = [1, 1]} : vector<64x128xf32> to vector<16x128xf32>
    %523 = math.tanh %522 : vector<16x128xf32>
    %524 = vector.extract_strided_slice %505 {offsets = [48, 0], sizes = [16, 128], strides = [1, 1]} : vector<64x128xf32> to vector<16x128xf32>
    %cst_180 = arith.constant 5.000000e-01 : f32
    %525 = vector.broadcast %cst_180 : f32 to vector<16x128xf32>
    %526 = arith.mulf %525, %524 : vector<16x128xf32>
    %527 = math.tanh %526 : vector<16x128xf32>
    %cst_181 = arith.constant 5.000000e-01 : f32
    %528 = vector.broadcast %cst_181 : f32 to vector<16x128xf32>
    %529 = arith.mulf %528, %527 : vector<16x128xf32>
    %cst_182 = arith.constant 5.000000e-01 : f32
    %530 = vector.broadcast %cst_182 : f32 to vector<16x128xf32>
    %531 = arith.addf %529, %530 : vector<16x128xf32>
    %532 = arith.mulf %521, %460 : vector<16x128xf32>
    %533 = arith.mulf %513, %523 : vector<16x128xf32>
    %534 = arith.addf %532, %533 : vector<16x128xf32>
    %535 = math.tanh %534 : vector<16x128xf32>
    %536 = arith.mulf %531, %535 : vector<16x128xf32>
    %537 = arith.truncf %536 : vector<16x128xf32> to vector<16x128xbf16>
    %cst_183 = arith.constant dense<0.000000e+00> : vector<64x128xf32>
    %538 = tpu.matmul %1, %537, %cst_183 {dimension_numbers = #tpu.dot_dimension_numbers<[1], [0], [0], [1], [0, 0, 1, 1], [], []>} : vector<64x16xbf16>, vector<16x128xbf16>, vector<64x128xf32> -> vector<64x128xf32>
    %539 = arith.addf %499, %538 : vector<64x128xf32>
    %540 = arith.addf %539, %8 : vector<64x128xf32>
    %541 = vector.extract_strided_slice %540 {offsets = [0, 0], sizes = [16, 128], strides = [1, 1]} : vector<64x128xf32> to vector<16x128xf32>
    %cst_184 = arith.constant 5.000000e-01 : f32
    %542 = vector.broadcast %cst_184 : f32 to vector<16x128xf32>
    %543 = arith.mulf %542, %541 : vector<16x128xf32>
    %544 = math.tanh %543 : vector<16x128xf32>
    %cst_185 = arith.constant 5.000000e-01 : f32
    %545 = vector.broadcast %cst_185 : f32 to vector<16x128xf32>
    %546 = arith.mulf %545, %544 : vector<16x128xf32>
    %cst_186 = arith.constant 5.000000e-01 : f32
    %547 = vector.broadcast %cst_186 : f32 to vector<16x128xf32>
    %548 = arith.addf %546, %547 : vector<16x128xf32>
    %549 = vector.extract_strided_slice %540 {offsets = [16, 0], sizes = [16, 128], strides = [1, 1]} : vector<64x128xf32> to vector<16x128xf32>
    %cst_187 = arith.constant 5.000000e-01 : f32
    %550 = vector.broadcast %cst_187 : f32 to vector<16x128xf32>
    %551 = arith.mulf %550, %549 : vector<16x128xf32>
    %552 = math.tanh %551 : vector<16x128xf32>
    %cst_188 = arith.constant 5.000000e-01 : f32
    %553 = vector.broadcast %cst_188 : f32 to vector<16x128xf32>
    %554 = arith.mulf %553, %552 : vector<16x128xf32>
    %cst_189 = arith.constant 5.000000e-01 : f32
    %555 = vector.broadcast %cst_189 : f32 to vector<16x128xf32>
    %556 = arith.addf %554, %555 : vector<16x128xf32>
    %557 = vector.extract_strided_slice %540 {offsets = [32, 0], sizes = [16, 128], strides = [1, 1]} : vector<64x128xf32> to vector<16x128xf32>
    %558 = math.tanh %557 : vector<16x128xf32>
    %559 = vector.extract_strided_slice %540 {offsets = [48, 0], sizes = [16, 128], strides = [1, 1]} : vector<64x128xf32> to vector<16x128xf32>
    %cst_190 = arith.constant 5.000000e-01 : f32
    %560 = vector.broadcast %cst_190 : f32 to vector<16x128xf32>
    %561 = arith.mulf %560, %559 : vector<16x128xf32>
    %562 = math.tanh %561 : vector<16x128xf32>
    %cst_191 = arith.constant 5.000000e-01 : f32
    %563 = vector.broadcast %cst_191 : f32 to vector<16x128xf32>
    %564 = arith.mulf %563, %562 : vector<16x128xf32>
    %cst_192 = arith.constant 5.000000e-01 : f32
    %565 = vector.broadcast %cst_192 : f32 to vector<16x128xf32>
    %566 = arith.addf %564, %565 : vector<16x128xf32>
    %567 = arith.mulf %556, %495 : vector<16x128xf32>
    %568 = arith.mulf %548, %558 : vector<16x128xf32>
    %569 = arith.addf %567, %568 : vector<16x128xf32>
    %570 = math.tanh %569 : vector<16x128xf32>
    %571 = arith.mulf %566, %570 : vector<16x128xf32>
    %c7_i32 = arith.constant 7 : i32
    %572 = arith.truncf %571 : vector<16x128xf32> to vector<16x128xbf16>
    %cst_193 = arith.constant dense<0.000000e+00> : vector<64x128xf32>
    %573 = tpu.matmul %2, %572, %cst_193 {dimension_numbers = #tpu.dot_dimension_numbers<[1], [0], [0], [1], [0, 0, 1, 1], [], []>} : vector<64x16xbf16>, vector<16x128xbf16>, vector<64x128xf32> -> vector<64x128xf32>
    %574 = arith.index_cast %c7_i32 : i32 to index
    %c0_194 = arith.constant 0 : index
    %c0_195 = arith.constant 0 : index
    %575 = vector.load %arg11[%574, %c0_194, %c0_195] : memref<8x64x128xf32, #tpu.memory_space<vmem>>, vector<1x64x128xf32>
    %576 = vector.shape_cast %575 : vector<1x64x128xf32> to vector<64x128xf32>
    %577 = arith.truncf %536 : vector<16x128xf32> to vector<16x128xbf16>
    %cst_196 = arith.constant dense<0.000000e+00> : vector<64x128xf32>
    %578 = tpu.matmul %0, %577, %cst_196 {dimension_numbers = #tpu.dot_dimension_numbers<[1], [0], [0], [1], [0, 0, 1, 1], [], []>} : vector<64x16xbf16>, vector<16x128xbf16>, vector<64x128xf32> -> vector<64x128xf32>
    %579 = arith.addf %576, %578 : vector<64x128xf32>
    %580 = vector.extract_strided_slice %579 {offsets = [0, 0], sizes = [16, 128], strides = [1, 1]} : vector<64x128xf32> to vector<16x128xf32>
    %cst_197 = arith.constant 5.000000e-01 : f32
    %581 = vector.broadcast %cst_197 : f32 to vector<16x128xf32>
    %582 = arith.mulf %581, %580 : vector<16x128xf32>
    %583 = math.tanh %582 : vector<16x128xf32>
    %cst_198 = arith.constant 5.000000e-01 : f32
    %584 = vector.broadcast %cst_198 : f32 to vector<16x128xf32>
    %585 = arith.mulf %584, %583 : vector<16x128xf32>
    %cst_199 = arith.constant 5.000000e-01 : f32
    %586 = vector.broadcast %cst_199 : f32 to vector<16x128xf32>
    %587 = arith.addf %585, %586 : vector<16x128xf32>
    %588 = vector.extract_strided_slice %579 {offsets = [16, 0], sizes = [16, 128], strides = [1, 1]} : vector<64x128xf32> to vector<16x128xf32>
    %cst_200 = arith.constant 5.000000e-01 : f32
    %589 = vector.broadcast %cst_200 : f32 to vector<16x128xf32>
    %590 = arith.mulf %589, %588 : vector<16x128xf32>
    %591 = math.tanh %590 : vector<16x128xf32>
    %cst_201 = arith.constant 5.000000e-01 : f32
    %592 = vector.broadcast %cst_201 : f32 to vector<16x128xf32>
    %593 = arith.mulf %592, %591 : vector<16x128xf32>
    %cst_202 = arith.constant 5.000000e-01 : f32
    %594 = vector.broadcast %cst_202 : f32 to vector<16x128xf32>
    %595 = arith.addf %593, %594 : vector<16x128xf32>
    %596 = vector.extract_strided_slice %579 {offsets = [32, 0], sizes = [16, 128], strides = [1, 1]} : vector<64x128xf32> to vector<16x128xf32>
    %597 = math.tanh %596 : vector<16x128xf32>
    %598 = vector.extract_strided_slice %579 {offsets = [48, 0], sizes = [16, 128], strides = [1, 1]} : vector<64x128xf32> to vector<16x128xf32>
    %cst_203 = arith.constant 5.000000e-01 : f32
    %599 = vector.broadcast %cst_203 : f32 to vector<16x128xf32>
    %600 = arith.mulf %599, %598 : vector<16x128xf32>
    %601 = math.tanh %600 : vector<16x128xf32>
    %cst_204 = arith.constant 5.000000e-01 : f32
    %602 = vector.broadcast %cst_204 : f32 to vector<16x128xf32>
    %603 = arith.mulf %602, %601 : vector<16x128xf32>
    %cst_205 = arith.constant 5.000000e-01 : f32
    %604 = vector.broadcast %cst_205 : f32 to vector<16x128xf32>
    %605 = arith.addf %603, %604 : vector<16x128xf32>
    %606 = arith.mulf %595, %534 : vector<16x128xf32>
    %607 = arith.mulf %587, %597 : vector<16x128xf32>
    %608 = arith.addf %606, %607 : vector<16x128xf32>
    %609 = math.tanh %608 : vector<16x128xf32>
    %610 = arith.mulf %605, %609 : vector<16x128xf32>
    %611 = arith.truncf %610 : vector<16x128xf32> to vector<16x128xbf16>
    %cst_206 = arith.constant dense<0.000000e+00> : vector<64x128xf32>
    %612 = tpu.matmul %1, %611, %cst_206 {dimension_numbers = #tpu.dot_dimension_numbers<[1], [0], [0], [1], [0, 0, 1, 1], [], []>} : vector<64x16xbf16>, vector<16x128xbf16>, vector<64x128xf32> -> vector<64x128xf32>
    %613 = arith.addf %573, %612 : vector<64x128xf32>
    %614 = arith.addf %613, %8 : vector<64x128xf32>
    %615 = vector.extract_strided_slice %614 {offsets = [0, 0], sizes = [16, 128], strides = [1, 1]} : vector<64x128xf32> to vector<16x128xf32>
    %cst_207 = arith.constant 5.000000e-01 : f32
    %616 = vector.broadcast %cst_207 : f32 to vector<16x128xf32>
    %617 = arith.mulf %616, %615 : vector<16x128xf32>
    %618 = math.tanh %617 : vector<16x128xf32>
    %cst_208 = arith.constant 5.000000e-01 : f32
    %619 = vector.broadcast %cst_208 : f32 to vector<16x128xf32>
    %620 = arith.mulf %619, %618 : vector<16x128xf32>
    %cst_209 = arith.constant 5.000000e-01 : f32
    %621 = vector.broadcast %cst_209 : f32 to vector<16x128xf32>
    %622 = arith.addf %620, %621 : vector<16x128xf32>
    %623 = vector.extract_strided_slice %614 {offsets = [16, 0], sizes = [16, 128], strides = [1, 1]} : vector<64x128xf32> to vector<16x128xf32>
    %cst_210 = arith.constant 5.000000e-01 : f32
    %624 = vector.broadcast %cst_210 : f32 to vector<16x128xf32>
    %625 = arith.mulf %624, %623 : vector<16x128xf32>
    %626 = math.tanh %625 : vector<16x128xf32>
    %cst_211 = arith.constant 5.000000e-01 : f32
    %627 = vector.broadcast %cst_211 : f32 to vector<16x128xf32>
    %628 = arith.mulf %627, %626 : vector<16x128xf32>
    %cst_212 = arith.constant 5.000000e-01 : f32
    %629 = vector.broadcast %cst_212 : f32 to vector<16x128xf32>
    %630 = arith.addf %628, %629 : vector<16x128xf32>
    %631 = vector.extract_strided_slice %614 {offsets = [32, 0], sizes = [16, 128], strides = [1, 1]} : vector<64x128xf32> to vector<16x128xf32>
    %632 = math.tanh %631 : vector<16x128xf32>
    %633 = vector.extract_strided_slice %614 {offsets = [48, 0], sizes = [16, 128], strides = [1, 1]} : vector<64x128xf32> to vector<16x128xf32>
    %cst_213 = arith.constant 5.000000e-01 : f32
    %634 = vector.broadcast %cst_213 : f32 to vector<16x128xf32>
    %635 = arith.mulf %634, %633 : vector<16x128xf32>
    %636 = math.tanh %635 : vector<16x128xf32>
    %cst_214 = arith.constant 5.000000e-01 : f32
    %637 = vector.broadcast %cst_214 : f32 to vector<16x128xf32>
    %638 = arith.mulf %637, %636 : vector<16x128xf32>
    %cst_215 = arith.constant 5.000000e-01 : f32
    %639 = vector.broadcast %cst_215 : f32 to vector<16x128xf32>
    %640 = arith.addf %638, %639 : vector<16x128xf32>
    %641 = arith.mulf %630, %569 : vector<16x128xf32>
    %642 = arith.mulf %622, %632 : vector<16x128xf32>
    %643 = arith.addf %641, %642 : vector<16x128xf32>
    %644 = math.tanh %643 : vector<16x128xf32>
    %645 = arith.mulf %640, %644 : vector<16x128xf32>
    %c8_i32 = arith.constant 8 : i32
    %c0_216 = arith.constant 0 : index
    %c0_217 = arith.constant 0 : index
    %646 = vector.load %arg8[%c0_216, %c0_217] : memref<10x16xbf16, #tpu.memory_space<vmem>>, vector<10x16xbf16>
    %647 = arith.truncf %645 : vector<16x128xf32> to vector<16x128xbf16>
    %cst_218 = arith.constant dense<0.000000e+00> : vector<10x128xf32>
    %648 = tpu.matmul %646, %647, %cst_218 {dimension_numbers = #tpu.dot_dimension_numbers<[1], [0], [0], [1], [0, 0, 1, 1], [], []>} : vector<10x16xbf16>, vector<16x128xbf16>, vector<10x128xf32> -> vector<10x128xf32>
    %c0_219 = arith.constant 0 : index
    %c0_220 = arith.constant 0 : index
    %649 = vector.load %arg9[%c0_219, %c0_220] : memref<10x1xf32, #tpu.memory_space<vmem>>, vector<10x1xf32>
    %650 = vector.broadcast %649 : vector<10x1xf32> to vector<10x128xf32>
    %651 = arith.addf %648, %650 : vector<10x128xf32>
    %c0_221 = arith.constant 0 : index
    %c0_222 = arith.constant 0 : index
    %652 = vector.load %arg10[%c0_221, %c0_222] : memref<10x128xf32, #tpu.memory_space<vmem>>, vector<10x128xf32>
    tpu.vector_store %arg10[%c0_221, %c0_222], %651 {strides = array<i32>} : memref<10x128xf32, #tpu.memory_space<vmem>>, vector<10x128xf32>,
    return
  }
  func.func @transform_0(%arg0: i32) -> (i32, i32, i32) {
    %c0_i32 = arith.constant 0 : i32
    %c0_i32_0 = arith.constant 0 : i32
    %c0_i32_1 = arith.constant 0 : i32
    return %arg0, %c0_i32, %c0_i32_0 : i32, i32, i32
  }
  func.func @transform_1(%arg0: i32) -> (i32, i32) {
    %c0_i32 = arith.constant 0 : i32
    %c0_i32_0 = arith.constant 0 : i32
    %c0_i32_1 = arith.constant 0 : i32
    return %c0_i32, %c0_i32_0 : i32, i32
  }
  func.func @transform_2(%arg0: i32) -> (i32, i32) {
    %c0_i32 = arith.constant 0 : i32
    %c0_i32_0 = arith.constant 0 : i32
    %c0_i32_1 = arith.constant 0 : i32
    return %c0_i32, %c0_i32_0 : i32, i32
  }
  func.func @transform_3(%arg0: i32) -> (i32, i32) {
    %c0_i32 = arith.constant 0 : i32
    %c0_i32_0 = arith.constant 0 : i32
    %c0_i32_1 = arith.constant 0 : i32
    return %c0_i32, %c0_i32_0 : i32, i32
  }
  func.func @transform_4(%arg0: i32) -> (i32, i32) {
    %c0_i32 = arith.constant 0 : i32
    %c0_i32_0 = arith.constant 0 : i32
    %c0_i32_1 = arith.constant 0 : i32
    return %c0_i32, %c0_i32_0 : i32, i32
  }
  func.func @transform_5(%arg0: i32) -> (i32, i32) {
    %c0_i32 = arith.constant 0 : i32
    %c0_i32_0 = arith.constant 0 : i32
    %c0_i32_1 = arith.constant 0 : i32
    return %c0_i32, %c0_i32_0 : i32, i32
  }
  func.func @transform_6(%arg0: i32) -> (i32, i32) {
    %c0_i32 = arith.constant 0 : i32
    %c0_i32_0 = arith.constant 0 : i32
    %c0_i32_1 = arith.constant 0 : i32
    return %c0_i32, %c0_i32_0 : i32, i32
  }
  func.func @transform_7(%arg0: i32) -> (i32, i32) {
    %c0_i32 = arith.constant 0 : i32
    %c0_i32_0 = arith.constant 0 : i32
    %c0_i32_1 = arith.constant 0 : i32
    return %c0_i32, %c0_i32_0 : i32, i32
  }
  func.func @transform_8(%arg0: i32) -> (i32, i32) {
    %c0_i32 = arith.constant 0 : i32
    %c0_i32_0 = arith.constant 0 : i32
    %c0_i32_1 = arith.constant 0 : i32
    return %c0_i32, %c0_i32_0 : i32, i32
  }
  func.func @transform_9(%arg0: i32) -> (i32, i32) {
    %c0_i32 = arith.constant 0 : i32
    %c0_i32_0 = arith.constant 0 : i32
    return %c0_i32, %arg0 : i32, i32
  }
}

</mosaic_0001>

<llo_original>
// kernel: mnist_rnn_forward.1
$region0: #{mnist_rnn_forward.1}
  #allocation0 [shape = 'u32[]', space=smem, size = 0x4, offset = 0x4, fixed_abs, tag = 'smem constant byte address 0x4 - core index']
  #allocation1 [shape = 'u32[144,128]{1,0:T(1,128)}', space=vmem, size = 0x12000, scoped, tag = 'internal scratch']
  #allocation2 [shape = 'f32[8,64,128]{2,1,0:T(8,128)}', space=vmem, size = 0x40000, scoped, tag = 'scratch operand']
  %s0 = inlined_call_operand.vmem [shape: bf16[1,28,1024], index: 0, kind: input, shape index: {}]
  %s1 = inlined_call_operand.vmem [shape: bf16[64,28], index: 1, kind: input, shape index: {}]
  %s2 = inlined_call_operand.vmem [shape: bf16[64,16], index: 2, kind: input, shape index: {}]
  %s3 = inlined_call_operand.vmem [shape: f32[64,1], index: 3, kind: input, shape index: {}]
  %s4 = inlined_call_operand.vmem [shape: bf16[64,16], index: 4, kind: input, shape index: {}]
  %s5 = inlined_call_operand.vmem [shape: bf16[64,16], index: 5, kind: input, shape index: {}]
  %s6 = inlined_call_operand.vmem [shape: f32[64,1], index: 6, kind: input, shape index: {}]
  %s7 = inlined_call_operand.vmem [shape: bf16[10,16], index: 7, kind: input, shape index: {}]
  %s8 = inlined_call_operand.vmem [shape: f32[10,1], index: 8, kind: input, shape index: {}]
  %s9 = inlined_call_operand.vmem [shape: f32[10,128], index: 9, kind: output, shape index: {}]
  %s10 = sld [smem:[#allocation0]]
  $region46: #{mnist_rnn_forward.1} parent=0
    _
  %s12 = ssub.s32 1, %s10
  %s13 = scalar_select 0, %s12, %s10
  // Predicated region
  $region2: #{mnist_rnn_forward.1} parent=0 // pred_check
    _
  $region3: #{mnist_rnn_forward.1} parent=0 // pred_check_branch
    %15 = sbr.rel (0) target = $region5
  $region4: #{mnist_rnn_forward.1} parent=0 // pred_region
    _
  $region5: #{mnist_rnn_forward.1} parent=0 // pred_fallthru
    _
  // Predicated region
  $region6: #{mnist_rnn_forward.1} parent=0 // pred_check
    _
  $region7: #{mnist_rnn_forward.1} parent=0 // pred_check_branch
    %17 = sbr.rel (0) target = $region9
  $region8: #{mnist_rnn_forward.1} parent=0 // pred_region
    _
  $region9: #{mnist_rnn_forward.1} parent=0 // pred_fallthru
    _
  // Predicated region
  $region10: #{mnist_rnn_forward.1} parent=0 // pred_check
    _
  $region11: #{mnist_rnn_forward.1} parent=0 // pred_check_branch
    %19 = sbr.rel (0) target = $region13
  $region12: #{mnist_rnn_forward.1} parent=0 // pred_region
    _
  $region13: #{mnist_rnn_forward.1} parent=0 // pred_fallthru
    _
  // Predicated region
  $region14: #{mnist_rnn_forward.1} parent=0 // pred_check
    _
  $region15: #{mnist_rnn_forward.1} parent=0 // pred_check_branch
    %21 = sbr.rel (0) target = $region17
  $region16: #{mnist_rnn_forward.1} parent=0 // pred_region
    _
  $region17: #{mnist_rnn_forward.1} parent=0 // pred_fallthru
    _
  // Predicated region
  $region18: #{mnist_rnn_forward.1} parent=0 // pred_check
    _
  $region19: #{mnist_rnn_forward.1} parent=0 // pred_check_branch
    %23 = sbr.rel (0) target = $region21
  $region20: #{mnist_rnn_forward.1} parent=0 // pred_region
    _
  $region21: #{mnist_rnn_forward.1} parent=0 // pred_fallthru
    _
  // Predicated region
  $region22: #{mnist_rnn_forward.1} parent=0 // pred_check
    _
  $region23: #{mnist_rnn_forward.1} parent=0 // pred_check_branch
    %25 = sbr.rel (0) target = $region25
  $region24: #{mnist_rnn_forward.1} parent=0 // pred_region
    _
  $region25: #{mnist_rnn_forward.1} parent=0 // pred_fallthru
    _
  // Predicated region
  $region26: #{mnist_rnn_forward.1} parent=0 // pred_check
    _
  $region27: #{mnist_rnn_forward.1} parent=0 // pred_check_branch
    %27 = sbr.rel (0) target = $region29
  $region28: #{mnist_rnn_forward.1} parent=0 // pred_region
    _
  $region29: #{mnist_rnn_forward.1} parent=0 // pred_fallthru
    _
  // Predicated region
  $region30: #{mnist_rnn_forward.1} parent=0 // pred_check
    _
  $region31: #{mnist_rnn_forward.1} parent=0 // pred_check_branch
    %29 = sbr.rel (0) target = $region33
  $region32: #{mnist_rnn_forward.1} parent=0 // pred_region
    _
  $region33: #{mnist_rnn_forward.1} parent=0 // pred_fallthru
    _
  // Predicated region
  $region34: #{mnist_rnn_forward.1} parent=0 // pred_check
    _
  $region35: #{mnist_rnn_forward.1} parent=0 // pred_check_branch
    %31 = sbr.rel (0) target = $region37
  $region36: #{mnist_rnn_forward.1} parent=0 // pred_region
    _
  $region37: #{mnist_rnn_forward.1} parent=0 // pred_fallthru
    _
  %v33 = vld [vmem:[%s2] sm:$0xf]
  %v34 = vld [vmem:[%s2 + $0x4] sm:$0xf]
  %v35 = vld [vmem:[%s2 + $0x8] sm:$0xf]
  %v36 = vld [vmem:[%s2 + $0xc] sm:$0xf]
  %v37 = vld [vmem:[%s2 + $0x10] sm:$0xf]
  %v38 = vld [vmem:[%s2 + $0x14] sm:$0xf]
  %v39 = vld [vmem:[%s2 + $0x18] sm:$0xf]
  %v40 = vld [vmem:[%s2 + $0x1c] sm:$0xf]
  %v41 = vld [vmem:[%s4] sm:$0xf]
  %v42 = vld [vmem:[%s4 + $0x4] sm:$0xf]
  %v43 = vld [vmem:[%s4 + $0x8] sm:$0xf]
  %v44 = vld [vmem:[%s4 + $0xc] sm:$0xf]
  %v45 = vld [vmem:[%s4 + $0x10] sm:$0xf]
  %v46 = vld [vmem:[%s4 + $0x14] sm:$0xf]
  %v47 = vld [vmem:[%s4 + $0x18] sm:$0xf]
  %v48 = vld [vmem:[%s4 + $0x1c] sm:$0xf]
  %v49 = vld [vmem:[%s5] sm:$0xf]
  %v50 = vld [vmem:[%s5 + $0x4] sm:$0xf]
  %v51 = vld [vmem:[%s5 + $0x8] sm:$0xf]
  %v52 = vld [vmem:[%s5 + $0xc] sm:$0xf]
  %v53 = vld [vmem:[%s5 + $0x10] sm:$0xf]
  %v54 = vld [vmem:[%s5 + $0x14] sm:$0xf]
  %v55 = vld [vmem:[%s5 + $0x18] sm:$0xf]
  %v56 = vld [vmem:[%s5 + $0x1c] sm:$0xf]
  %v57 = vld [vmem:[%s3] sm:$0xff]
  %v58 = vld [vmem:[%s3 + $0x8] sm:$0xff]
  %v59 = vld [vmem:[%s3 + $0x10] sm:$0xff]
  %v60 = vld [vmem:[%s3 + $0x18] sm:$0xff]
  %v61 = vld [vmem:[%s3 + $0x20] sm:$0xff]
  %v62 = vld [vmem:[%s3 + $0x28] sm:$0xff]
  %v63 = vld [vmem:[%s3 + $0x30] sm:$0xff]
  %v64 = vld [vmem:[%s3 + $0x38] sm:$0xff]
  %66 = vset.pattern.permute.xlu0 0
  %67 = vperm.xlu0 %66, %v57
  %v68 = vpop.permute.xlu0 %67
  %71 = vset.pattern.permute.xlu0 0
  %72 = vperm.xlu0 %71, %v58
  %v73 = vpop.permute.xlu0 %72
  %76 = vset.pattern.permute.xlu0 0
  %77 = vperm.xlu0 %76, %v59
  %v78 = vpop.permute.xlu0 %77
  %81 = vset.pattern.permute.xlu0 0
  %82 = vperm.xlu0 %81, %v60
  %v83 = vpop.permute.xlu0 %82
  %86 = vset.pattern.permute.xlu0 0
  %87 = vperm.xlu0 %86, %v61
  %v88 = vpop.permute.xlu0 %87
  %91 = vset.pattern.permute.xlu0 0
  %92 = vperm.xlu0 %91, %v62
  %v93 = vpop.permute.xlu0 %92
  %96 = vset.pattern.permute.xlu0 0
  %97 = vperm.xlu0 %96, %v63
  %v98 = vpop.permute.xlu0 %97
  %101 = vset.pattern.permute.xlu0 0
  %102 = vperm.xlu0 %101, %v64
  %v103 = vpop.permute.xlu0 %102
  %v105 = vld [vmem:[%s6] sm:$0xff]
  %v106 = vld [vmem:[%s6 + $0x8] sm:$0xff]
  %v107 = vld [vmem:[%s6 + $0x10] sm:$0xff]
  %v108 = vld [vmem:[%s6 + $0x18] sm:$0xff]
  %v109 = vld [vmem:[%s6 + $0x20] sm:$0xff]
  %v110 = vld [vmem:[%s6 + $0x28] sm:$0xff]
  %v111 = vld [vmem:[%s6 + $0x30] sm:$0xff]
  %v112 = vld [vmem:[%s6 + $0x38] sm:$0xff]
  %114 = vset.pattern.permute.xlu0 0
  %115 = vperm.xlu0 %114, %v105
  %v116 = vpop.permute.xlu0 %115
  %119 = vset.pattern.permute.xlu0 0
  %120 = vperm.xlu0 %119, %v106
  %v121 = vpop.permute.xlu0 %120
  %124 = vset.pattern.permute.xlu0 0
  %125 = vperm.xlu0 %124, %v107
  %v126 = vpop.permute.xlu0 %125
  %129 = vset.pattern.permute.xlu0 0
  %130 = vperm.xlu0 %129, %v108
  %v131 = vpop.permute.xlu0 %130
  %134 = vset.pattern.permute.xlu0 0
  %135 = vperm.xlu0 %134, %v109
  %v136 = vpop.permute.xlu0 %135
  %139 = vset.pattern.permute.xlu0 0
  %140 = vperm.xlu0 %139, %v110
  %v141 = vpop.permute.xlu0 %140
  %144 = vset.pattern.permute.xlu0 0
  %145 = vperm.xlu0 %144, %v111
  %v146 = vpop.permute.xlu0 %145
  %149 = vset.pattern.permute.xlu0 0
  %150 = vperm.xlu0 %149, %v112
  %v151 = vpop.permute.xlu0 %150
  %v153 = vld [vmem:[%s1] sm:$0xf]
  %v154 = vld [vmem:[%s1 + $0x4] sm:$0xf]
  %v155 = vld [vmem:[%s1 + $0x8] sm:$0xf]
  %v156 = vld [vmem:[%s1 + $0xc] sm:$0xf]
  %v157 = vld [vmem:[%s1 + $0x10] sm:$0xf]
  %v158 = vld [vmem:[%s1 + $0x14] sm:$0xf]
  %v159 = vld [vmem:[%s1 + $0x18] sm:$0xf]
  %v160 = vld [vmem:[%s1 + $0x1c] sm:$0xf]
  %v161 = vld [vmem:[%s0] sm:$0xff]
  %v162 = vld [vmem:[%s0 + $0x8] sm:$0xff]
  %v163 = vld [vmem:[%s0 + $0x10] sm:$0xff]
  %v164 = vld [vmem:[%s0 + $0x18] sm:$0xff]
  %v165 = vld [vmem:[%s0 + $0x20] sm:$0xff]
  %v166 = vld [vmem:[%s0 + $0x28] sm:$0xff]
  %v167 = vld [vmem:[%s0 + $0x30] sm:$0xff]
  %v168 = vld [vmem:[%s0 + $0x38] sm:$0xff]
  %v169 = vld [vmem:[%s0 + $0x40] sm:$0xff]
  %v170 = vld [vmem:[%s0 + $0x48] sm:$0xff]
  %v171 = vld [vmem:[%s0 + $0x50] sm:$0xff]
  %v172 = vld [vmem:[%s0 + $0x58] sm:$0xff]
  %v173 = vld [vmem:[%s0 + $0x60] sm:$0x33]
  %v174 = vld [vmem:[%s0 + $0x68] sm:$0x33]
  %v175 = vld [vmem:[%s0 + $0x70] sm:$0x33]
  %v176 = vld [vmem:[%s0 + $0x78] sm:$0x33]
  %v185 = vunpack.c.l.b16 %v153
  %v186 = vunpack.c.l.b16 %v154
  %v187 = vunpack.c.l.b16 %v155
  %v188 = vunpack.c.l.b16 %v156
  %v189 = vunpack.c.l.b16 %v157
  %v190 = vunpack.c.l.b16 %v158
  %v191 = vunpack.c.l.b16 %v159
  %v192 = vunpack.c.l.b16 %v160
  %v193 = vpack.c.b16 %v186, %v185
  %v194 = vpack.c.b16 %v188, %v187
  %v195 = vpack.c.b16 %v190, %v189
  %v196 = vpack.c.b16 %v192, %v191
  %v213 = vunpack.c.l.b16 %v161
  %v214 = vunpack.c.h.b16 %v161
  %v215 = vunpack.c.l.b16 %v162
  %v216 = vunpack.c.h.b16 %v162
  %v217 = vunpack.c.l.b16 %v163
  %v218 = vunpack.c.h.b16 %v163
  %v219 = vunpack.c.l.b16 %v164
  %v220 = vunpack.c.h.b16 %v164
  %v221 = vunpack.c.l.b16 %v165
  %v222 = vunpack.c.h.b16 %v165
  %v223 = vunpack.c.l.b16 %v166
  %v224 = vunpack.c.h.b16 %v166
  %v225 = vunpack.c.l.b16 %v167
  %v226 = vunpack.c.h.b16 %v167
  %v227 = vunpack.c.l.b16 %v168
  %v228 = vunpack.c.h.b16 %v168
  %v229 = vunpack.c.l.b16 %v169
  %v230 = vunpack.c.h.b16 %v169
  %v231 = vunpack.c.l.b16 %v170
  %v232 = vunpack.c.h.b16 %v170
  %v233 = vunpack.c.l.b16 %v171
  %v234 = vunpack.c.h.b16 %v171
  %v235 = vunpack.c.l.b16 %v172
  %v236 = vunpack.c.h.b16 %v172
  %v237 = vunpack.c.l.b16 %v173
  %v238 = vunpack.c.h.b16 %v173
  %v239 = vunpack.c.l.b16 %v174
  %v240 = vunpack.c.h.b16 %v174
  %v241 = vunpack.c.l.b16 %v175
  %v242 = vunpack.c.h.b16 %v175
  %v243 = vunpack.c.l.b16 %v176
  %v244 = vunpack.c.h.b16 %v176
  %v245 = vpack.c.b16 %v221, %v213
  %v246 = vpack.c.b16 %v222, %v214
  %v247 = vpack.c.b16 %v223, %v215
  %v248 = vpack.c.b16 %v224, %v216
  %v249 = vpack.c.b16 %v225, %v217
  %v250 = vpack.c.b16 %v226, %v218
  %v251 = vpack.c.b16 %v227, %v219
  %v252 = vpack.c.b16 %v228, %v220
  %v253 = vpack.c.b16 %v237, %v229
  %v254 = vpack.c.b16 %v238, %v230
  %v255 = vpack.c.b16 %v239, %v231
  %v256 = vpack.c.b16 %v240, %v232
  %v257 = vpack.c.b16 %v241, %v233
  %v258 = vpack.c.b16 %v242, %v234
  %v259 = vpack.c.b16 %v243, %v235
  %v260 = vpack.c.b16 %v244, %v236
  %vm269 = vcmask 228352
  %v271 = vsel %vm269, %v193, 0
  %v274 = vsel %vm269, %v194, 0
  %v277 = vsel %vm269, %v195, 0
  %v280 = vsel %vm269, %v196, 0
  %vm282 = vcmask 1045504
  %v284 = vsel %vm282, %v253, 0
  %v287 = vsel %vm282, %v254, 0
  %v290 = vsel %vm282, %v255, 0
  %v293 = vsel %vm282, %v256, 0
  %v296 = vsel %vm282, %v257, 0
  %v299 = vsel %vm282, %v258, 0
  %v302 = vsel %vm282, %v259, 0
  %v305 = vsel %vm282, %v260, 0
  %307 = vmatprep.subr.bf16.mxu0 %v246
  %308 = vmatpush1.bf16.msra.mxu0 %v245
  %309 = vmatprep.subr.bf16.mxu0 %v287
  %310 = vmatpush1.bf16.msra.mxu0 %v284
  %311 = vmatprep.subr.bf16.mxu0 0
  %312 = vmatpush1.bf16.msra.mxu0 0
  %313 = vmatprep.subr.bf16.mxu0 0
  %314 = vmatpush1.bf16.msra.mxu0 0
  %315 = vmatprep.subr.bf16.mxu0 0
  %316 = vmatpush1.bf16.msra.mxu0 0
  %317 = vmatprep.subr.bf16.mxu0 0
  %318 = vmatpush1.bf16.msra.mxu0 0
  %319 = vmatprep.subr.bf16.mxu0 0
  %320 = vmatpush1.bf16.msra.mxu0 0
  %321 = vmatprep.subr.bf16.mxu0 0
  %322 = vmatpush1.bf16.msra.mxu0 0
  %323 = vmatprep.subr.bf16.mxu0 0
  %324 = vmatpush1.bf16.msra.mxu0 0
  %325 = vmatprep.subr.bf16.mxu0 0
  %326 = vmatpush1.bf16.msra.mxu0 0
  %327 = vmatprep.subr.bf16.mxu0 0
  %328 = vmatpush1.bf16.msra.mxu0 0
  %329 = vmatprep.subr.bf16.mxu0 0
  %330 = vmatpush1.bf16.msra.mxu0 0
  %331 = vmatprep.subr.bf16.mxu0 0
  %332 = vmatpush1.bf16.msra.mxu0 0
  %333 = vmatprep.subr.bf16.mxu0 0
  %334 = vmatpush1.bf16.msra.mxu0 0
  %335 = vmatprep.subr.bf16.mxu0 0
  %336 = vmatpush1.bf16.msra.mxu0 0
  %337 = vmatprep.subr.bf16.mxu0 0
  %338 = vmatpush1.bf16.msra.mxu0 0
  %339 = vmatprep.mubr.bf16.mxu0 0
  %340 = vmatmul.mubr.bf16.gmra.mrb[0].mxu0 %v271
  %v341 = vpop.f32.mrb[0].mxu0
  %v342 = vadd.f32 0.0, %v341
  %v343 = vpop.f32.mrb[0].mxu0
  %v344 = vadd.f32 0.0, %v343
  %v345 = vpop.f32.mrb[0].mxu0
  %v346 = vadd.f32 0.0, %v345
  %v347 = vpop.f32.mrb[0].mxu0
  %v348 = vadd.f32 0.0, %v347
  %349 = vmatprep.mubr.bf16.mxu0 0
  %350 = vmatmul.mubr.bf16.gmra.mrb[0].mxu0 %v274
  %v351 = vpop.f32.mrb[0].mxu0
  %v352 = vadd.f32 0.0, %v351
  %v353 = vpop.f32.mrb[0].mxu0
  %v354 = vadd.f32 0.0, %v353
  %v355 = vpop.f32.mrb[0].mxu0
  %v356 = vadd.f32 0.0, %v355
  %v357 = vpop.f32.mrb[0].mxu0
  %v358 = vadd.f32 0.0, %v357
  %359 = vmatprep.mubr.bf16.mxu0 0
  %360 = vmatmul.mubr.bf16.gmra.mrb[0].mxu0 %v277
  %v361 = vpop.f32.mrb[0].mxu0
  %v362 = vadd.f32 0.0, %v361
  %v363 = vpop.f32.mrb[0].mxu0
  %v364 = vadd.f32 0.0, %v363
  %v365 = vpop.f32.mrb[0].mxu0
  %v366 = vadd.f32 0.0, %v365
  %v367 = vpop.f32.mrb[0].mxu0
  %v368 = vadd.f32 0.0, %v367
  %369 = vmatprep.mubr.bf16.mxu0 0
  %370 = vmatmul.mubr.bf16.gmra.mrb[0].mxu0 %v280
  %v371 = vpop.f32.mrb[0].mxu0
  %v372 = vadd.f32 0.0, %v371
  %v373 = vpop.f32.mrb[0].mxu0
  %v374 = vadd.f32 0.0, %v373
  %v375 = vpop.f32.mrb[0].mxu0
  %v376 = vadd.f32 0.0, %v375
  %v377 = vpop.f32.mrb[0].mxu0
  %v378 = vadd.f32 0.0, %v377
  %379 = vdwg.mxu0
  %380 = vmatprep.subr.bf16.mxu0 %v248
  %381 = vmatpush1.bf16.msra.mxu0 %v247
  %382 = vmatprep.subr.bf16.mxu0 %v293
  %383 = vmatpush1.bf16.msra.mxu0 %v290
  %384 = vmatprep.subr.bf16.mxu0 0
  %385 = vmatpush1.bf16.msra.mxu0 0
  %386 = vmatprep.subr.bf16.mxu0 0
  %387 = vmatpush1.bf16.msra.mxu0 0
  %388 = vmatprep.subr.bf16.mxu0 0
  %389 = vmatpush1.bf16.msra.mxu0 0
  %390 = vmatprep.subr.bf16.mxu0 0
  %391 = vmatpush1.bf16.msra.mxu0 0
  %392 = vmatprep.subr.bf16.mxu0 0
  %393 = vmatpush1.bf16.msra.mxu0 0
  %394 = vmatprep.subr.bf16.mxu0 0
  %395 = vmatpush1.bf16.msra.mxu0 0
  %396 = vmatprep.subr.bf16.mxu0 0
  %397 = vmatpush1.bf16.msra.mxu0 0
  %398 = vmatprep.subr.bf16.mxu0 0
  %399 = vmatpush1.bf16.msra.mxu0 0
  %400 = vmatprep.subr.bf16.mxu0 0
  %401 = vmatpush1.bf16.msra.mxu0 0
  %402 = vmatprep.subr.bf16.mxu0 0
  %403 = vmatpush1.bf16.msra.mxu0 0
  %404 = vmatprep.subr.bf16.mxu0 0
  %405 = vmatpush1.bf16.msra.mxu0 0
  %406 = vmatprep.subr.bf16.mxu0 0
  %407 = vmatpush1.bf16.msra.mxu0 0
  %408 = vmatprep.subr.bf16.mxu0 0
  %409 = vmatpush1.bf16.msra.mxu0 0
  %410 = vmatprep.subr.bf16.mxu0 0
  %411 = vmatpush1.bf16.msra.mxu0 0
  %412 = vmatprep.mubr.bf16.mxu0 0
  %413 = vmatmul.mubr.bf16.gmra.mrb[0].mxu0 %v271
  %v414 = vpop.f32.mrb[0].mxu0
  %v415 = vadd.f32 0.0, %v414
  %v416 = vpop.f32.mrb[0].mxu0
  %v417 = vadd.f32 0.0, %v416
  %v418 = vpop.f32.mrb[0].mxu0
  %v419 = vadd.f32 0.0, %v418
  %v420 = vpop.f32.mrb[0].mxu0
  %v421 = vadd.f32 0.0, %v420
  %422 = vmatprep.mubr.bf16.mxu0 0
  %423 = vmatmul.mubr.bf16.gmra.mrb[0].mxu0 %v274
  %v424 = vpop.f32.mrb[0].mxu0
  %v425 = vadd.f32 0.0, %v424
  %v426 = vpop.f32.mrb[0].mxu0
  %v427 = vadd.f32 0.0, %v426
  %v428 = vpop.f32.mrb[0].mxu0
  %v429 = vadd.f32 0.0, %v428
  %v430 = vpop.f32.mrb[0].mxu0
  %v431 = vadd.f32 0.0, %v430
  %432 = vmatprep.mubr.bf16.mxu0 0
  %433 = vmatmul.mubr.bf16.gmra.mrb[0].mxu0 %v277
  %v434 = vpop.f32.mrb[0].mxu0
  %v435 = vadd.f32 0.0, %v434
  %v436 = vpop.f32.mrb[0].mxu0
  %v437 = vadd.f32 0.0, %v436
  %v438 = vpop.f32.mrb[0].mxu0
  %v439 = vadd.f32 0.0, %v438
  %v440 = vpop.f32.mrb[0].mxu0
  %v441 = vadd.f32 0.0, %v440
  %442 = vmatprep.mubr.bf16.mxu0 0
  %443 = vmatmul.mubr.bf16.gmra.mrb[0].mxu0 %v280
  %v444 = vpop.f32.mrb[0].mxu0
  %v445 = vadd.f32 0.0, %v444
  %v446 = vpop.f32.mrb[0].mxu0
  %v447 = vadd.f32 0.0, %v446
  %v448 = vpop.f32.mrb[0].mxu0
  %v449 = vadd.f32 0.0, %v448
  %v450 = vpop.f32.mrb[0].mxu0
  %v451 = vadd.f32 0.0, %v450
  %452 = vdwg.mxu0
  %453 = vmatprep.subr.bf16.mxu0 %v250
  %454 = vmatpush1.bf16.msra.mxu0 %v249
  %455 = vmatprep.subr.bf16.mxu0 %v299
  %456 = vmatpush1.bf16.msra.mxu0 %v296
  %457 = vmatprep.subr.bf16.mxu0 0
  %458 = vmatpush1.bf16.msra.mxu0 0
  %459 = vmatprep.subr.bf16.mxu0 0
  %460 = vmatpush1.bf16.msra.mxu0 0
  %461 = vmatprep.subr.bf16.mxu0 0
  %462 = vmatpush1.bf16.msra.mxu0 0
  %463 = vmatprep.subr.bf16.mxu0 0
  %464 = vmatpush1.bf16.msra.mxu0 0
  %465 = vmatprep.subr.bf16.mxu0 0
  %466 = vmatpush1.bf16.msra.mxu0 0
  %467 = vmatprep.subr.bf16.mxu0 0
  %468 = vmatpush1.bf16.msra.mxu0 0
  %469 = vmatprep.subr.bf16.mxu0 0
  %470 = vmatpush1.bf16.msra.mxu0 0
  %471 = vmatprep.subr.bf16.mxu0 0
  %472 = vmatpush1.bf16.msra.mxu0 0
  %473 = vmatprep.subr.bf16.mxu0 0
  %474 = vmatpush1.bf16.msra.mxu0 0
  %475 = vmatprep.subr.bf16.mxu0 0
  %476 = vmatpush1.bf16.msra.mxu0 0
  %477 = vmatprep.subr.bf16.mxu0 0
  %478 = vmatpush1.bf16.msra.mxu0 0
  %479 = vmatprep.subr.bf16.mxu0 0
  %480 = vmatpush1.bf16.msra.mxu0 0
  %481 = vmatprep.subr.bf16.mxu0 0
  %482 = vmatpush1.bf16.msra.mxu0 0
  %483 = vmatprep.subr.bf16.mxu0 0
  %484 = vmatpush1.bf16.msra.mxu0 0
  %485 = vmatprep.mubr.bf16.mxu0 0
  %486 = vmatmul.mubr.bf16.gmra.mrb[0].mxu0 %v271
  %v487 = vpop.f32.mrb[0].mxu0
  %v488 = vadd.f32 0.0, %v487
  %v489 = vpop.f32.mrb[0].mxu0
  %v490 = vadd.f32 0.0, %v489
  %v491 = vpop.f32.mrb[0].mxu0
  %v492 = vadd.f32 0.0, %v491
  %v493 = vpop.f32.mrb[0].mxu0
  %v494 = vadd.f32 0.0, %v493
  %495 = vmatprep.mubr.bf16.mxu0 0
  %496 = vmatmul.mubr.bf16.gmra.mrb[0].mxu0 %v274
  %v497 = vpop.f32.mrb[0].mxu0
  %v498 = vadd.f32 0.0, %v497
  %v499 = vpop.f32.mrb[0].mxu0
  %v500 = vadd.f32 0.0, %v499
  %v501 = vpop.f32.mrb[0].mxu0
  %v502 = vadd.f32 0.0, %v501
  %v503 = vpop.f32.mrb[0].mxu0
  %v504 = vadd.f32 0.0, %v503
  %505 = vmatprep.mubr.bf16.mxu0 0
  %506 = vmatmul.mubr.bf16.gmra.mrb[0].mxu0 %v277
  %v507 = vpop.f32.mrb[0].mxu0
  %v508 = vadd.f32 0.0, %v507
  %v509 = vpop.f32.mrb[0].mxu0
  %v510 = vadd.f32 0.0, %v509
  %v511 = vpop.f32.mrb[0].mxu0
  %v512 = vadd.f32 0.0, %v511
  %v513 = vpop.f32.mrb[0].mxu0
  %v514 = vadd.f32 0.0, %v513
  %515 = vmatprep.mubr.bf16.mxu0 0
  %516 = vmatmul.mubr.bf16.gmra.mrb[0].mxu0 %v280
  %v517 = vpop.f32.mrb[0].mxu0
  %v518 = vadd.f32 0.0, %v517
  %v519 = vpop.f32.mrb[0].mxu0
  %v520 = vadd.f32 0.0, %v519
  %v521 = vpop.f32.mrb[0].mxu0
  %v522 = vadd.f32 0.0, %v521
  %v523 = vpop.f32.mrb[0].mxu0
  %v524 = vadd.f32 0.0, %v523
  %525 = vdwg.mxu0
  %526 = vmatprep.subr.bf16.mxu0 %v252
  %527 = vmatpush1.bf16.msra.mxu0 %v251
  %528 = vmatprep.subr.bf16.mxu0 %v305
  %529 = vmatpush1.bf16.msra.mxu0 %v302
  %530 = vmatprep.subr.bf16.mxu0 0
  %531 = vmatpush1.bf16.msra.mxu0 0
  %532 = vmatprep.subr.bf16.mxu0 0
  %533 = vmatpush1.bf16.msra.mxu0 0
  %534 = vmatprep.subr.bf16.mxu0 0
  %535 = vmatpush1.bf16.msra.mxu0 0
  %536 = vmatprep.subr.bf16.mxu0 0
  %537 = vmatpush1.bf16.msra.mxu0 0
  %538 = vmatprep.subr.bf16.mxu0 0
  %539 = vmatpush1.bf16.msra.mxu0 0
  %540 = vmatprep.subr.bf16.mxu0 0
  %541 = vmatpush1.bf16.msra.mxu0 0
  %542 = vmatprep.subr.bf16.mxu0 0
  %543 = vmatpush1.bf16.msra.mxu0 0
  %544 = vmatprep.subr.bf16.mxu0 0
  %545 = vmatpush1.bf16.msra.mxu0 0
  %546 = vmatprep.subr.bf16.mxu0 0
  %547 = vmatpush1.bf16.msra.mxu0 0
  %548 = vmatprep.subr.bf16.mxu0 0
  %549 = vmatpush1.bf16.msra.mxu0 0
  %550 = vmatprep.subr.bf16.mxu0 0
  %551 = vmatpush1.bf16.msra.mxu0 0
  %552 = vmatprep.subr.bf16.mxu0 0
  %553 = vmatpush1.bf16.msra.mxu0 0
  %554 = vmatprep.subr.bf16.mxu0 0
  %555 = vmatpush1.bf16.msra.mxu0 0
  %556 = vmatprep.subr.bf16.mxu0 0
  %557 = vmatpush1.bf16.msra.mxu0 0
  %558 = vmatprep.mubr.bf16.mxu0 0
  %559 = vmatmul.mubr.bf16.gmra.mrb[0].mxu0 %v271
  %v560 = vpop.f32.mrb[0].mxu0
  %v561 = vadd.f32 0.0, %v560
  %v562 = vpop.f32.mrb[0].mxu0
  %v563 = vadd.f32 0.0, %v562
  %v564 = vpop.f32.mrb[0].mxu0
  %v565 = vadd.f32 0.0, %v564
  %v566 = vpop.f32.mrb[0].mxu0
  %v567 = vadd.f32 0.0, %v566
  %568 = vmatprep.mubr.bf16.mxu0 0
  %569 = vmatmul.mubr.bf16.gmra.mrb[0].mxu0 %v274
  %v570 = vpop.f32.mrb[0].mxu0
  %v571 = vadd.f32 0.0, %v570
  %v572 = vpop.f32.mrb[0].mxu0
  %v573 = vadd.f32 0.0, %v572
  %v574 = vpop.f32.mrb[0].mxu0
  %v575 = vadd.f32 0.0, %v574
  %v576 = vpop.f32.mrb[0].mxu0
  %v577 = vadd.f32 0.0, %v576
  %578 = vmatprep.mubr.bf16.mxu0 0
  %579 = vmatmul.mubr.bf16.gmra.mrb[0].mxu0 %v277
  %v580 = vpop.f32.mrb[0].mxu0
  %v581 = vadd.f32 0.0, %v580
  %v582 = vpop.f32.mrb[0].mxu0
  %v583 = vadd.f32 0.0, %v582
  %v584 = vpop.f32.mrb[0].mxu0
  %v585 = vadd.f32 0.0, %v584
  %v586 = vpop.f32.mrb[0].mxu0
  %v587 = vadd.f32 0.0, %v586
  %588 = vmatprep.mubr.bf16.mxu0 0
  %589 = vmatmul.mubr.bf16.gmra.mrb[0].mxu0 %v280
  %v590 = vpop.f32.mrb[0].mxu0
  %v591 = vadd.f32 0.0, %v590
  %v592 = vpop.f32.mrb[0].mxu0
  %v593 = vadd.f32 0.0, %v592
  %v594 = vpop.f32.mrb[0].mxu0
  %v595 = vadd.f32 0.0, %v594
  %v596 = vpop.f32.mrb[0].mxu0
  %v597 = vadd.f32 0.0, %v596
  %598 = vdwg.mxu0
  %v599 = vadd.f32 %v342, %v68
  %v600 = vadd.f32 %v346, %v73
  %v601 = vadd.f32 %v352, %v78
  %v602 = vadd.f32 %v356, %v83
  %v603 = vadd.f32 %v362, %v88
  %v604 = vadd.f32 %v366, %v93
  %v605 = vadd.f32 %v372, %v98
  %v606 = vadd.f32 %v376, %v103
  %607 = vst [vmem:[#allocation2] sm:$0xff] %v599
  %608 = vst [vmem:[#allocation2 + $0x8] sm:$0xff] %v600
  %609 = vst [vmem:[#allocation2 + $0x10] sm:$0xff] %v601
  %610 = vst [vmem:[#allocation2 + $0x18] sm:$0xff] %v602
  %611 = vst [vmem:[#allocation2 + $0x20] sm:$0xff] %v603
  %612 = vst [vmem:[#allocation2 + $0x28] sm:$0xff] %v604
  %613 = vst [vmem:[#allocation2 + $0x30] sm:$0xff] %v605
  %614 = vst [vmem:[#allocation2 + $0x38] sm:$0xff] %v606
  %v615 = vadd.f32 %v344, %v68
  %v616 = vadd.f32 %v348, %v73
  %v617 = vadd.f32 %v354, %v78
  %v618 = vadd.f32 %v358, %v83
  %v619 = vadd.f32 %v364, %v88
  %v620 = vadd.f32 %v368, %v93
  %v621 = vadd.f32 %v374, %v98
  %v622 = vadd.f32 %v378, %v103
  %s623 = scalar_lea.vmem [#allocation2], 64
  %624 = vst [vmem:[%s623] sm:$0xff] %v615
  %625 = vst [vmem:[%s623 + $0x8] sm:$0xff] %v616
  %626 = vst [vmem:[%s623 + $0x10] sm:$0xff] %v617
  %627 = vst [vmem:[%s623 + $0x18] sm:$0xff] %v618
  %628 = vst [vmem:[%s623 + $0x20] sm:$0xff] %v619
  %629 = vst [vmem:[%s623 + $0x28] sm:$0xff] %v620
  %630 = vst [vmem:[%s623 + $0x30] sm:$0xff] %v621
  %631 = vst [vmem:[%s623 + $0x38] sm:$0xff] %v622
  %v632 = vadd.f32 %v415, %v68
  %v633 = vadd.f32 %v419, %v73
  %v634 = vadd.f32 %v425, %v78
  %v635 = vadd.f32 %v429, %v83
  %v636 = vadd.f32 %v435, %v88
  %v637 = vadd.f32 %v439, %v93
  %v638 = vadd.f32 %v445, %v98
  %v639 = vadd.f32 %v449, %v103
  %s640 = scalar_lea.vmem [#allocation2], 128
  %641 = vst [vmem:[%s640] sm:$0xff] %v632
  %642 = vst [vmem:[%s640 + $0x8] sm:$0xff] %v633
  %643 = vst [vmem:[%s640 + $0x10] sm:$0xff] %v634
  %644 = vst [vmem:[%s640 + $0x18] sm:$0xff] %v635
  %645 = vst [vmem:[%s640 + $0x20] sm:$0xff] %v636
  %646 = vst [vmem:[%s640 + $0x28] sm:$0xff] %v637
  %647 = vst [vmem:[%s640 + $0x30] sm:$0xff] %v638
  %648 = vst [vmem:[%s640 + $0x38] sm:$0xff] %v639
  %v649 = vadd.f32 %v417, %v68
  %v650 = vadd.f32 %v421, %v73
  %v651 = vadd.f32 %v427, %v78
  %v652 = vadd.f32 %v431, %v83
  %v653 = vadd.f32 %v437, %v88
  %v654 = vadd.f32 %v441, %v93
  %v655 = vadd.f32 %v447, %v98
  %v656 = vadd.f32 %v451, %v103
  %s657 = scalar_lea.vmem [#allocation2], 192
  %658 = vst [vmem:[%s657] sm:$0xff] %v649
  %659 = vst [vmem:[%s657 + $0x8] sm:$0xff] %v650
  %660 = vst [vmem:[%s657 + $0x10] sm:$0xff] %v651
  %661 = vst [vmem:[%s657 + $0x18] sm:$0xff] %v652
  %662 = vst [vmem:[%s657 + $0x20] sm:$0xff] %v653
  %663 = vst [vmem:[%s657 + $0x28] sm:$0xff] %v654
  %664 = vst [vmem:[%s657 + $0x30] sm:$0xff] %v655
  %665 = vst [vmem:[%s657 + $0x38] sm:$0xff] %v656
  %v666 = vadd.f32 %v488, %v68
  %v667 = vadd.f32 %v492, %v73
  %v668 = vadd.f32 %v498, %v78
  %v669 = vadd.f32 %v502, %v83
  %v670 = vadd.f32 %v508, %v88
  %v671 = vadd.f32 %v512, %v93
  %v672 = vadd.f32 %v518, %v98
  %v673 = vadd.f32 %v522, %v103
  %s674 = scalar_lea.vmem [#allocation2], 256
  %675 = vst [vmem:[%s674] sm:$0xff] %v666
  %676 = vst [vmem:[%s674 + $0x8] sm:$0xff] %v667
  %677 = vst [vmem:[%s674 + $0x10] sm:$0xff] %v668
  %678 = vst [vmem:[%s674 + $0x18] sm:$0xff] %v669
  %679 = vst [vmem:[%s674 + $0x20] sm:$0xff] %v670
  %680 = vst [vmem:[%s674 + $0x28] sm:$0xff] %v671
  %681 = vst [vmem:[%s674 + $0x30] sm:$0xff] %v672
  %682 = vst [vmem:[%s674 + $0x38] sm:$0xff] %v673
  %v683 = vadd.f32 %v490, %v68
  %v684 = vadd.f32 %v494, %v73
  %v685 = vadd.f32 %v500, %v78
  %v686 = vadd.f32 %v504, %v83
  %v687 = vadd.f32 %v510, %v88
  %v688 = vadd.f32 %v514, %v93
  %v689 = vadd.f32 %v520, %v98
  %v690 = vadd.f32 %v524, %v103
  %s691 = scalar_lea.vmem [#allocation2], 320
  %692 = vst [vmem:[%s691] sm:$0xff] %v683
  %693 = vst [vmem:[%s691 + $0x8] sm:$0xff] %v684
  %694 = vst [vmem:[%s691 + $0x10] sm:$0xff] %v685
  %695 = vst [vmem:[%s691 + $0x18] sm:$0xff] %v686
  %696 = vst [vmem:[%s691 + $0x20] sm:$0xff] %v687
  %697 = vst [vmem:[%s691 + $0x28] sm:$0xff] %v688
  %698 = vst [vmem:[%s691 + $0x30] sm:$0xff] %v689
  %699 = vst [vmem:[%s691 + $0x38] sm:$0xff] %v690
  %v700 = vadd.f32 %v561, %v68
  %v701 = vadd.f32 %v565, %v73
  %v702 = vadd.f32 %v571, %v78
  %v703 = vadd.f32 %v575, %v83
  %v704 = vadd.f32 %v581, %v88
  %v705 = vadd.f32 %v585, %v93
  %v706 = vadd.f32 %v591, %v98
  %v707 = vadd.f32 %v595, %v103
  %s708 = scalar_lea.vmem [#allocation2], 384
  %709 = vst [vmem:[%s708] sm:$0xff] %v700
  %710 = vst [vmem:[%s708 + $0x8] sm:$0xff] %v701
  %711 = vst [vmem:[%s708 + $0x10] sm:$0xff] %v702
  %712 = vst [vmem:[%s708 + $0x18] sm:$0xff] %v703
  %713 = vst [vmem:[%s708 + $0x20] sm:$0xff] %v704
  %714 = vst [vmem:[%s708 + $0x28] sm:$0xff] %v705
  %715 = vst [vmem:[%s708 + $0x30] sm:$0xff] %v706
  %716 = vst [vmem:[%s708 + $0x38] sm:$0xff] %v707
  %v717 = vadd.f32 %v563, %v68
  %v718 = vadd.f32 %v567, %v73
  %v719 = vadd.f32 %v573, %v78
  %v720 = vadd.f32 %v577, %v83
  %v721 = vadd.f32 %v583, %v88
  %v722 = vadd.f32 %v587, %v93
  %v723 = vadd.f32 %v593, %v98
  %v724 = vadd.f32 %v597, %v103
  %s725 = scalar_lea.vmem [#allocation2], 448
  %726 = vst [vmem:[%s725] sm:$0xff] %v717
  %727 = vst [vmem:[%s725 + $0x8] sm:$0xff] %v718
  %728 = vst [vmem:[%s725 + $0x10] sm:$0xff] %v719
  %729 = vst [vmem:[%s725 + $0x18] sm:$0xff] %v720
  %730 = vst [vmem:[%s725 + $0x20] sm:$0xff] %v721
  %731 = vst [vmem:[%s725 + $0x28] sm:$0xff] %v722
  %732 = vst [vmem:[%s725 + $0x30] sm:$0xff] %v723
  %733 = vst [vmem:[%s725 + $0x38] sm:$0xff] %v724
  %v734 = vld [vmem:[#allocation2] sm:$0xff]
  %v735 = vld [vmem:[#allocation2 + $0x8] sm:$0xff]
  %v736 = vld [vmem:[#allocation2 + $0x10] sm:$0xff]
  %v737 = vld [vmem:[#allocation2 + $0x18] sm:$0xff]
  %v738 = vld [vmem:[#allocation2 + $0x20] sm:$0xff]
  %v739 = vld [vmem:[#allocation2 + $0x28] sm:$0xff]
  %v740 = vld [vmem:[#allocation2 + $0x30] sm:$0xff]
  %v741 = vld [vmem:[#allocation2 + $0x38] sm:$0xff]
  %v750 = vunpack.c.l.b16 %v33
  %v751 = vunpack.c.l.b16 %v34
  %v752 = vunpack.c.l.b16 %v35
  %v753 = vunpack.c.l.b16 %v36
  %v754 = vunpack.c.l.b16 %v37
  %v755 = vunpack.c.l.b16 %v38
  %v756 = vunpack.c.l.b16 %v39
  %v757 = vunpack.c.l.b16 %v40
  %v758 = vpack.c.b16 %v751, %v750
  %v759 = vpack.c.b16 %v753, %v752
  %v760 = vpack.c.b16 %v755, %v754
  %v761 = vpack.c.b16 %v757, %v756
  %vm762 = vcmask 130048
  %v764 = vsel %vm762, %v758, 0
  %v767 = vsel %vm762, %v759, 0
  %v770 = vsel %vm762, %v760, 0
  %v773 = vsel %vm762, %v761, 0
  %775 = vmatprep.subr.bf16.mxu0 0
  %776 = vmatpush1.bf16.msra.mxu0 0
  %777 = vmatprep.subr.bf16.mxu0 0
  %778 = vmatpush1.bf16.msra.mxu0 0
  %779 = vmatprep.subr.bf16.mxu0 0
  %780 = vmatpush1.bf16.msra.mxu0 0
  %781 = vmatprep.subr.bf16.mxu0 0
  %782 = vmatpush1.bf16.msra.mxu0 0
  %783 = vmatprep.subr.bf16.mxu0 0
  %784 = vmatpush1.bf16.msra.mxu0 0
  %785 = vmatprep.subr.bf16.mxu0 0
  %786 = vmatpush1.bf16.msra.mxu0 0
  %787 = vmatprep.subr.bf16.mxu0 0
  %788 = vmatpush1.bf16.msra.mxu0 0
  %789 = vmatprep.subr.bf16.mxu0 0
  %790 = vmatpush1.bf16.msra.mxu0 0
  %791 = vmatprep.subr.bf16.mxu0 0
  %792 = vmatpush1.bf16.msra.mxu0 0
  %793 = vmatprep.subr.bf16.mxu0 0
  %794 = vmatpush1.bf16.msra.mxu0 0
  %795 = vmatprep.subr.bf16.mxu0 0
  %796 = vmatpush1.bf16.msra.mxu0 0
  %797 = vmatprep.subr.bf16.mxu0 0
  %798 = vmatpush1.bf16.msra.mxu0 0
  %799 = vmatprep.subr.bf16.mxu0 0
  %800 = vmatpush1.bf16.msra.mxu0 0
  %801 = vmatprep.subr.bf16.mxu0 0
  %802 = vmatpush1.bf16.msra.mxu0 0
  %803 = vmatprep.subr.bf16.mxu0 0
  %804 = vmatpush1.bf16.msra.mxu0 0
  %805 = vmatprep.subr.bf16.mxu0 0
  %806 = vmatpush1.bf16.msra.mxu0 0
  %807 = vmatprep.mubr.bf16.mxu0 0
  %808 = vmatmul.mubr.bf16.gmra.mrb[0].mxu0 %v764
  %v809 = vpop.f32.mrb[0].mxu0
  %v810 = vadd.f32 0.0, %v809
  %v811 = vpop.f32.mrb[0].mxu0
  %v812 = vpop.f32.mrb[0].mxu0
  %v813 = vadd.f32 0.0, %v812
  %v814 = vpop.f32.mrb[0].mxu0
  %815 = vmatprep.mubr.bf16.mxu0 0
  %816 = vmatmul.mubr.bf16.gmra.mrb[0].mxu0 %v767
  %v817 = vpop.f32.mrb[0].mxu0
  %v818 = vadd.f32 0.0, %v817
  %v819 = vpop.f32.mrb[0].mxu0
  %v820 = vpop.f32.mrb[0].mxu0
  %v821 = vadd.f32 0.0, %v820
  %v822 = vpop.f32.mrb[0].mxu0
  %823 = vmatprep.mubr.bf16.mxu0 0
  %824 = vmatmul.mubr.bf16.gmra.mrb[0].mxu0 %v770
  %v825 = vpop.f32.mrb[0].mxu0
  %v826 = vadd.f32 0.0, %v825
  %v827 = vpop.f32.mrb[0].mxu0
  %v828 = vpop.f32.mrb[0].mxu0
  %v829 = vadd.f32 0.0, %v828
  %v830 = vpop.f32.mrb[0].mxu0
  %831 = vmatprep.mubr.bf16.mxu0 0
  %832 = vmatmul.mubr.bf16.gmra.mrb[0].mxu0 %v773
  %v833 = vpop.f32.mrb[0].mxu0
  %v834 = vadd.f32 0.0, %v833
  %v835 = vpop.f32.mrb[0].mxu0
  %v836 = vpop.f32.mrb[0].mxu0
  %v837 = vadd.f32 0.0, %v836
  %v838 = vpop.f32.mrb[0].mxu0
  %839 = vdwg.mxu0
  %v840 = vadd.f32 %v734, %v810
  %v841 = vadd.f32 %v735, %v813
  %v842 = vadd.f32 %v736, %v818
  %v843 = vadd.f32 %v737, %v821
  %v844 = vadd.f32 %v738, %v826
  %v845 = vadd.f32 %v739, %v829
  %v846 = vadd.f32 %v740, %v834
  %v847 = vadd.f32 %v741, %v837
  %v848 = vmul.f32 %v840, 0.5
  %v849 = vmul.f32 %v841, 0.5
  %v850 = vtanh.pop %v848
  %v851 = vtanh.pop %v849
  %v852 = vmul.f32 %v850, 0.5
  %v853 = vmul.f32 %v851, 0.5
  %v854 = vadd.f32 %v852, 0.5
  %v855 = vadd.f32 %v853, 0.5
  %v856 = vmul.f32 %v842, 0.5
  %v857 = vmul.f32 %v843, 0.5
  %v858 = vtanh.pop %v856
  %v859 = vtanh.pop %v857
  %v860 = vmul.f32 %v858, 0.5
  %v861 = vmul.f32 %v859, 0.5
  %v862 = vadd.f32 %v860, 0.5
  %v863 = vadd.f32 %v861, 0.5
  %v864 = vtanh.pop %v844
  %v865 = vtanh.pop %v845
  %v866 = vmul.f32 %v846, 0.5
  %v867 = vmul.f32 %v847, 0.5
  %v868 = vtanh.pop %v866
  %v869 = vtanh.pop %v867
  %v870 = vmul.f32 %v868, 0.5
  %v871 = vmul.f32 %v869, 0.5
  %v872 = vadd.f32 %v870, 0.5
  %v873 = vadd.f32 %v871, 0.5
  %v874 = vmul.f32 %v862, 0.0
  %v875 = vmul.f32 %v863, 0.0
  %v876 = vmul.f32 %v854, %v864
  %v877 = vmul.f32 %v855, %v865
  %v878 = vadd.f32 %v874, %v876
  %v879 = vadd.f32 %v875, %v877
  %v880 = vtanh.pop %v878
  %v881 = vtanh.pop %v879
  %v882 = vmul.f32 %v872, %v880
  %v883 = vmul.f32 %v873, %v881
  %v884 = vpack.c.bf16 %v883, %v882
  %v893 = vunpack.c.l.b16 %v41
  %v894 = vunpack.c.l.b16 %v42
  %v895 = vunpack.c.l.b16 %v43
  %v896 = vunpack.c.l.b16 %v44
  %v897 = vunpack.c.l.b16 %v45
  %v898 = vunpack.c.l.b16 %v46
  %v899 = vunpack.c.l.b16 %v47
  %v900 = vunpack.c.l.b16 %v48
  %v901 = vpack.c.b16 %v894, %v893
  %v902 = vpack.c.b16 %v896, %v895
  %v903 = vpack.c.b16 %v898, %v897
  %v904 = vpack.c.b16 %v900, %v899
  %v906 = vsel %vm762, %v901, 0
  %v909 = vsel %vm762, %v902, 0
  %v912 = vsel %vm762, %v903, 0
  %v915 = vsel %vm762, %v904, 0
  %917 = vmatprep.subr.bf16.mxu0 0
  %918 = vmatpush1.bf16.msra.mxu0 %v884
  %919 = vmatprep.subr.bf16.mxu0 0
  %920 = vmatpush1.bf16.msra.mxu0 0
  %921 = vmatprep.subr.bf16.mxu0 0
  %922 = vmatpush1.bf16.msra.mxu0 0
  %923 = vmatprep.subr.bf16.mxu0 0
  %924 = vmatpush1.bf16.msra.mxu0 0
  %925 = vmatprep.subr.bf16.mxu0 0
  %926 = vmatpush1.bf16.msra.mxu0 0
  %927 = vmatprep.subr.bf16.mxu0 0
  %928 = vmatpush1.bf16.msra.mxu0 0
  %929 = vmatprep.subr.bf16.mxu0 0
  %930 = vmatpush1.bf16.msra.mxu0 0
  %931 = vmatprep.subr.bf16.mxu0 0
  %932 = vmatpush1.bf16.msra.mxu0 0
  %933 = vmatprep.subr.bf16.mxu0 0
  %934 = vmatpush1.bf16.msra.mxu0 0
  %935 = vmatprep.subr.bf16.mxu0 0
  %936 = vmatpush1.bf16.msra.mxu0 0
  %937 = vmatprep.subr.bf16.mxu0 0
  %938 = vmatpush1.bf16.msra.mxu0 0
  %939 = vmatprep.subr.bf16.mxu0 0
  %940 = vmatpush1.bf16.msra.mxu0 0
  %941 = vmatprep.subr.bf16.mxu0 0
  %942 = vmatpush1.bf16.msra.mxu0 0
  %943 = vmatprep.subr.bf16.mxu0 0
  %944 = vmatpush1.bf16.msra.mxu0 0
  %945 = vmatprep.subr.bf16.mxu0 0
  %946 = vmatpush1.bf16.msra.mxu0 0
  %947 = vmatprep.subr.bf16.mxu0 0
  %948 = vmatpush1.bf16.msra.mxu0 0
  %949 = vmatprep.mubr.bf16.mxu0 0
  %950 = vmatmul.mubr.bf16.gmra.mrb[0].mxu0 %v906
  %v951 = vpop.f32.mrb[0].mxu0
  %v952 = vadd.f32 0.0, %v951
  %v953 = vpop.f32.mrb[0].mxu0
  %v954 = vpop.f32.mrb[0].mxu0
  %v955 = vadd.f32 0.0, %v954
  %v956 = vpop.f32.mrb[0].mxu0
  %957 = vmatprep.mubr.bf16.mxu0 0
  %958 = vmatmul.mubr.bf16.gmra.mrb[0].mxu0 %v909
  %v959 = vpop.f32.mrb[0].mxu0
  %v960 = vadd.f32 0.0, %v959
  %v961 = vpop.f32.mrb[0].mxu0
  %v962 = vpop.f32.mrb[0].mxu0
  %v963 = vadd.f32 0.0, %v962
  %v964 = vpop.f32.mrb[0].mxu0
  %965 = vmatprep.mubr.bf16.mxu0 0
  %966 = vmatmul.mubr.bf16.gmra.mrb[0].mxu0 %v912
  %v967 = vpop.f32.mrb[0].mxu0
  %v968 = vadd.f32 0.0, %v967
  %v969 = vpop.f32.mrb[0].mxu0
  %v970 = vpop.f32.mrb[0].mxu0
  %v971 = vadd.f32 0.0, %v970
  %v972 = vpop.f32.mrb[0].mxu0
  %973 = vmatprep.mubr.bf16.mxu0 0
  %974 = vmatmul.mubr.bf16.gmra.mrb[0].mxu0 %v915
  %v975 = vpop.f32.mrb[0].mxu0
  %v976 = vadd.f32 0.0, %v975
  %v977 = vpop.f32.mrb[0].mxu0
  %v978 = vpop.f32.mrb[0].mxu0
  %v979 = vadd.f32 0.0, %v978
  %v980 = vpop.f32.mrb[0].mxu0
  %981 = vdwg.mxu0
  %v990 = vunpack.c.l.b16 %v49
  %v991 = vunpack.c.l.b16 %v50
  %v992 = vunpack.c.l.b16 %v51
  %v993 = vunpack.c.l.b16 %v52
  %v994 = vunpack.c.l.b16 %v53
  %v995 = vunpack.c.l.b16 %v54
  %v996 = vunpack.c.l.b16 %v55
  %v997 = vunpack.c.l.b16 %v56
  %v998 = vpack.c.b16 %v991, %v990
  %v999 = vpack.c.b16 %v993, %v992
  %v1000 = vpack.c.b16 %v995, %v994
  %v1001 = vpack.c.b16 %v997, %v996
  %v1003 = vsel %vm762, %v998, 0
  %v1006 = vsel %vm762, %v999, 0
  %v1009 = vsel %vm762, %v1000, 0
  %v1012 = vsel %vm762, %v1001, 0
  %1014 = vmatprep.subr.bf16.mxu0 0
  %1015 = vmatpush1.bf16.msra.mxu0 0
  %1016 = vmatprep.subr.bf16.mxu0 0
  %1017 = vmatpush1.bf16.msra.mxu0 0
  %1018 = vmatprep.subr.bf16.mxu0 0
  %1019 = vmatpush1.bf16.msra.mxu0 0
  %1020 = vmatprep.subr.bf16.mxu0 0
  %1021 = vmatpush1.bf16.msra.mxu0 0
  %1022 = vmatprep.subr.bf16.mxu0 0
  %1023 = vmatpush1.bf16.msra.mxu0 0
  %1024 = vmatprep.subr.bf16.mxu0 0
  %1025 = vmatpush1.bf16.msra.mxu0 0
  %1026 = vmatprep.subr.bf16.mxu0 0
  %1027 = vmatpush1.bf16.msra.mxu0 0
  %1028 = vmatprep.subr.bf16.mxu0 0
  %1029 = vmatpush1.bf16.msra.mxu0 0
  %1030 = vmatprep.subr.bf16.mxu0 0
  %1031 = vmatpush1.bf16.msra.mxu0 0
  %1032 = vmatprep.subr.bf16.mxu0 0
  %1033 = vmatpush1.bf16.msra.mxu0 0
  %1034 = vmatprep.subr.bf16.mxu0 0
  %1035 = vmatpush1.bf16.msra.mxu0 0
  %1036 = vmatprep.subr.bf16.mxu0 0
  %1037 = vmatpush1.bf16.msra.mxu0 0
  %1038 = vmatprep.subr.bf16.mxu0 0
  %1039 = vmatpush1.bf16.msra.mxu0 0
  %1040 = vmatprep.subr.bf16.mxu0 0
  %1041 = vmatpush1.bf16.msra.mxu0 0
  %1042 = vmatprep.subr.bf16.mxu0 0
  %1043 = vmatpush1.bf16.msra.mxu0 0
  %1044 = vmatprep.subr.bf16.mxu0 0
  %1045 = vmatpush1.bf16.msra.mxu0 0
  %1046 = vmatprep.mubr.bf16.mxu0 0
  %1047 = vmatmul.mubr.bf16.gmra.mrb[0].mxu0 %v1003
  %v1048 = vpop.f32.mrb[0].mxu0
  %v1049 = vadd.f32 %v952, %v1048
  %v1050 = vpop.f32.mrb[0].mxu0
  %v1051 = vpop.f32.mrb[0].mxu0
  %v1052 = vadd.f32 %v955, %v1051
  %v1053 = vpop.f32.mrb[0].mxu0
  %1054 = vmatprep.mubr.bf16.mxu0 0
  %1055 = vmatmul.mubr.bf16.gmra.mrb[0].mxu0 %v1006
  %v1056 = vpop.f32.mrb[0].mxu0
  %v1057 = vadd.f32 %v960, %v1056
  %v1058 = vpop.f32.mrb[0].mxu0
  %v1059 = vpop.f32.mrb[0].mxu0
  %v1060 = vadd.f32 %v963, %v1059
  %v1061 = vpop.f32.mrb[0].mxu0
  %1062 = vmatprep.mubr.bf16.mxu0 0
  %1063 = vmatmul.mubr.bf16.gmra.mrb[0].mxu0 %v1009
  %v1064 = vpop.f32.mrb[0].mxu0
  %v1065 = vadd.f32 %v968, %v1064
  %v1066 = vpop.f32.mrb[0].mxu0
  %v1067 = vpop.f32.mrb[0].mxu0
  %v1068 = vadd.f32 %v971, %v1067
  %v1069 = vpop.f32.mrb[0].mxu0
  %1070 = vmatprep.mubr.bf16.mxu0 0
  %1071 = vmatmul.mubr.bf16.gmra.mrb[0].mxu0 %v1012
  %v1072 = vpop.f32.mrb[0].mxu0
  %v1073 = vadd.f32 %v976, %v1072
  %v1074 = vpop.f32.mrb[0].mxu0
  %v1075 = vpop.f32.mrb[0].mxu0
  %v1076 = vadd.f32 %v979, %v1075
  %v1077 = vpop.f32.mrb[0].mxu0
  %1078 = vdwg.mxu0
  %v1079 = vadd.f32 %v1049, %v116
  %v1080 = vadd.f32 %v1052, %v121
  %v1081 = vadd.f32 %v1057, %v126
  %v1082 = vadd.f32 %v1060, %v131
  %v1083 = vadd.f32 %v1065, %v136
  %v1084 = vadd.f32 %v1068, %v141
  %v1085 = vadd.f32 %v1073, %v146
  %v1086 = vadd.f32 %v1076, %v151
  %v1087 = vmul.f32 %v1079, 0.5
  %v1088 = vmul.f32 %v1080, 0.5
  %v1089 = vtanh.pop %v1087
  %v1090 = vtanh.pop %v1088
  %v1091 = vmul.f32 %v1089, 0.5
  %v1092 = vmul.f32 %v1090, 0.5
  %v1093 = vadd.f32 %v1091, 0.5
  %v1094 = vadd.f32 %v1092, 0.5
  %v1095 = vmul.f32 %v1081, 0.5
  %v1096 = vmul.f32 %v1082, 0.5
  %v1097 = vtanh.pop %v1095
  %v1098 = vtanh.pop %v1096
  %v1099 = vmul.f32 %v1097, 0.5
  %v1100 = vmul.f32 %v1098, 0.5
  %v1101 = vadd.f32 %v1099, 0.5
  %v1102 = vadd.f32 %v1100, 0.5
  %v1103 = vtanh.pop %v1083
  %v1104 = vtanh.pop %v1084
  %v1105 = vmul.f32 %v1085, 0.5
  %v1106 = vmul.f32 %v1086, 0.5
  %v1107 = vtanh.pop %v1105
  %v1108 = vtanh.pop %v1106
  %v1109 = vmul.f32 %v1107, 0.5
  %v1110 = vmul.f32 %v1108, 0.5
  %v1111 = vadd.f32 %v1109, 0.5
  %v1112 = vadd.f32 %v1110, 0.5
  %v1113 = vmul.f32 %v1101, 0.0
  %v1114 = vmul.f32 %v1102, 0.0
  %v1115 = vmul.f32 %v1093, %v1103
  %v1116 = vmul.f32 %v1094, %v1104
  %v1117 = vadd.f32 %v1113, %v1115
  %v1118 = vadd.f32 %v1114, %v1116
  %v1119 = vtanh.pop %v1117
  %v1120 = vtanh.pop %v1118
  %v1121 = vmul.f32 %v1111, %v1119
  %v1122 = vmul.f32 %v1112, %v1120
  %v1123 = vpack.c.bf16 %v1122, %v1121
  %v1124 = vld [vmem:[%s623] sm:$0xff]
  %v1125 = vld [vmem:[%s623 + $0x8] sm:$0xff]
  %v1126 = vld [vmem:[%s623 + $0x10] sm:$0xff]
  %v1127 = vld [vmem:[%s623 + $0x18] sm:$0xff]
  %v1128 = vld [vmem:[%s623 + $0x20] sm:$0xff]
  %v1129 = vld [vmem:[%s623 + $0x28] sm:$0xff]
  %v1130 = vld [vmem:[%s623 + $0x30] sm:$0xff]
  %v1131 = vld [vmem:[%s623 + $0x38] sm:$0xff]
  %1132 = vmatprep.subr.bf16.mxu0 0
  %1133 = vmatpush1.bf16.msra.mxu0 %v884
  %1134 = vmatprep.subr.bf16.mxu0 0
  %1135 = vmatpush1.bf16.msra.mxu0 0
  %1136 = vmatprep.subr.bf16.mxu0 0
  %1137 = vmatpush1.bf16.msra.mxu0 0
  %1138 = vmatprep.subr.bf16.mxu0 0
  %1139 = vmatpush1.bf16.msra.mxu0 0
  %1140 = vmatprep.subr.bf16.mxu0 0
  %1141 = vmatpush1.bf16.msra.mxu0 0
  %1142 = vmatprep.subr.bf16.mxu0 0
  %1143 = vmatpush1.bf16.msra.mxu0 0
  %1144 = vmatprep.subr.bf16.mxu0 0
  %1145 = vmatpush1.bf16.msra.mxu0 0
  %1146 = vmatprep.subr.bf16.mxu0 0
  %1147 = vmatpush1.bf16.msra.mxu0 0
  %1148 = vmatprep.subr.bf16.mxu0 0
  %1149 = vmatpush1.bf16.msra.mxu0 0
  %1150 = vmatprep.subr.bf16.mxu0 0
  %1151 = vmatpush1.bf16.msra.mxu0 0
  %1152 = vmatprep.subr.bf16.mxu0 0
  %1153 = vmatpush1.bf16.msra.mxu0 0
  %1154 = vmatprep.subr.bf16.mxu0 0
  %1155 = vmatpush1.bf16.msra.mxu0 0
  %1156 = vmatprep.subr.bf16.mxu0 0
  %1157 = vmatpush1.bf16.msra.mxu0 0
  %1158 = vmatprep.subr.bf16.mxu0 0
  %1159 = vmatpush1.bf16.msra.mxu0 0
  %1160 = vmatprep.subr.bf16.mxu0 0
  %1161 = vmatpush1.bf16.msra.mxu0 0
  %1162 = vmatprep.subr.bf16.mxu0 0
  %1163 = vmatpush1.bf16.msra.mxu0 0
  %1164 = vmatprep.mubr.bf16.mxu0 0
  %1165 = vmatmul.mubr.bf16.gmra.mrb[0].mxu0 %v764
  %v1166 = vpop.f32.mrb[0].mxu0
  %v1167 = vadd.f32 0.0, %v1166
  %v1168 = vpop.f32.mrb[0].mxu0
  %v1169 = vpop.f32.mrb[0].mxu0
  %v1170 = vadd.f32 0.0, %v1169
  %v1171 = vpop.f32.mrb[0].mxu0
  %1172 = vmatprep.mubr.bf16.mxu0 0
  %1173 = vmatmul.mubr.bf16.gmra.mrb[0].mxu0 %v767
  %v1174 = vpop.f32.mrb[0].mxu0
  %v1175 = vadd.f32 0.0, %v1174
  %v1176 = vpop.f32.mrb[0].mxu0
  %v1177 = vpop.f32.mrb[0].mxu0
  %v1178 = vadd.f32 0.0, %v1177
  %v1179 = vpop.f32.mrb[0].mxu0
  %1180 = vmatprep.mubr.bf16.mxu0 0
  %1181 = vmatmul.mubr.bf16.gmra.mrb[0].mxu0 %v770
  %v1182 = vpop.f32.mrb[0].mxu0
  %v1183 = vadd.f32 0.0, %v1182
  %v1184 = vpop.f32.mrb[0].mxu0
  %v1185 = vpop.f32.mrb[0].mxu0
  %v1186 = vadd.f32 0.0, %v1185
  %v1187 = vpop.f32.mrb[0].mxu0
  %1188 = vmatprep.mubr.bf16.mxu0 0
  %1189 = vmatmul.mubr.bf16.gmra.mrb[0].mxu0 %v773
  %v1190 = vpop.f32.mrb[0].mxu0
  %v1191 = vadd.f32 0.0, %v1190
  %v1192 = vpop.f32.mrb[0].mxu0
  %v1193 = vpop.f32.mrb[0].mxu0
  %v1194 = vadd.f32 0.0, %v1193
  %v1195 = vpop.f32.mrb[0].mxu0
  %1196 = vdwg.mxu0
  %v1197 = vadd.f32 %v1124, %v1167
  %v1198 = vadd.f32 %v1125, %v1170
  %v1199 = vadd.f32 %v1126, %v1175
  %v1200 = vadd.f32 %v1127, %v1178
  %v1201 = vadd.f32 %v1128, %v1183
  %v1202 = vadd.f32 %v1129, %v1186
  %v1203 = vadd.f32 %v1130, %v1191
  %v1204 = vadd.f32 %v1131, %v1194
  %v1205 = vmul.f32 %v1197, 0.5
  %v1206 = vmul.f32 %v1198, 0.5
  %v1207 = vtanh.pop %v1205
  %v1208 = vtanh.pop %v1206
  %v1209 = vmul.f32 %v1207, 0.5
  %v1210 = vmul.f32 %v1208, 0.5
  %v1211 = vadd.f32 %v1209, 0.5
  %v1212 = vadd.f32 %v1210, 0.5
  %v1213 = vmul.f32 %v1199, 0.5
  %v1214 = vmul.f32 %v1200, 0.5
  %v1215 = vtanh.pop %v1213
  %v1216 = vtanh.pop %v1214
  %v1217 = vmul.f32 %v1215, 0.5
  %v1218 = vmul.f32 %v1216, 0.5
  %v1219 = vadd.f32 %v1217, 0.5
  %v1220 = vadd.f32 %v1218, 0.5
  %v1221 = vtanh.pop %v1201
  %v1222 = vtanh.pop %v1202
  %v1223 = vmul.f32 %v1203, 0.5
  %v1224 = vmul.f32 %v1204, 0.5
  %v1225 = vtanh.pop %v1223
  %v1226 = vtanh.pop %v1224
  %v1227 = vmul.f32 %v1225, 0.5
  %v1228 = vmul.f32 %v1226, 0.5
  %v1229 = vadd.f32 %v1227, 0.5
  %v1230 = vadd.f32 %v1228, 0.5
  %v1231 = vmul.f32 %v1219, %v878
  %v1232 = vmul.f32 %v1220, %v879
  %v1233 = vmul.f32 %v1211, %v1221
  %v1234 = vmul.f32 %v1212, %v1222
  %v1235 = vadd.f32 %v1231, %v1233
  %v1236 = vadd.f32 %v1232, %v1234
  %v1237 = vtanh.pop %v1235
  %v1238 = vtanh.pop %v1236
  %v1239 = vmul.f32 %v1229, %v1237
  %v1240 = vmul.f32 %v1230, %v1238
  %v1241 = vpack.c.bf16 %v1240, %v1239
  %1242 = vmatprep.subr.bf16.mxu0 0
  %1243 = vmatpush1.bf16.msra.mxu0 %v1241
  %1244 = vmatprep.subr.bf16.mxu0 0
  %1245 = vmatpush1.bf16.msra.mxu0 0
  %1246 = vmatprep.subr.bf16.mxu0 0
  %1247 = vmatpush1.bf16.msra.mxu0 0
  %1248 = vmatprep.subr.bf16.mxu0 0
  %1249 = vmatpush1.bf16.msra.mxu0 0
  %1250 = vmatprep.subr.bf16.mxu0 0
  %1251 = vmatpush1.bf16.msra.mxu0 0
  %1252 = vmatprep.subr.bf16.mxu0 0
  %1253 = vmatpush1.bf16.msra.mxu0 0
  %1254 = vmatprep.subr.bf16.mxu0 0
  %1255 = vmatpush1.bf16.msra.mxu0 0
  %1256 = vmatprep.subr.bf16.mxu0 0
  %1257 = vmatpush1.bf16.msra.mxu0 0
  %1258 = vmatprep.subr.bf16.mxu0 0
  %1259 = vmatpush1.bf16.msra.mxu0 0
  %1260 = vmatprep.subr.bf16.mxu0 0
  %1261 = vmatpush1.bf16.msra.mxu0 0
  %1262 = vmatprep.subr.bf16.mxu0 0
  %1263 = vmatpush1.bf16.msra.mxu0 0
  %1264 = vmatprep.subr.bf16.mxu0 0
  %1265 = vmatpush1.bf16.msra.mxu0 0
  %1266 = vmatprep.subr.bf16.mxu0 0
  %1267 = vmatpush1.bf16.msra.mxu0 0
  %1268 = vmatprep.subr.bf16.mxu0 0
  %1269 = vmatpush1.bf16.msra.mxu0 0
  %1270 = vmatprep.subr.bf16.mxu0 0
  %1271 = vmatpush1.bf16.msra.mxu0 0
  %1272 = vmatprep.subr.bf16.mxu0 0
  %1273 = vmatpush1.bf16.msra.mxu0 0
  %1274 = vmatprep.mubr.bf16.mxu0 0
  %1275 = vmatmul.mubr.bf16.gmra.mrb[0].mxu0 %v906
  %v1276 = vpop.f32.mrb[0].mxu0
  %v1277 = vadd.f32 0.0, %v1276
  %v1278 = vpop.f32.mrb[0].mxu0
  %v1279 = vpop.f32.mrb[0].mxu0
  %v1280 = vadd.f32 0.0, %v1279
  %v1281 = vpop.f32.mrb[0].mxu0
  %1282 = vmatprep.mubr.bf16.mxu0 0
  %1283 = vmatmul.mubr.bf16.gmra.mrb[0].mxu0 %v909
  %v1284 = vpop.f32.mrb[0].mxu0
  %v1285 = vadd.f32 0.0, %v1284
  %v1286 = vpop.f32.mrb[0].mxu0
  %v1287 = vpop.f32.mrb[0].mxu0
  %v1288 = vadd.f32 0.0, %v1287
  %v1289 = vpop.f32.mrb[0].mxu0
  %1290 = vmatprep.mubr.bf16.mxu0 0
  %1291 = vmatmul.mubr.bf16.gmra.mrb[0].mxu0 %v912
  %v1292 = vpop.f32.mrb[0].mxu0
  %v1293 = vadd.f32 0.0, %v1292
  %v1294 = vpop.f32.mrb[0].mxu0
  %v1295 = vpop.f32.mrb[0].mxu0
  %v1296 = vadd.f32 0.0, %v1295
  %v1297 = vpop.f32.mrb[0].mxu0
  %1298 = vmatprep.mubr.bf16.mxu0 0
  %1299 = vmatmul.mubr.bf16.gmra.mrb[0].mxu0 %v915
  %v1300 = vpop.f32.mrb[0].mxu0
  %v1301 = vadd.f32 0.0, %v1300
  %v1302 = vpop.f32.mrb[0].mxu0
  %v1303 = vpop.f32.mrb[0].mxu0
  %v1304 = vadd.f32 0.0, %v1303
  %v1305 = vpop.f32.mrb[0].mxu0
  %1306 = vdwg.mxu0
  %1307 = vmatprep.subr.bf16.mxu0 0
  %1308 = vmatpush1.bf16.msra.mxu0 %v1123
  %1309 = vmatprep.subr.bf16.mxu0 0
  %1310 = vmatpush1.bf16.msra.mxu0 0
  %1311 = vmatprep.subr.bf16.mxu0 0
  %1312 = vmatpush1.bf16.msra.mxu0 0
  %1313 = vmatprep.subr.bf16.mxu0 0
  %1314 = vmatpush1.bf16.msra.mxu0 0
  %1315 = vmatprep.subr.bf16.mxu0 0
  %1316 = vmatpush1.bf16.msra.mxu0 0
  %1317 = vmatprep.subr.bf16.mxu0 0
  %1318 = vmatpush1.bf16.msra.mxu0 0
  %1319 = vmatprep.subr.bf16.mxu0 0
  %1320 = vmatpush1.bf16.msra.mxu0 0
  %1321 = vmatprep.subr.bf16.mxu0 0
  %1322 = vmatpush1.bf16.msra.mxu0 0
  %1323 = vmatprep.subr.bf16.mxu0 0
  %1324 = vmatpush1.bf16.msra.mxu0 0
  %1325 = vmatprep.subr.bf16.mxu0 0
  %1326 = vmatpush1.bf16.msra.mxu0 0
  %1327 = vmatprep.subr.bf16.mxu0 0
  %1328 = vmatpush1.bf16.msra.mxu0 0
  %1329 = vmatprep.subr.bf16.mxu0 0
  %1330 = vmatpush1.bf16.msra.mxu0 0
  %1331 = vmatprep.subr.bf16.mxu0 0
  %1332 = vmatpush1.bf16.msra.mxu0 0
  %1333 = vmatprep.subr.bf16.mxu0 0
  %1334 = vmatpush1.bf16.msra.mxu0 0
  %1335 = vmatprep.subr.bf16.mxu0 0
  %1336 = vmatpush1.bf16.msra.mxu0 0
  %1337 = vmatprep.subr.bf16.mxu0 0
  %1338 = vmatpush1.bf16.msra.mxu0 0
  %1339 = vmatprep.mubr.bf16.mxu0 0
  %1340 = vmatmul.mubr.bf16.gmra.mrb[0].mxu0 %v1003
  %v1341 = vpop.f32.mrb[0].mxu0
  %v1342 = vadd.f32 %v1277, %v1341
  %v1343 = vpop.f32.mrb[0].mxu0
  %v1344 = vpop.f32.mrb[0].mxu0
  %v1345 = vadd.f32 %v1280, %v1344
  %v1346 = vpop.f32.mrb[0].mxu0
  %1347 = vmatprep.mubr.bf16.mxu0 0
  %1348 = vmatmul.mubr.bf16.gmra.mrb[0].mxu0 %v1006
  %v1349 = vpop.f32.mrb[0].mxu0
  %v1350 = vadd.f32 %v1285, %v1349
  %v1351 = vpop.f32.mrb[0].mxu0
  %v1352 = vpop.f32.mrb[0].mxu0
  %v1353 = vadd.f32 %v1288, %v1352
  %v1354 = vpop.f32.mrb[0].mxu0
  %1355 = vmatprep.mubr.bf16.mxu0 0
  %1356 = vmatmul.mubr.bf16.gmra.mrb[0].mxu0 %v1009
  %v1357 = vpop.f32.mrb[0].mxu0
  %v1358 = vadd.f32 %v1293, %v1357
  %v1359 = vpop.f32.mrb[0].mxu0
  %v1360 = vpop.f32.mrb[0].mxu0
  %v1361 = vadd.f32 %v1296, %v1360
  %v1362 = vpop.f32.mrb[0].mxu0
  %1363 = vmatprep.mubr.bf16.mxu0 0
  %1364 = vmatmul.mubr.bf16.gmra.mrb[0].mxu0 %v1012
  %v1365 = vpop.f32.mrb[0].mxu0
  %v1366 = vadd.f32 %v1301, %v1365
  %v1367 = vpop.f32.mrb[0].mxu0
  %v1368 = vpop.f32.mrb[0].mxu0
  %v1369 = vadd.f32 %v1304, %v1368
  %v1370 = vpop.f32.mrb[0].mxu0
  %1371 = vdwg.mxu0
  %v1372 = vadd.f32 %v1342, %v116
  %v1373 = vadd.f32 %v1345, %v121
  %v1374 = vadd.f32 %v1350, %v126
  %v1375 = vadd.f32 %v1353, %v131
  %v1376 = vadd.f32 %v1358, %v136
  %v1377 = vadd.f32 %v1361, %v141
  %v1378 = vadd.f32 %v1366, %v146
  %v1379 = vadd.f32 %v1369, %v151
  %v1380 = vmul.f32 %v1372, 0.5
  %v1381 = vmul.f32 %v1373, 0.5
  %v1382 = vtanh.pop %v1380
  %v1383 = vtanh.pop %v1381
  %v1384 = vmul.f32 %v1382, 0.5
  %v1385 = vmul.f32 %v1383, 0.5
  %v1386 = vadd.f32 %v1384, 0.5
  %v1387 = vadd.f32 %v1385, 0.5
  %v1388 = vmul.f32 %v1374, 0.5
  %v1389 = vmul.f32 %v1375, 0.5
  %v1390 = vtanh.pop %v1388
  %v1391 = vtanh.pop %v1389
  %v1392 = vmul.f32 %v1390, 0.5
  %v1393 = vmul.f32 %v1391, 0.5
  %v1394 = vadd.f32 %v1392, 0.5
  %v1395 = vadd.f32 %v1393, 0.5
  %v1396 = vtanh.pop %v1376
  %v1397 = vtanh.pop %v1377
  %v1398 = vmul.f32 %v1378, 0.5
  %v1399 = vmul.f32 %v1379, 0.5
  %v1400 = vtanh.pop %v1398
  %v1401 = vtanh.pop %v1399
  %v1402 = vmul.f32 %v1400, 0.5
  %v1403 = vmul.f32 %v1401, 0.5
  %v1404 = vadd.f32 %v1402, 0.5
  %v1405 = vadd.f32 %v1403, 0.5
  %v1406 = vmul.f32 %v1394, %v1117
  %v1407 = vmul.f32 %v1395, %v1118
  %v1408 = vmul.f32 %v1386, %v1396
  %v1409 = vmul.f32 %v1387, %v1397
  %v1410 = vadd.f32 %v1406, %v1408
  %v1411 = vadd.f32 %v1407, %v1409
  %v1412 = vtanh.pop %v1410
  %v1413 = vtanh.pop %v1411
  %v1414 = vmul.f32 %v1404, %v1412
  %v1415 = vmul.f32 %v1405, %v1413
  %v1416 = vpack.c.bf16 %v1415, %v1414
  %v1417 = vld [vmem:[%s640] sm:$0xff]
  %v1418 = vld [vmem:[%s640 + $0x8] sm:$0xff]
  %v1419 = vld [vmem:[%s640 + $0x10] sm:$0xff]
  %v1420 = vld [vmem:[%s640 + $0x18] sm:$0xff]
  %v1421 = vld [vmem:[%s640 + $0x20] sm:$0xff]
  %v1422 = vld [vmem:[%s640 + $0x28] sm:$0xff]
  %v1423 = vld [vmem:[%s640 + $0x30] sm:$0xff]
  %v1424 = vld [vmem:[%s640 + $0x38] sm:$0xff]
  %1425 = vmatprep.subr.bf16.mxu0 0
  %1426 = vmatpush1.bf16.msra.mxu0 %v1241
  %1427 = vmatprep.subr.bf16.mxu0 0
  %1428 = vmatpush1.bf16.msra.mxu0 0
  %1429 = vmatprep.subr.bf16.mxu0 0
  %1430 = vmatpush1.bf16.msra.mxu0 0
  %1431 = vmatprep.subr.bf16.mxu0 0
  %1432 = vmatpush1.bf16.msra.mxu0 0
  %1433 = vmatprep.subr.bf16.mxu0 0
  %1434 = vmatpush1.bf16.msra.mxu0 0
  %1435 = vmatprep.subr.bf16.mxu0 0
  %1436 = vmatpush1.bf16.msra.mxu0 0
  %1437 = vmatprep.subr.bf16.mxu0 0
  %1438 = vmatpush1.bf16.msra.mxu0 0
  %1439 = vmatprep.subr.bf16.mxu0 0
  %1440 = vmatpush1.bf16.msra.mxu0 0
  %1441 = vmatprep.subr.bf16.mxu0 0
  %1442 = vmatpush1.bf16.msra.mxu0 0
  %1443 = vmatprep.subr.bf16.mxu0 0
  %1444 = vmatpush1.bf16.msra.mxu0 0
  %1445 = vmatprep.subr.bf16.mxu0 0
  %1446 = vmatpush1.bf16.msra.mxu0 0
  %1447 = vmatprep.subr.bf16.mxu0 0
  %1448 = vmatpush1.bf16.msra.mxu0 0
  %1449 = vmatprep.subr.bf16.mxu0 0
  %1450 = vmatpush1.bf16.msra.mxu0 0
  %1451 = vmatprep.subr.bf16.mxu0 0
  %1452 = vmatpush1.bf16.msra.mxu0 0
  %1453 = vmatprep.subr.bf16.mxu0 0
  %1454 = vmatpush1.bf16.msra.mxu0 0
  %1455 = vmatprep.subr.bf16.mxu0 0
  %1456 = vmatpush1.bf16.msra.mxu0 0
  %1457 = vmatprep.mubr.bf16.mxu0 0
  %1458 = vmatmul.mubr.bf16.gmra.mrb[0].mxu0 %v764
  %v1459 = vpop.f32.mrb[0].mxu0
  %v1460 = vadd.f32 0.0, %v1459
  %v1461 = vpop.f32.mrb[0].mxu0
  %v1462 = vpop.f32.mrb[0].mxu0
  %v1463 = vadd.f32 0.0, %v1462
  %v1464 = vpop.f32.mrb[0].mxu0
  %1465 = vmatprep.mubr.bf16.mxu0 0
  %1466 = vmatmul.mubr.bf16.gmra.mrb[0].mxu0 %v767
  %v1467 = vpop.f32.mrb[0].mxu0
  %v1468 = vadd.f32 0.0, %v1467
  %v1469 = vpop.f32.mrb[0].mxu0
  %v1470 = vpop.f32.mrb[0].mxu0
  %v1471 = vadd.f32 0.0, %v1470
  %v1472 = vpop.f32.mrb[0].mxu0
  %1473 = vmatprep.mubr.bf16.mxu0 0
  %1474 = vmatmul.mubr.bf16.gmra.mrb[0].mxu0 %v770
  %v1475 = vpop.f32.mrb[0].mxu0
  %v1476 = vadd.f32 0.0, %v1475
  %v1477 = vpop.f32.mrb[0].mxu0
  %v1478 = vpop.f32.mrb[0].mxu0
  %v1479 = vadd.f32 0.0, %v1478
  %v1480 = vpop.f32.mrb[0].mxu0
  %1481 = vmatprep.mubr.bf16.mxu0 0
  %1482 = vmatmul.mubr.bf16.gmra.mrb[0].mxu0 %v773
  %v1483 = vpop.f32.mrb[0].mxu0
  %v1484 = vadd.f32 0.0, %v1483
  %v1485 = vpop.f32.mrb[0].mxu0
  %v1486 = vpop.f32.mrb[0].mxu0
  %v1487 = vadd.f32 0.0, %v1486
  %v1488 = vpop.f32.mrb[0].mxu0
  %1489 = vdwg.mxu0
  %v1490 = vadd.f32 %v1417, %v1460
  %v1491 = vadd.f32 %v1418, %v1463
  %v1492 = vadd.f32 %v1419, %v1468
  %v1493 = vadd.f32 %v1420, %v1471
  %v1494 = vadd.f32 %v1421, %v1476
  %v1495 = vadd.f32 %v1422, %v1479
  %v1496 = vadd.f32 %v1423, %v1484
  %v1497 = vadd.f32 %v1424, %v1487
  %v1498 = vmul.f32 %v1490, 0.5
  %v1499 = vmul.f32 %v1491, 0.5
  %v1500 = vtanh.pop %v1498
  %v1501 = vtanh.pop %v1499
  %v1502 = vmul.f32 %v1500, 0.5
  %v1503 = vmul.f32 %v1501, 0.5
  %v1504 = vadd.f32 %v1502, 0.5
  %v1505 = vadd.f32 %v1503, 0.5
  %v1506 = vmul.f32 %v1492, 0.5
  %v1507 = vmul.f32 %v1493, 0.5
  %v1508 = vtanh.pop %v1506
  %v1509 = vtanh.pop %v1507
  %v1510 = vmul.f32 %v1508, 0.5
  %v1511 = vmul.f32 %v1509, 0.5
  %v1512 = vadd.f32 %v1510, 0.5
  %v1513 = vadd.f32 %v1511, 0.5
  %v1514 = vtanh.pop %v1494
  %v1515 = vtanh.pop %v1495
  %v1516 = vmul.f32 %v1496, 0.5
  %v1517 = vmul.f32 %v1497, 0.5
  %v1518 = vtanh.pop %v1516
  %v1519 = vtanh.pop %v1517
  %v1520 = vmul.f32 %v1518, 0.5
  %v1521 = vmul.f32 %v1519, 0.5
  %v1522 = vadd.f32 %v1520, 0.5
  %v1523 = vadd.f32 %v1521, 0.5
  %v1524 = vmul.f32 %v1512, %v1235
  %v1525 = vmul.f32 %v1513, %v1236
  %v1526 = vmul.f32 %v1504, %v1514
  %v1527 = vmul.f32 %v1505, %v1515
  %v1528 = vadd.f32 %v1524, %v1526
  %v1529 = vadd.f32 %v1525, %v1527
  %v1530 = vtanh.pop %v1528
  %v1531 = vtanh.pop %v1529
  %v1532 = vmul.f32 %v1522, %v1530
  %v1533 = vmul.f32 %v1523, %v1531
  %v1534 = vpack.c.bf16 %v1533, %v1532
  %1535 = vmatprep.subr.bf16.mxu0 0
  %1536 = vmatpush1.bf16.msra.mxu0 %v1534
  %1537 = vmatprep.subr.bf16.mxu0 0
  %1538 = vmatpush1.bf16.msra.mxu0 0
  %1539 = vmatprep.subr.bf16.mxu0 0
  %1540 = vmatpush1.bf16.msra.mxu0 0
  %1541 = vmatprep.subr.bf16.mxu0 0
  %1542 = vmatpush1.bf16.msra.mxu0 0
  %1543 = vmatprep.subr.bf16.mxu0 0
  %1544 = vmatpush1.bf16.msra.mxu0 0
  %1545 = vmatprep.subr.bf16.mxu0 0
  %1546 = vmatpush1.bf16.msra.mxu0 0
  %1547 = vmatprep.subr.bf16.mxu0 0
  %1548 = vmatpush1.bf16.msra.mxu0 0
  %1549 = vmatprep.subr.bf16.mxu0 0
  %1550 = vmatpush1.bf16.msra.mxu0 0
  %1551 = vmatprep.subr.bf16.mxu0 0
  %1552 = vmatpush1.bf16.msra.mxu0 0
  %1553 = vmatprep.subr.bf16.mxu0 0
  %1554 = vmatpush1.bf16.msra.mxu0 0
  %1555 = vmatprep.subr.bf16.mxu0 0
  %1556 = vmatpush1.bf16.msra.mxu0 0
  %1557 = vmatprep.subr.bf16.mxu0 0
  %1558 = vmatpush1.bf16.msra.mxu0 0
  %1559 = vmatprep.subr.bf16.mxu0 0
  %1560 = vmatpush1.bf16.msra.mxu0 0
  %1561 = vmatprep.subr.bf16.mxu0 0
  %1562 = vmatpush1.bf16.msra.mxu0 0
  %1563 = vmatprep.subr.bf16.mxu0 0
  %1564 = vmatpush1.bf16.msra.mxu0 0
  %1565 = vmatprep.subr.bf16.mxu0 0
  %1566 = vmatpush1.bf16.msra.mxu0 0
  %1567 = vmatprep.mubr.bf16.mxu0 0
  %1568 = vmatmul.mubr.bf16.gmra.mrb[0].mxu0 %v906
  %v1569 = vpop.f32.mrb[0].mxu0
  %v1570 = vadd.f32 0.0, %v1569
  %v1571 = vpop.f32.mrb[0].mxu0
  %v1572 = vpop.f32.mrb[0].mxu0
  %v1573 = vadd.f32 0.0, %v1572
  %v1574 = vpop.f32.mrb[0].mxu0
  %1575 = vmatprep.mubr.bf16.mxu0 0
  %1576 = vmatmul.mubr.bf16.gmra.mrb[0].mxu0 %v909
  %v1577 = vpop.f32.mrb[0].mxu0
  %v1578 = vadd.f32 0.0, %v1577
  %v1579 = vpop.f32.mrb[0].mxu0
  %v1580 = vpop.f32.mrb[0].mxu0
  %v1581 = vadd.f32 0.0, %v1580
  %v1582 = vpop.f32.mrb[0].mxu0
  %1583 = vmatprep.mubr.bf16.mxu0 0
  %1584 = vmatmul.mubr.bf16.gmra.mrb[0].mxu0 %v912
  %v1585 = vpop.f32.mrb[0].mxu0
  %v1586 = vadd.f32 0.0, %v1585
  %v1587 = vpop.f32.mrb[0].mxu0
  %v1588 = vpop.f32.mrb[0].mxu0
  %v1589 = vadd.f32 0.0, %v1588
  %v1590 = vpop.f32.mrb[0].mxu0
  %1591 = vmatprep.mubr.bf16.mxu0 0
  %1592 = vmatmul.mubr.bf16.gmra.mrb[0].mxu0 %v915
  %v1593 = vpop.f32.mrb[0].mxu0
  %v1594 = vadd.f32 0.0, %v1593
  %v1595 = vpop.f32.mrb[0].mxu0
  %v1596 = vpop.f32.mrb[0].mxu0
  %v1597 = vadd.f32 0.0, %v1596
  %v1598 = vpop.f32.mrb[0].mxu0
  %1599 = vdwg.mxu0
  %1600 = vmatprep.subr.bf16.mxu0 0
  %1601 = vmatpush1.bf16.msra.mxu0 %v1416
  %1602 = vmatprep.subr.bf16.mxu0 0
  %1603 = vmatpush1.bf16.msra.mxu0 0
  %1604 = vmatprep.subr.bf16.mxu0 0
  %1605 = vmatpush1.bf16.msra.mxu0 0
  %1606 = vmatprep.subr.bf16.mxu0 0
  %1607 = vmatpush1.bf16.msra.mxu0 0
  %1608 = vmatprep.subr.bf16.mxu0 0
  %1609 = vmatpush1.bf16.msra.mxu0 0
  %1610 = vmatprep.subr.bf16.mxu0 0
  %1611 = vmatpush1.bf16.msra.mxu0 0
  %1612 = vmatprep.subr.bf16.mxu0 0
  %1613 = vmatpush1.bf16.msra.mxu0 0
  %1614 = vmatprep.subr.bf16.mxu0 0
  %1615 = vmatpush1.bf16.msra.mxu0 0
  %1616 = vmatprep.subr.bf16.mxu0 0
  %1617 = vmatpush1.bf16.msra.mxu0 0
  %1618 = vmatprep.subr.bf16.mxu0 0
  %1619 = vmatpush1.bf16.msra.mxu0 0
  %1620 = vmatprep.subr.bf16.mxu0 0
  %1621 = vmatpush1.bf16.msra.mxu0 0
  %1622 = vmatprep.subr.bf16.mxu0 0
  %1623 = vmatpush1.bf16.msra.mxu0 0
  %1624 = vmatprep.subr.bf16.mxu0 0
  %1625 = vmatpush1.bf16.msra.mxu0 0
  %1626 = vmatprep.subr.bf16.mxu0 0
  %1627 = vmatpush1.bf16.msra.mxu0 0
  %1628 = vmatprep.subr.bf16.mxu0 0
  %1629 = vmatpush1.bf16.msra.mxu0 0
  %1630 = vmatprep.subr.bf16.mxu0 0
  %1631 = vmatpush1.bf16.msra.mxu0 0
  %1632 = vmatprep.mubr.bf16.mxu0 0
  %1633 = vmatmul.mubr.bf16.gmra.mrb[0].mxu0 %v1003
  %v1634 = vpop.f32.mrb[0].mxu0
  %v1635 = vadd.f32 %v1570, %v1634
  %v1636 = vpop.f32.mrb[0].mxu0
  %v1637 = vpop.f32.mrb[0].mxu0
  %v1638 = vadd.f32 %v1573, %v1637
  %v1639 = vpop.f32.mrb[0].mxu0
  %1640 = vmatprep.mubr.bf16.mxu0 0
  %1641 = vmatmul.mubr.bf16.gmra.mrb[0].mxu0 %v1006
  %v1642 = vpop.f32.mrb[0].mxu0
  %v1643 = vadd.f32 %v1578, %v1642
  %v1644 = vpop.f32.mrb[0].mxu0
  %v1645 = vpop.f32.mrb[0].mxu0
  %v1646 = vadd.f32 %v1581, %v1645
  %v1647 = vpop.f32.mrb[0].mxu0
  %1648 = vmatprep.mubr.bf16.mxu0 0
  %1649 = vmatmul.mubr.bf16.gmra.mrb[0].mxu0 %v1009
  %v1650 = vpop.f32.mrb[0].mxu0
  %v1651 = vadd.f32 %v1586, %v1650
  %v1652 = vpop.f32.mrb[0].mxu0
  %v1653 = vpop.f32.mrb[0].mxu0
  %v1654 = vadd.f32 %v1589, %v1653
  %v1655 = vpop.f32.mrb[0].mxu0
  %1656 = vmatprep.mubr.bf16.mxu0 0
  %1657 = vmatmul.mubr.bf16.gmra.mrb[0].mxu0 %v1012
  %v1658 = vpop.f32.mrb[0].mxu0
  %v1659 = vadd.f32 %v1594, %v1658
  %v1660 = vpop.f32.mrb[0].mxu0
  %v1661 = vpop.f32.mrb[0].mxu0
  %v1662 = vadd.f32 %v1597, %v1661
  %v1663 = vpop.f32.mrb[0].mxu0
  %1664 = vdwg.mxu0
  %v1665 = vadd.f32 %v1635, %v116
  %v1666 = vadd.f32 %v1638, %v121
  %v1667 = vadd.f32 %v1643, %v126
  %v1668 = vadd.f32 %v1646, %v131
  %v1669 = vadd.f32 %v1651, %v136
  %v1670 = vadd.f32 %v1654, %v141
  %v1671 = vadd.f32 %v1659, %v146
  %v1672 = vadd.f32 %v1662, %v151
  %v1673 = vmul.f32 %v1665, 0.5
  %v1674 = vmul.f32 %v1666, 0.5
  %v1675 = vtanh.pop %v1673
  %v1676 = vtanh.pop %v1674
  %v1677 = vmul.f32 %v1675, 0.5
  %v1678 = vmul.f32 %v1676, 0.5
  %v1679 = vadd.f32 %v1677, 0.5
  %v1680 = vadd.f32 %v1678, 0.5
  %v1681 = vmul.f32 %v1667, 0.5
  %v1682 = vmul.f32 %v1668, 0.5
  %v1683 = vtanh.pop %v1681
  %v1684 = vtanh.pop %v1682
  %v1685 = vmul.f32 %v1683, 0.5
  %v1686 = vmul.f32 %v1684, 0.5
  %v1687 = vadd.f32 %v1685, 0.5
  %v1688 = vadd.f32 %v1686, 0.5
  %v1689 = vtanh.pop %v1669
  %v1690 = vtanh.pop %v1670
  %v1691 = vmul.f32 %v1671, 0.5
  %v1692 = vmul.f32 %v1672, 0.5
  %v1693 = vtanh.pop %v1691
  %v1694 = vtanh.pop %v1692
  %v1695 = vmul.f32 %v1693, 0.5
  %v1696 = vmul.f32 %v1694, 0.5
  %v1697 = vadd.f32 %v1695, 0.5
  %v1698 = vadd.f32 %v1696, 0.5
  %v1699 = vmul.f32 %v1687, %v1410
  %v1700 = vmul.f32 %v1688, %v1411
  %v1701 = vmul.f32 %v1679, %v1689
  %v1702 = vmul.f32 %v1680, %v1690
  %v1703 = vadd.f32 %v1699, %v1701
  %v1704 = vadd.f32 %v1700, %v1702
  %v1705 = vtanh.pop %v1703
  %v1706 = vtanh.pop %v1704
  %v1707 = vmul.f32 %v1697, %v1705
  %v1708 = vmul.f32 %v1698, %v1706
  %v1709 = vpack.c.bf16 %v1708, %v1707
  %v1710 = vld [vmem:[%s657] sm:$0xff]
  %v1711 = vld [vmem:[%s657 + $0x8] sm:$0xff]
  %v1712 = vld [vmem:[%s657 + $0x10] sm:$0xff]
  %v1713 = vld [vmem:[%s657 + $0x18] sm:$0xff]
  %v1714 = vld [vmem:[%s657 + $0x20] sm:$0xff]
  %v1715 = vld [vmem:[%s657 + $0x28] sm:$0xff]
  %v1716 = vld [vmem:[%s657 + $0x30] sm:$0xff]
  %v1717 = vld [vmem:[%s657 + $0x38] sm:$0xff]
  %1718 = vmatprep.subr.bf16.mxu0 0
  %1719 = vmatpush1.bf16.msra.mxu0 %v1534
  %1720 = vmatprep.subr.bf16.mxu0 0
  %1721 = vmatpush1.bf16.msra.mxu0 0
  %1722 = vmatprep.subr.bf16.mxu0 0
  %1723 = vmatpush1.bf16.msra.mxu0 0
  %1724 = vmatprep.subr.bf16.mxu0 0
  %1725 = vmatpush1.bf16.msra.mxu0 0
  %1726 = vmatprep.subr.bf16.mxu0 0
  %1727 = vmatpush1.bf16.msra.mxu0 0
  %1728 = vmatprep.subr.bf16.mxu0 0
  %1729 = vmatpush1.bf16.msra.mxu0 0
  %1730 = vmatprep.subr.bf16.mxu0 0
  %1731 = vmatpush1.bf16.msra.mxu0 0
  %1732 = vmatprep.subr.bf16.mxu0 0
  %1733 = vmatpush1.bf16.msra.mxu0 0
  %1734 = vmatprep.subr.bf16.mxu0 0
  %1735 = vmatpush1.bf16.msra.mxu0 0
  %1736 = vmatprep.subr.bf16.mxu0 0
  %1737 = vmatpush1.bf16.msra.mxu0 0
  %1738 = vmatprep.subr.bf16.mxu0 0
  %1739 = vmatpush1.bf16.msra.mxu0 0
  %1740 = vmatprep.subr.bf16.mxu0 0
  %1741 = vmatpush1.bf16.msra.mxu0 0
  %1742 = vmatprep.subr.bf16.mxu0 0
  %1743 = vmatpush1.bf16.msra.mxu0 0
  %1744 = vmatprep.subr.bf16.mxu0 0
  %1745 = vmatpush1.bf16.msra.mxu0 0
  %1746 = vmatprep.subr.bf16.mxu0 0
  %1747 = vmatpush1.bf16.msra.mxu0 0
  %1748 = vmatprep.subr.bf16.mxu0 0
  %1749 = vmatpush1.bf16.msra.mxu0 0
  %1750 = vmatprep.mubr.bf16.mxu0 0
  %1751 = vmatmul.mubr.bf16.gmra.mrb[0].mxu0 %v764
  %v1752 = vpop.f32.mrb[0].mxu0
  %v1753 = vadd.f32 0.0, %v1752
  %v1754 = vpop.f32.mrb[0].mxu0
  %v1755 = vpop.f32.mrb[0].mxu0
  %v1756 = vadd.f32 0.0, %v1755
  %v1757 = vpop.f32.mrb[0].mxu0
  %1758 = vmatprep.mubr.bf16.mxu0 0
  %1759 = vmatmul.mubr.bf16.gmra.mrb[0].mxu0 %v767
  %v1760 = vpop.f32.mrb[0].mxu0
  %v1761 = vadd.f32 0.0, %v1760
  %v1762 = vpop.f32.mrb[0].mxu0
  %v1763 = vpop.f32.mrb[0].mxu0
  %v1764 = vadd.f32 0.0, %v1763
  %v1765 = vpop.f32.mrb[0].mxu0
  %1766 = vmatprep.mubr.bf16.mxu0 0
  %1767 = vmatmul.mubr.bf16.gmra.mrb[0].mxu0 %v770
  %v1768 = vpop.f32.mrb[0].mxu0
  %v1769 = vadd.f32 0.0, %v1768
  %v1770 = vpop.f32.mrb[0].mxu0
  %v1771 = vpop.f32.mrb[0].mxu0
  %v1772 = vadd.f32 0.0, %v1771
  %v1773 = vpop.f32.mrb[0].mxu0
  %1774 = vmatprep.mubr.bf16.mxu0 0
  %1775 = vmatmul.mubr.bf16.gmra.mrb[0].mxu0 %v773
  %v1776 = vpop.f32.mrb[0].mxu0
  %v1777 = vadd.f32 0.0, %v1776
  %v1778 = vpop.f32.mrb[0].mxu0
  %v1779 = vpop.f32.mrb[0].mxu0
  %v1780 = vadd.f32 0.0, %v1779
  %v1781 = vpop.f32.mrb[0].mxu0
  %1782 = vdwg.mxu0
  %v1783 = vadd.f32 %v1710, %v1753
  %v1784 = vadd.f32 %v1711, %v1756
  %v1785 = vadd.f32 %v1712, %v1761
  %v1786 = vadd.f32 %v1713, %v1764
  %v1787 = vadd.f32 %v1714, %v1769
  %v1788 = vadd.f32 %v1715, %v1772
  %v1789 = vadd.f32 %v1716, %v1777
  %v1790 = vadd.f32 %v1717, %v1780
  %v1791 = vmul.f32 %v1783, 0.5
  %v1792 = vmul.f32 %v1784, 0.5
  %v1793 = vtanh.pop %v1791
  %v1794 = vtanh.pop %v1792
  %v1795 = vmul.f32 %v1793, 0.5
  %v1796 = vmul.f32 %v1794, 0.5
  %v1797 = vadd.f32 %v1795, 0.5
  %v1798 = vadd.f32 %v1796, 0.5
  %v1799 = vmul.f32 %v1785, 0.5
  %v1800 = vmul.f32 %v1786, 0.5
  %v1801 = vtanh.pop %v1799
  %v1802 = vtanh.pop %v1800
  %v1803 = vmul.f32 %v1801, 0.5
  %v1804 = vmul.f32 %v1802, 0.5
  %v1805 = vadd.f32 %v1803, 0.5
  %v1806 = vadd.f32 %v1804, 0.5
  %v1807 = vtanh.pop %v1787
  %v1808 = vtanh.pop %v1788
  %v1809 = vmul.f32 %v1789, 0.5
  %v1810 = vmul.f32 %v1790, 0.5
  %v1811 = vtanh.pop %v1809
  %v1812 = vtanh.pop %v1810
  %v1813 = vmul.f32 %v1811, 0.5
  %v1814 = vmul.f32 %v1812, 0.5
  %v1815 = vadd.f32 %v1813, 0.5
  %v1816 = vadd.f32 %v1814, 0.5
  %v1817 = vmul.f32 %v1805, %v1528
  %v1818 = vmul.f32 %v1806, %v1529
  %v1819 = vmul.f32 %v1797, %v1807
  %v1820 = vmul.f32 %v1798, %v1808
  %v1821 = vadd.f32 %v1817, %v1819
  %v1822 = vadd.f32 %v1818, %v1820
  %v1823 = vtanh.pop %v1821
  %v1824 = vtanh.pop %v1822
  %v1825 = vmul.f32 %v1815, %v1823
  %v1826 = vmul.f32 %v1816, %v1824
  %v1827 = vpack.c.bf16 %v1826, %v1825
  %1828 = vmatprep.subr.bf16.mxu0 0
  %1829 = vmatpush1.bf16.msra.mxu0 %v1827
  %1830 = vmatprep.subr.bf16.mxu0 0
  %1831 = vmatpush1.bf16.msra.mxu0 0
  %1832 = vmatprep.subr.bf16.mxu0 0
  %1833 = vmatpush1.bf16.msra.mxu0 0
  %1834 = vmatprep.subr.bf16.mxu0 0
  %1835 = vmatpush1.bf16.msra.mxu0 0
  %1836 = vmatprep.subr.bf16.mxu0 0
  %1837 = vmatpush1.bf16.msra.mxu0 0
  %1838 = vmatprep.subr.bf16.mxu0 0
  %1839 = vmatpush1.bf16.msra.mxu0 0
  %1840 = vmatprep.subr.bf16.mxu0 0
  %1841 = vmatpush1.bf16.msra.mxu0 0
  %1842 = vmatprep.subr.bf16.mxu0 0
  %1843 = vmatpush1.bf16.msra.mxu0 0
  %1844 = vmatprep.subr.bf16.mxu0 0
  %1845 = vmatpush1.bf16.msra.mxu0 0
  %1846 = vmatprep.subr.bf16.mxu0 0
  %1847 = vmatpush1.bf16.msra.mxu0 0
  %1848 = vmatprep.subr.bf16.mxu0 0
  %1849 = vmatpush1.bf16.msra.mxu0 0
  %1850 = vmatprep.subr.bf16.mxu0 0
  %1851 = vmatpush1.bf16.msra.mxu0 0
  %1852 = vmatprep.subr.bf16.mxu0 0
  %1853 = vmatpush1.bf16.msra.mxu0 0
  %1854 = vmatprep.subr.bf16.mxu0 0
  %1855 = vmatpush1.bf16.msra.mxu0 0
  %1856 = vmatprep.subr.bf16.mxu0 0
  %1857 = vmatpush1.bf16.msra.mxu0 0
  %1858 = vmatprep.subr.bf16.mxu0 0
  %1859 = vmatpush1.bf16.msra.mxu0 0
  %1860 = vmatprep.mubr.bf16.mxu0 0
  %1861 = vmatmul.mubr.bf16.gmra.mrb[0].mxu0 %v906
  %v1862 = vpop.f32.mrb[0].mxu0
  %v1863 = vadd.f32 0.0, %v1862
  %v1864 = vpop.f32.mrb[0].mxu0
  %v1865 = vpop.f32.mrb[0].mxu0
  %v1866 = vadd.f32 0.0, %v1865
  %v1867 = vpop.f32.mrb[0].mxu0
  %1868 = vmatprep.mubr.bf16.mxu0 0
  %1869 = vmatmul.mubr.bf16.gmra.mrb[0].mxu0 %v909
  %v1870 = vpop.f32.mrb[0].mxu0
  %v1871 = vadd.f32 0.0, %v1870
  %v1872 = vpop.f32.mrb[0].mxu0
  %v1873 = vpop.f32.mrb[0].mxu0
  %v1874 = vadd.f32 0.0, %v1873
  %v1875 = vpop.f32.mrb[0].mxu0
  %1876 = vmatprep.mubr.bf16.mxu0 0
  %1877 = vmatmul.mubr.bf16.gmra.mrb[0].mxu0 %v912
  %v1878 = vpop.f32.mrb[0].mxu0
  %v1879 = vadd.f32 0.0, %v1878
  %v1880 = vpop.f32.mrb[0].mxu0
  %v1881 = vpop.f32.mrb[0].mxu0
  %v1882 = vadd.f32 0.0, %v1881
  %v1883 = vpop.f32.mrb[0].mxu0
  %1884 = vmatprep.mubr.bf16.mxu0 0
  %1885 = vmatmul.mubr.bf16.gmra.mrb[0].mxu0 %v915
  %v1886 = vpop.f32.mrb[0].mxu0
  %v1887 = vadd.f32 0.0, %v1886
  %v1888 = vpop.f32.mrb[0].mxu0
  %v1889 = vpop.f32.mrb[0].mxu0
  %v1890 = vadd.f32 0.0, %v1889
  %v1891 = vpop.f32.mrb[0].mxu0
  %1892 = vdwg.mxu0
  %1893 = vmatprep.subr.bf16.mxu0 0
  %1894 = vmatpush1.bf16.msra.mxu0 %v1709
  %1895 = vmatprep.subr.bf16.mxu0 0
  %1896 = vmatpush1.bf16.msra.mxu0 0
  %1897 = vmatprep.subr.bf16.mxu0 0
  %1898 = vmatpush1.bf16.msra.mxu0 0
  %1899 = vmatprep.subr.bf16.mxu0 0
  %1900 = vmatpush1.bf16.msra.mxu0 0
  %1901 = vmatprep.subr.bf16.mxu0 0
  %1902 = vmatpush1.bf16.msra.mxu0 0
  %1903 = vmatprep.subr.bf16.mxu0 0
  %1904 = vmatpush1.bf16.msra.mxu0 0
  %1905 = vmatprep.subr.bf16.mxu0 0
  %1906 = vmatpush1.bf16.msra.mxu0 0
  %1907 = vmatprep.subr.bf16.mxu0 0
  %1908 = vmatpush1.bf16.msra.mxu0 0
  %1909 = vmatprep.subr.bf16.mxu0 0
  %1910 = vmatpush1.bf16.msra.mxu0 0
  %1911 = vmatprep.subr.bf16.mxu0 0
  %1912 = vmatpush1.bf16.msra.mxu0 0
  %1913 = vmatprep.subr.bf16.mxu0 0
  %1914 = vmatpush1.bf16.msra.mxu0 0
  %1915 = vmatprep.subr.bf16.mxu0 0
  %1916 = vmatpush1.bf16.msra.mxu0 0
  %1917 = vmatprep.subr.bf16.mxu0 0
  %1918 = vmatpush1.bf16.msra.mxu0 0
  %1919 = vmatprep.subr.bf16.mxu0 0
  %1920 = vmatpush1.bf16.msra.mxu0 0
  %1921 = vmatprep.subr.bf16.mxu0 0
  %1922 = vmatpush1.bf16.msra.mxu0 0
  %1923 = vmatprep.subr.bf16.mxu0 0
  %1924 = vmatpush1.bf16.msra.mxu0 0
  %1925 = vmatprep.mubr.bf16.mxu0 0
  %1926 = vmatmul.mubr.bf16.gmra.mrb[0].mxu0 %v1003
  %v1927 = vpop.f32.mrb[0].mxu0
  %v1928 = vadd.f32 %v1863, %v1927
  %v1929 = vpop.f32.mrb[0].mxu0
  %v1930 = vpop.f32.mrb[0].mxu0
  %v1931 = vadd.f32 %v1866, %v1930
  %v1932 = vpop.f32.mrb[0].mxu0
  %1933 = vmatprep.mubr.bf16.mxu0 0
  %1934 = vmatmul.mubr.bf16.gmra.mrb[0].mxu0 %v1006
  %v1935 = vpop.f32.mrb[0].mxu0
  %v1936 = vadd.f32 %v1871, %v1935
  %v1937 = vpop.f32.mrb[0].mxu0
  %v1938 = vpop.f32.mrb[0].mxu0
  %v1939 = vadd.f32 %v1874, %v1938
  %v1940 = vpop.f32.mrb[0].mxu0
  %1941 = vmatprep.mubr.bf16.mxu0 0
  %1942 = vmatmul.mubr.bf16.gmra.mrb[0].mxu0 %v1009
  %v1943 = vpop.f32.mrb[0].mxu0
  %v1944 = vadd.f32 %v1879, %v1943
  %v1945 = vpop.f32.mrb[0].mxu0
  %v1946 = vpop.f32.mrb[0].mxu0
  %v1947 = vadd.f32 %v1882, %v1946
  %v1948 = vpop.f32.mrb[0].mxu0
  %1949 = vmatprep.mubr.bf16.mxu0 0
  %1950 = vmatmul.mubr.bf16.gmra.mrb[0].mxu0 %v1012
  %v1951 = vpop.f32.mrb[0].mxu0
  %v1952 = vadd.f32 %v1887, %v1951
  %v1953 = vpop.f32.mrb[0].mxu0
  %v1954 = vpop.f32.mrb[0].mxu0
  %v1955 = vadd.f32 %v1890, %v1954
  %v1956 = vpop.f32.mrb[0].mxu0
  %1957 = vdwg.mxu0
  %v1958 = vadd.f32 %v1928, %v116
  %v1959 = vadd.f32 %v1931, %v121
  %v1960 = vadd.f32 %v1936, %v126
  %v1961 = vadd.f32 %v1939, %v131
  %v1962 = vadd.f32 %v1944, %v136
  %v1963 = vadd.f32 %v1947, %v141
  %v1964 = vadd.f32 %v1952, %v146
  %v1965 = vadd.f32 %v1955, %v151
  %v1966 = vmul.f32 %v1958, 0.5
  %v1967 = vmul.f32 %v1959, 0.5
  %v1968 = vtanh.pop %v1966
  %v1969 = vtanh.pop %v1967
  %v1970 = vmul.f32 %v1968, 0.5
  %v1971 = vmul.f32 %v1969, 0.5
  %v1972 = vadd.f32 %v1970, 0.5
  %v1973 = vadd.f32 %v1971, 0.5
  %v1974 = vmul.f32 %v1960, 0.5
  %v1975 = vmul.f32 %v1961, 0.5
  %v1976 = vtanh.pop %v1974
  %v1977 = vtanh.pop %v1975
  %v1978 = vmul.f32 %v1976, 0.5
  %v1979 = vmul.f32 %v1977, 0.5
  %v1980 = vadd.f32 %v1978, 0.5
  %v1981 = vadd.f32 %v1979, 0.5
  %v1982 = vtanh.pop %v1962
  %v1983 = vtanh.pop %v1963
  %v1984 = vmul.f32 %v1964, 0.5
  %v1985 = vmul.f32 %v1965, 0.5
  %v1986 = vtanh.pop %v1984
  %v1987 = vtanh.pop %v1985
  %v1988 = vmul.f32 %v1986, 0.5
  %v1989 = vmul.f32 %v1987, 0.5
  %v1990 = vadd.f32 %v1988, 0.5
  %v1991 = vadd.f32 %v1989, 0.5
  %v1992 = vmul.f32 %v1980, %v1703
  %v1993 = vmul.f32 %v1981, %v1704
  %v1994 = vmul.f32 %v1972, %v1982
  %v1995 = vmul.f32 %v1973, %v1983
  %v1996 = vadd.f32 %v1992, %v1994
  %v1997 = vadd.f32 %v1993, %v1995
  %v1998 = vtanh.pop %v1996
  %v1999 = vtanh.pop %v1997
  %v2000 = vmul.f32 %v1990, %v1998
  %v2001 = vmul.f32 %v1991, %v1999
  %v2002 = vpack.c.bf16 %v2001, %v2000
  %v2003 = vld [vmem:[%s674] sm:$0xff]
  %v2004 = vld [vmem:[%s674 + $0x8] sm:$0xff]
  %v2005 = vld [vmem:[%s674 + $0x10] sm:$0xff]
  %v2006 = vld [vmem:[%s674 + $0x18] sm:$0xff]
  %v2007 = vld [vmem:[%s674 + $0x20] sm:$0xff]
  %v2008 = vld [vmem:[%s674 + $0x28] sm:$0xff]
  %v2009 = vld [vmem:[%s674 + $0x30] sm:$0xff]
  %v2010 = vld [vmem:[%s674 + $0x38] sm:$0xff]
  %2011 = vmatprep.subr.bf16.mxu0 0
  %2012 = vmatpush1.bf16.msra.mxu0 %v1827
  %2013 = vmatprep.subr.bf16.mxu0 0
  %2014 = vmatpush1.bf16.msra.mxu0 0
  %2015 = vmatprep.subr.bf16.mxu0 0
  %2016 = vmatpush1.bf16.msra.mxu0 0
  %2017 = vmatprep.subr.bf16.mxu0 0
  %2018 = vmatpush1.bf16.msra.mxu0 0
  %2019 = vmatprep.subr.bf16.mxu0 0
  %2020 = vmatpush1.bf16.msra.mxu0 0
  %2021 = vmatprep.subr.bf16.mxu0 0
  %2022 = vmatpush1.bf16.msra.mxu0 0
  %2023 = vmatprep.subr.bf16.mxu0 0
  %2024 = vmatpush1.bf16.msra.mxu0 0
  %2025 = vmatprep.subr.bf16.mxu0 0
  %2026 = vmatpush1.bf16.msra.mxu0 0
  %2027 = vmatprep.subr.bf16.mxu0 0
  %2028 = vmatpush1.bf16.msra.mxu0 0
  %2029 = vmatprep.subr.bf16.mxu0 0
  %2030 = vmatpush1.bf16.msra.mxu0 0
  %2031 = vmatprep.subr.bf16.mxu0 0
  %2032 = vmatpush1.bf16.msra.mxu0 0
  %2033 = vmatprep.subr.bf16.mxu0 0
  %2034 = vmatpush1.bf16.msra.mxu0 0
  %2035 = vmatprep.subr.bf16.mxu0 0
  %2036 = vmatpush1.bf16.msra.mxu0 0
  %2037 = vmatprep.subr.bf16.mxu0 0
  %2038 = vmatpush1.bf16.msra.mxu0 0
  %2039 = vmatprep.subr.bf16.mxu0 0
  %2040 = vmatpush1.bf16.msra.mxu0 0
  %2041 = vmatprep.subr.bf16.mxu0 0
  %2042 = vmatpush1.bf16.msra.mxu0 0
  %2043 = vmatprep.mubr.bf16.mxu0 0
  %2044 = vmatmul.mubr.bf16.gmra.mrb[0].mxu0 %v764
  %v2045 = vpop.f32.mrb[0].mxu0
  %v2046 = vadd.f32 0.0, %v2045
  %v2047 = vpop.f32.mrb[0].mxu0
  %v2048 = vpop.f32.mrb[0].mxu0
  %v2049 = vadd.f32 0.0, %v2048
  %v2050 = vpop.f32.mrb[0].mxu0
  %2051 = vmatprep.mubr.bf16.mxu0 0
  %2052 = vmatmul.mubr.bf16.gmra.mrb[0].mxu0 %v767
  %v2053 = vpop.f32.mrb[0].mxu0
  %v2054 = vadd.f32 0.0, %v2053
  %v2055 = vpop.f32.mrb[0].mxu0
  %v2056 = vpop.f32.mrb[0].mxu0
  %v2057 = vadd.f32 0.0, %v2056
  %v2058 = vpop.f32.mrb[0].mxu0
  %2059 = vmatprep.mubr.bf16.mxu0 0
  %2060 = vmatmul.mubr.bf16.gmra.mrb[0].mxu0 %v770
  %v2061 = vpop.f32.mrb[0].mxu0
  %v2062 = vadd.f32 0.0, %v2061
  %v2063 = vpop.f32.mrb[0].mxu0
  %v2064 = vpop.f32.mrb[0].mxu0
  %v2065 = vadd.f32 0.0, %v2064
  %v2066 = vpop.f32.mrb[0].mxu0
  %2067 = vmatprep.mubr.bf16.mxu0 0
  %2068 = vmatmul.mubr.bf16.gmra.mrb[0].mxu0 %v773
  %v2069 = vpop.f32.mrb[0].mxu0
  %v2070 = vadd.f32 0.0, %v2069
  %v2071 = vpop.f32.mrb[0].mxu0
  %v2072 = vpop.f32.mrb[0].mxu0
  %v2073 = vadd.f32 0.0, %v2072
  %v2074 = vpop.f32.mrb[0].mxu0
  %2075 = vdwg.mxu0
  %v2076 = vadd.f32 %v2003, %v2046
  %v2077 = vadd.f32 %v2004, %v2049
  %v2078 = vadd.f32 %v2005, %v2054
  %v2079 = vadd.f32 %v2006, %v2057
  %v2080 = vadd.f32 %v2007, %v2062
  %v2081 = vadd.f32 %v2008, %v2065
  %v2082 = vadd.f32 %v2009, %v2070
  %v2083 = vadd.f32 %v2010, %v2073
  %v2084 = vmul.f32 %v2076, 0.5
  %v2085 = vmul.f32 %v2077, 0.5
  %v2086 = vtanh.pop %v2084
  %v2087 = vtanh.pop %v2085
  %v2088 = vmul.f32 %v2086, 0.5
  %v2089 = vmul.f32 %v2087, 0.5
  %v2090 = vadd.f32 %v2088, 0.5
  %v2091 = vadd.f32 %v2089, 0.5
  %v2092 = vmul.f32 %v2078, 0.5
  %v2093 = vmul.f32 %v2079, 0.5
  %v2094 = vtanh.pop %v2092
  %v2095 = vtanh.pop %v2093
  %v2096 = vmul.f32 %v2094, 0.5
  %v2097 = vmul.f32 %v2095, 0.5
  %v2098 = vadd.f32 %v2096, 0.5
  %v2099 = vadd.f32 %v2097, 0.5
  %v2100 = vtanh.pop %v2080
  %v2101 = vtanh.pop %v2081
  %v2102 = vmul.f32 %v2082, 0.5
  %v2103 = vmul.f32 %v2083, 0.5
  %v2104 = vtanh.pop %v2102
  %v2105 = vtanh.pop %v2103
  %v2106 = vmul.f32 %v2104, 0.5
  %v2107 = vmul.f32 %v2105, 0.5
  %v2108 = vadd.f32 %v2106, 0.5
  %v2109 = vadd.f32 %v2107, 0.5
  %v2110 = vmul.f32 %v2098, %v1821
  %v2111 = vmul.f32 %v2099, %v1822
  %v2112 = vmul.f32 %v2090, %v2100
  %v2113 = vmul.f32 %v2091, %v2101
  %v2114 = vadd.f32 %v2110, %v2112
  %v2115 = vadd.f32 %v2111, %v2113
  %v2116 = vtanh.pop %v2114
  %v2117 = vtanh.pop %v2115
  %v2118 = vmul.f32 %v2108, %v2116
  %v2119 = vmul.f32 %v2109, %v2117
  %v2120 = vpack.c.bf16 %v2119, %v2118
  %2121 = vmatprep.subr.bf16.mxu0 0
  %2122 = vmatpush1.bf16.msra.mxu0 %v2120
  %2123 = vmatprep.subr.bf16.mxu0 0
  %2124 = vmatpush1.bf16.msra.mxu0 0
  %2125 = vmatprep.subr.bf16.mxu0 0
  %2126 = vmatpush1.bf16.msra.mxu0 0
  %2127 = vmatprep.subr.bf16.mxu0 0
  %2128 = vmatpush1.bf16.msra.mxu0 0
  %2129 = vmatprep.subr.bf16.mxu0 0
  %2130 = vmatpush1.bf16.msra.mxu0 0
  %2131 = vmatprep.subr.bf16.mxu0 0
  %2132 = vmatpush1.bf16.msra.mxu0 0
  %2133 = vmatprep.subr.bf16.mxu0 0
  %2134 = vmatpush1.bf16.msra.mxu0 0
  %2135 = vmatprep.subr.bf16.mxu0 0
  %2136 = vmatpush1.bf16.msra.mxu0 0
  %2137 = vmatprep.subr.bf16.mxu0 0
  %2138 = vmatpush1.bf16.msra.mxu0 0
  %2139 = vmatprep.subr.bf16.mxu0 0
  %2140 = vmatpush1.bf16.msra.mxu0 0
  %2141 = vmatprep.subr.bf16.mxu0 0
  %2142 = vmatpush1.bf16.msra.mxu0 0
  %2143 = vmatprep.subr.bf16.mxu0 0
  %2144 = vmatpush1.bf16.msra.mxu0 0
  %2145 = vmatprep.subr.bf16.mxu0 0
  %2146 = vmatpush1.bf16.msra.mxu0 0
  %2147 = vmatprep.subr.bf16.mxu0 0
  %2148 = vmatpush1.bf16.msra.mxu0 0
  %2149 = vmatprep.subr.bf16.mxu0 0
  %2150 = vmatpush1.bf16.msra.mxu0 0
  %2151 = vmatprep.subr.bf16.mxu0 0
  %2152 = vmatpush1.bf16.msra.mxu0 0
  %2153 = vmatprep.mubr.bf16.mxu0 0
  %2154 = vmatmul.mubr.bf16.gmra.mrb[0].mxu0 %v906
  %v2155 = vpop.f32.mrb[0].mxu0
  %v2156 = vadd.f32 0.0, %v2155
  %v2157 = vpop.f32.mrb[0].mxu0
  %v2158 = vpop.f32.mrb[0].mxu0
  %v2159 = vadd.f32 0.0, %v2158
  %v2160 = vpop.f32.mrb[0].mxu0
  %2161 = vmatprep.mubr.bf16.mxu0 0
  %2162 = vmatmul.mubr.bf16.gmra.mrb[0].mxu0 %v909
  %v2163 = vpop.f32.mrb[0].mxu0
  %v2164 = vadd.f32 0.0, %v2163
  %v2165 = vpop.f32.mrb[0].mxu0
  %v2166 = vpop.f32.mrb[0].mxu0
  %v2167 = vadd.f32 0.0, %v2166
  %v2168 = vpop.f32.mrb[0].mxu0
  %2169 = vmatprep.mubr.bf16.mxu0 0
  %2170 = vmatmul.mubr.bf16.gmra.mrb[0].mxu0 %v912
  %v2171 = vpop.f32.mrb[0].mxu0
  %v2172 = vadd.f32 0.0, %v2171
  %v2173 = vpop.f32.mrb[0].mxu0
  %v2174 = vpop.f32.mrb[0].mxu0
  %v2175 = vadd.f32 0.0, %v2174
  %v2176 = vpop.f32.mrb[0].mxu0
  %2177 = vmatprep.mubr.bf16.mxu0 0
  %2178 = vmatmul.mubr.bf16.gmra.mrb[0].mxu0 %v915
  %v2179 = vpop.f32.mrb[0].mxu0
  %v2180 = vadd.f32 0.0, %v2179
  %v2181 = vpop.f32.mrb[0].mxu0
  %v2182 = vpop.f32.mrb[0].mxu0
  %v2183 = vadd.f32 0.0, %v2182
  %v2184 = vpop.f32.mrb[0].mxu0
  %2185 = vdwg.mxu0
  %2186 = vmatprep.subr.bf16.mxu0 0
  %2187 = vmatpush1.bf16.msra.mxu0 %v2002
  %2188 = vmatprep.subr.bf16.mxu0 0
  %2189 = vmatpush1.bf16.msra.mxu0 0
  %2190 = vmatprep.subr.bf16.mxu0 0
  %2191 = vmatpush1.bf16.msra.mxu0 0
  %2192 = vmatprep.subr.bf16.mxu0 0
  %2193 = vmatpush1.bf16.msra.mxu0 0
  %2194 = vmatprep.subr.bf16.mxu0 0
  %2195 = vmatpush1.bf16.msra.mxu0 0
  %2196 = vmatprep.subr.bf16.mxu0 0
  %2197 = vmatpush1.bf16.msra.mxu0 0
  %2198 = vmatprep.subr.bf16.mxu0 0
  %2199 = vmatpush1.bf16.msra.mxu0 0
  %2200 = vmatprep.subr.bf16.mxu0 0
  %2201 = vmatpush1.bf16.msra.mxu0 0
  %2202 = vmatprep.subr.bf16.mxu0 0
  %2203 = vmatpush1.bf16.msra.mxu0 0
  %2204 = vmatprep.subr.bf16.mxu0 0
  %2205 = vmatpush1.bf16.msra.mxu0 0
  %2206 = vmatprep.subr.bf16.mxu0 0
  %2207 = vmatpush1.bf16.msra.mxu0 0
  %2208 = vmatprep.subr.bf16.mxu0 0
  %2209 = vmatpush1.bf16.msra.mxu0 0
  %2210 = vmatprep.subr.bf16.mxu0 0
  %2211 = vmatpush1.bf16.msra.mxu0 0
  %2212 = vmatprep.subr.bf16.mxu0 0
  %2213 = vmatpush1.bf16.msra.mxu0 0
  %2214 = vmatprep.subr.bf16.mxu0 0
  %2215 = vmatpush1.bf16.msra.mxu0 0
  %2216 = vmatprep.subr.bf16.mxu0 0
  %2217 = vmatpush1.bf16.msra.mxu0 0
  %2218 = vmatprep.mubr.bf16.mxu0 0
  %2219 = vmatmul.mubr.bf16.gmra.mrb[0].mxu0 %v1003
  %v2220 = vpop.f32.mrb[0].mxu0
  %v2221 = vadd.f32 %v2156, %v2220
  %v2222 = vpop.f32.mrb[0].mxu0
  %v2223 = vpop.f32.mrb[0].mxu0
  %v2224 = vadd.f32 %v2159, %v2223
  %v2225 = vpop.f32.mrb[0].mxu0
  %2226 = vmatprep.mubr.bf16.mxu0 0
  %2227 = vmatmul.mubr.bf16.gmra.mrb[0].mxu0 %v1006
  %v2228 = vpop.f32.mrb[0].mxu0
  %v2229 = vadd.f32 %v2164, %v2228
  %v2230 = vpop.f32.mrb[0].mxu0
  %v2231 = vpop.f32.mrb[0].mxu0
  %v2232 = vadd.f32 %v2167, %v2231
  %v2233 = vpop.f32.mrb[0].mxu0
  %2234 = vmatprep.mubr.bf16.mxu0 0
  %2235 = vmatmul.mubr.bf16.gmra.mrb[0].mxu0 %v1009
  %v2236 = vpop.f32.mrb[0].mxu0
  %v2237 = vadd.f32 %v2172, %v2236
  %v2238 = vpop.f32.mrb[0].mxu0
  %v2239 = vpop.f32.mrb[0].mxu0
  %v2240 = vadd.f32 %v2175, %v2239
  %v2241 = vpop.f32.mrb[0].mxu0
  %2242 = vmatprep.mubr.bf16.mxu0 0
  %2243 = vmatmul.mubr.bf16.gmra.mrb[0].mxu0 %v1012
  %v2244 = vpop.f32.mrb[0].mxu0
  %v2245 = vadd.f32 %v2180, %v2244
  %v2246 = vpop.f32.mrb[0].mxu0
  %v2247 = vpop.f32.mrb[0].mxu0
  %v2248 = vadd.f32 %v2183, %v2247
  %v2249 = vpop.f32.mrb[0].mxu0
  %2250 = vdwg.mxu0
  %v2251 = vadd.f32 %v2221, %v116
  %v2252 = vadd.f32 %v2224, %v121
  %v2253 = vadd.f32 %v2229, %v126
  %v2254 = vadd.f32 %v2232, %v131
  %v2255 = vadd.f32 %v2237, %v136
  %v2256 = vadd.f32 %v2240, %v141
  %v2257 = vadd.f32 %v2245, %v146
  %v2258 = vadd.f32 %v2248, %v151
  %v2259 = vmul.f32 %v2251, 0.5
  %v2260 = vmul.f32 %v2252, 0.5
  %v2261 = vtanh.pop %v2259
  %v2262 = vtanh.pop %v2260
  %v2263 = vmul.f32 %v2261, 0.5
  %v2264 = vmul.f32 %v2262, 0.5
  %v2265 = vadd.f32 %v2263, 0.5
  %v2266 = vadd.f32 %v2264, 0.5
  %v2267 = vmul.f32 %v2253, 0.5
  %v2268 = vmul.f32 %v2254, 0.5
  %v2269 = vtanh.pop %v2267
  %v2270 = vtanh.pop %v2268
  %v2271 = vmul.f32 %v2269, 0.5
  %v2272 = vmul.f32 %v2270, 0.5
  %v2273 = vadd.f32 %v2271, 0.5
  %v2274 = vadd.f32 %v2272, 0.5
  %v2275 = vtanh.pop %v2255
  %v2276 = vtanh.pop %v2256
  %v2277 = vmul.f32 %v2257, 0.5
  %v2278 = vmul.f32 %v2258, 0.5
  %v2279 = vtanh.pop %v2277
  %v2280 = vtanh.pop %v2278
  %v2281 = vmul.f32 %v2279, 0.5
  %v2282 = vmul.f32 %v2280, 0.5
  %v2283 = vadd.f32 %v2281, 0.5
  %v2284 = vadd.f32 %v2282, 0.5
  %v2285 = vmul.f32 %v2273, %v1996
  %v2286 = vmul.f32 %v2274, %v1997
  %v2287 = vmul.f32 %v2265, %v2275
  %v2288 = vmul.f32 %v2266, %v2276
  %v2289 = vadd.f32 %v2285, %v2287
  %v2290 = vadd.f32 %v2286, %v2288
  %v2291 = vtanh.pop %v2289
  %v2292 = vtanh.pop %v2290
  %v2293 = vmul.f32 %v2283, %v2291
  %v2294 = vmul.f32 %v2284, %v2292
  %v2295 = vpack.c.bf16 %v2294, %v2293
  %v2296 = vld [vmem:[%s691] sm:$0xff]
  %v2297 = vld [vmem:[%s691 + $0x8] sm:$0xff]
  %v2298 = vld [vmem:[%s691 + $0x10] sm:$0xff]
  %v2299 = vld [vmem:[%s691 + $0x18] sm:$0xff]
  %v2300 = vld [vmem:[%s691 + $0x20] sm:$0xff]
  %v2301 = vld [vmem:[%s691 + $0x28] sm:$0xff]
  %v2302 = vld [vmem:[%s691 + $0x30] sm:$0xff]
  %v2303 = vld [vmem:[%s691 + $0x38] sm:$0xff]
  %2304 = vmatprep.subr.bf16.mxu0 0
  %2305 = vmatpush1.bf16.msra.mxu0 %v2120
  %2306 = vmatprep.subr.bf16.mxu0 0
  %2307 = vmatpush1.bf16.msra.mxu0 0
  %2308 = vmatprep.subr.bf16.mxu0 0
  %2309 = vmatpush1.bf16.msra.mxu0 0
  %2310 = vmatprep.subr.bf16.mxu0 0
  %2311 = vmatpush1.bf16.msra.mxu0 0
  %2312 = vmatprep.subr.bf16.mxu0 0
  %2313 = vmatpush1.bf16.msra.mxu0 0
  %2314 = vmatprep.subr.bf16.mxu0 0
  %2315 = vmatpush1.bf16.msra.mxu0 0
  %2316 = vmatprep.subr.bf16.mxu0 0
  %2317 = vmatpush1.bf16.msra.mxu0 0
  %2318 = vmatprep.subr.bf16.mxu0 0
  %2319 = vmatpush1.bf16.msra.mxu0 0
  %2320 = vmatprep.subr.bf16.mxu0 0
  %2321 = vmatpush1.bf16.msra.mxu0 0
  %2322 = vmatprep.subr.bf16.mxu0 0
  %2323 = vmatpush1.bf16.msra.mxu0 0
  %2324 = vmatprep.subr.bf16.mxu0 0
  %2325 = vmatpush1.bf16.msra.mxu0 0
  %2326 = vmatprep.subr.bf16.mxu0 0
  %2327 = vmatpush1.bf16.msra.mxu0 0
  %2328 = vmatprep.subr.bf16.mxu0 0
  %2329 = vmatpush1.bf16.msra.mxu0 0
  %2330 = vmatprep.subr.bf16.mxu0 0
  %2331 = vmatpush1.bf16.msra.mxu0 0
  %2332 = vmatprep.subr.bf16.mxu0 0
  %2333 = vmatpush1.bf16.msra.mxu0 0
  %2334 = vmatprep.subr.bf16.mxu0 0
  %2335 = vmatpush1.bf16.msra.mxu0 0
  %2336 = vmatprep.mubr.bf16.mxu0 0
  %2337 = vmatmul.mubr.bf16.gmra.mrb[0].mxu0 %v764
  %v2338 = vpop.f32.mrb[0].mxu0
  %v2339 = vadd.f32 0.0, %v2338
  %v2340 = vpop.f32.mrb[0].mxu0
  %v2341 = vpop.f32.mrb[0].mxu0
  %v2342 = vadd.f32 0.0, %v2341
  %v2343 = vpop.f32.mrb[0].mxu0
  %2344 = vmatprep.mubr.bf16.mxu0 0
  %2345 = vmatmul.mubr.bf16.gmra.mrb[0].mxu0 %v767
  %v2346 = vpop.f32.mrb[0].mxu0
  %v2347 = vadd.f32 0.0, %v2346
  %v2348 = vpop.f32.mrb[0].mxu0
  %v2349 = vpop.f32.mrb[0].mxu0
  %v2350 = vadd.f32 0.0, %v2349
  %v2351 = vpop.f32.mrb[0].mxu0
  %2352 = vmatprep.mubr.bf16.mxu0 0
  %2353 = vmatmul.mubr.bf16.gmra.mrb[0].mxu0 %v770
  %v2354 = vpop.f32.mrb[0].mxu0
  %v2355 = vadd.f32 0.0, %v2354
  %v2356 = vpop.f32.mrb[0].mxu0
  %v2357 = vpop.f32.mrb[0].mxu0
  %v2358 = vadd.f32 0.0, %v2357
  %v2359 = vpop.f32.mrb[0].mxu0
  %2360 = vmatprep.mubr.bf16.mxu0 0
  %2361 = vmatmul.mubr.bf16.gmra.mrb[0].mxu0 %v773
  %v2362 = vpop.f32.mrb[0].mxu0
  %v2363 = vadd.f32 0.0, %v2362
  %v2364 = vpop.f32.mrb[0].mxu0
  %v2365 = vpop.f32.mrb[0].mxu0
  %v2366 = vadd.f32 0.0, %v2365
  %v2367 = vpop.f32.mrb[0].mxu0
  %2368 = vdwg.mxu0
  %v2369 = vadd.f32 %v2296, %v2339
  %v2370 = vadd.f32 %v2297, %v2342
  %v2371 = vadd.f32 %v2298, %v2347
  %v2372 = vadd.f32 %v2299, %v2350
  %v2373 = vadd.f32 %v2300, %v2355
  %v2374 = vadd.f32 %v2301, %v2358
  %v2375 = vadd.f32 %v2302, %v2363
  %v2376 = vadd.f32 %v2303, %v2366
  %v2377 = vmul.f32 %v2369, 0.5
  %v2378 = vmul.f32 %v2370, 0.5
  %v2379 = vtanh.pop %v2377
  %v2380 = vtanh.pop %v2378
  %v2381 = vmul.f32 %v2379, 0.5
  %v2382 = vmul.f32 %v2380, 0.5
  %v2383 = vadd.f32 %v2381, 0.5
  %v2384 = vadd.f32 %v2382, 0.5
  %v2385 = vmul.f32 %v2371, 0.5
  %v2386 = vmul.f32 %v2372, 0.5
  %v2387 = vtanh.pop %v2385
  %v2388 = vtanh.pop %v2386
  %v2389 = vmul.f32 %v2387, 0.5
  %v2390 = vmul.f32 %v2388, 0.5
  %v2391 = vadd.f32 %v2389, 0.5
  %v2392 = vadd.f32 %v2390, 0.5
  %v2393 = vtanh.pop %v2373
  %v2394 = vtanh.pop %v2374
  %v2395 = vmul.f32 %v2375, 0.5
  %v2396 = vmul.f32 %v2376, 0.5
  %v2397 = vtanh.pop %v2395
  %v2398 = vtanh.pop %v2396
  %v2399 = vmul.f32 %v2397, 0.5
  %v2400 = vmul.f32 %v2398, 0.5
  %v2401 = vadd.f32 %v2399, 0.5
  %v2402 = vadd.f32 %v2400, 0.5
  %v2403 = vmul.f32 %v2391, %v2114
  %v2404 = vmul.f32 %v2392, %v2115
  %v2405 = vmul.f32 %v2383, %v2393
  %v2406 = vmul.f32 %v2384, %v2394
  %v2407 = vadd.f32 %v2403, %v2405
  %v2408 = vadd.f32 %v2404, %v2406
  %v2409 = vtanh.pop %v2407
  %v2410 = vtanh.pop %v2408
  %v2411 = vmul.f32 %v2401, %v2409
  %v2412 = vmul.f32 %v2402, %v2410
  %v2413 = vpack.c.bf16 %v2412, %v2411
  %2414 = vmatprep.subr.bf16.mxu0 0
  %2415 = vmatpush1.bf16.msra.mxu0 %v2413
  %2416 = vmatprep.subr.bf16.mxu0 0
  %2417 = vmatpush1.bf16.msra.mxu0 0
  %2418 = vmatprep.subr.bf16.mxu0 0
  %2419 = vmatpush1.bf16.msra.mxu0 0
  %2420 = vmatprep.subr.bf16.mxu0 0
  %2421 = vmatpush1.bf16.msra.mxu0 0
  %2422 = vmatprep.subr.bf16.mxu0 0
  %2423 = vmatpush1.bf16.msra.mxu0 0
  %2424 = vmatprep.subr.bf16.mxu0 0
  %2425 = vmatpush1.bf16.msra.mxu0 0
  %2426 = vmatprep.subr.bf16.mxu0 0
  %2427 = vmatpush1.bf16.msra.mxu0 0
  %2428 = vmatprep.subr.bf16.mxu0 0
  %2429 = vmatpush1.bf16.msra.mxu0 0
  %2430 = vmatprep.subr.bf16.mxu0 0
  %2431 = vmatpush1.bf16.msra.mxu0 0
  %2432 = vmatprep.subr.bf16.mxu0 0
  %2433 = vmatpush1.bf16.msra.mxu0 0
  %2434 = vmatprep.subr.bf16.mxu0 0
  %2435 = vmatpush1.bf16.msra.mxu0 0
  %2436 = vmatprep.subr.bf16.mxu0 0
  %2437 = vmatpush1.bf16.msra.mxu0 0
  %2438 = vmatprep.subr.bf16.mxu0 0
  %2439 = vmatpush1.bf16.msra.mxu0 0
  %2440 = vmatprep.subr.bf16.mxu0 0
  %2441 = vmatpush1.bf16.msra.mxu0 0
  %2442 = vmatprep.subr.bf16.mxu0 0
  %2443 = vmatpush1.bf16.msra.mxu0 0
  %2444 = vmatprep.subr.bf16.mxu0 0
  %2445 = vmatpush1.bf16.msra.mxu0 0
  %2446 = vmatprep.mubr.bf16.mxu0 0
  %2447 = vmatmul.mubr.bf16.gmra.mrb[0].mxu0 %v906
  %v2448 = vpop.f32.mrb[0].mxu0
  %v2449 = vadd.f32 0.0, %v2448
  %v2450 = vpop.f32.mrb[0].mxu0
  %v2451 = vpop.f32.mrb[0].mxu0
  %v2452 = vadd.f32 0.0, %v2451
  %v2453 = vpop.f32.mrb[0].mxu0
  %2454 = vmatprep.mubr.bf16.mxu0 0
  %2455 = vmatmul.mubr.bf16.gmra.mrb[0].mxu0 %v909
  %v2456 = vpop.f32.mrb[0].mxu0
  %v2457 = vadd.f32 0.0, %v2456
  %v2458 = vpop.f32.mrb[0].mxu0
  %v2459 = vpop.f32.mrb[0].mxu0
  %v2460 = vadd.f32 0.0, %v2459
  %v2461 = vpop.f32.mrb[0].mxu0
  %2462 = vmatprep.mubr.bf16.mxu0 0
  %2463 = vmatmul.mubr.bf16.gmra.mrb[0].mxu0 %v912
  %v2464 = vpop.f32.mrb[0].mxu0
  %v2465 = vadd.f32 0.0, %v2464
  %v2466 = vpop.f32.mrb[0].mxu0
  %v2467 = vpop.f32.mrb[0].mxu0
  %v2468 = vadd.f32 0.0, %v2467
  %v2469 = vpop.f32.mrb[0].mxu0
  %2470 = vmatprep.mubr.bf16.mxu0 0
  %2471 = vmatmul.mubr.bf16.gmra.mrb[0].mxu0 %v915
  %v2472 = vpop.f32.mrb[0].mxu0
  %v2473 = vadd.f32 0.0, %v2472
  %v2474 = vpop.f32.mrb[0].mxu0
  %v2475 = vpop.f32.mrb[0].mxu0
  %v2476 = vadd.f32 0.0, %v2475
  %v2477 = vpop.f32.mrb[0].mxu0
  %2478 = vdwg.mxu0
  %2479 = vmatprep.subr.bf16.mxu0 0
  %2480 = vmatpush1.bf16.msra.mxu0 %v2295
  %2481 = vmatprep.subr.bf16.mxu0 0
  %2482 = vmatpush1.bf16.msra.mxu0 0
  %2483 = vmatprep.subr.bf16.mxu0 0
  %2484 = vmatpush1.bf16.msra.mxu0 0
  %2485 = vmatprep.subr.bf16.mxu0 0
  %2486 = vmatpush1.bf16.msra.mxu0 0
  %2487 = vmatprep.subr.bf16.mxu0 0
  %2488 = vmatpush1.bf16.msra.mxu0 0
  %2489 = vmatprep.subr.bf16.mxu0 0
  %2490 = vmatpush1.bf16.msra.mxu0 0
  %2491 = vmatprep.subr.bf16.mxu0 0
  %2492 = vmatpush1.bf16.msra.mxu0 0
  %2493 = vmatprep.subr.bf16.mxu0 0
  %2494 = vmatpush1.bf16.msra.mxu0 0
  %2495 = vmatprep.subr.bf16.mxu0 0
  %2496 = vmatpush1.bf16.msra.mxu0 0
  %2497 = vmatprep.subr.bf16.mxu0 0
  %2498 = vmatpush1.bf16.msra.mxu0 0
  %2499 = vmatprep.subr.bf16.mxu0 0
  %2500 = vmatpush1.bf16.msra.mxu0 0
  %2501 = vmatprep.subr.bf16.mxu0 0
  %2502 = vmatpush1.bf16.msra.mxu0 0
  %2503 = vmatprep.subr.bf16.mxu0 0
  %2504 = vmatpush1.bf16.msra.mxu0 0
  %2505 = vmatprep.subr.bf16.mxu0 0
  %2506 = vmatpush1.bf16.msra.mxu0 0
  %2507 = vmatprep.subr.bf16.mxu0 0
  %2508 = vmatpush1.bf16.msra.mxu0 0
  %2509 = vmatprep.subr.bf16.mxu0 0
  %2510 = vmatpush1.bf16.msra.mxu0 0
  %2511 = vmatprep.mubr.bf16.mxu0 0
  %2512 = vmatmul.mubr.bf16.gmra.mrb[0].mxu0 %v1003
  %v2513 = vpop.f32.mrb[0].mxu0
  %v2514 = vadd.f32 %v2449, %v2513
  %v2515 = vpop.f32.mrb[0].mxu0
  %v2516 = vpop.f32.mrb[0].mxu0
  %v2517 = vadd.f32 %v2452, %v2516
  %v2518 = vpop.f32.mrb[0].mxu0
  %2519 = vmatprep.mubr.bf16.mxu0 0
  %2520 = vmatmul.mubr.bf16.gmra.mrb[0].mxu0 %v1006
  %v2521 = vpop.f32.mrb[0].mxu0
  %v2522 = vadd.f32 %v2457, %v2521
  %v2523 = vpop.f32.mrb[0].mxu0
  %v2524 = vpop.f32.mrb[0].mxu0
  %v2525 = vadd.f32 %v2460, %v2524
  %v2526 = vpop.f32.mrb[0].mxu0
  %2527 = vmatprep.mubr.bf16.mxu0 0
  %2528 = vmatmul.mubr.bf16.gmra.mrb[0].mxu0 %v1009
  %v2529 = vpop.f32.mrb[0].mxu0
  %v2530 = vadd.f32 %v2465, %v2529
  %v2531 = vpop.f32.mrb[0].mxu0
  %v2532 = vpop.f32.mrb[0].mxu0
  %v2533 = vadd.f32 %v2468, %v2532
  %v2534 = vpop.f32.mrb[0].mxu0
  %2535 = vmatprep.mubr.bf16.mxu0 0
  %2536 = vmatmul.mubr.bf16.gmra.mrb[0].mxu0 %v1012
  %v2537 = vpop.f32.mrb[0].mxu0
  %v2538 = vadd.f32 %v2473, %v2537
  %v2539 = vpop.f32.mrb[0].mxu0
  %v2540 = vpop.f32.mrb[0].mxu0
  %v2541 = vadd.f32 %v2476, %v2540
  %v2542 = vpop.f32.mrb[0].mxu0
  %2543 = vdwg.mxu0
  %v2544 = vadd.f32 %v2514, %v116
  %v2545 = vadd.f32 %v2517, %v121
  %v2546 = vadd.f32 %v2522, %v126
  %v2547 = vadd.f32 %v2525, %v131
  %v2548 = vadd.f32 %v2530, %v136
  %v2549 = vadd.f32 %v2533, %v141
  %v2550 = vadd.f32 %v2538, %v146
  %v2551 = vadd.f32 %v2541, %v151
  %v2552 = vmul.f32 %v2544, 0.5
  %v2553 = vmul.f32 %v2545, 0.5
  %v2554 = vtanh.pop %v2552
  %v2555 = vtanh.pop %v2553
  %v2556 = vmul.f32 %v2554, 0.5
  %v2557 = vmul.f32 %v2555, 0.5
  %v2558 = vadd.f32 %v2556, 0.5
  %v2559 = vadd.f32 %v2557, 0.5
  %v2560 = vmul.f32 %v2546, 0.5
  %v2561 = vmul.f32 %v2547, 0.5
  %v2562 = vtanh.pop %v2560
  %v2563 = vtanh.pop %v2561
  %v2564 = vmul.f32 %v2562, 0.5
  %v2565 = vmul.f32 %v2563, 0.5
  %v2566 = vadd.f32 %v2564, 0.5
  %v2567 = vadd.f32 %v2565, 0.5
  %v2568 = vtanh.pop %v2548
  %v2569 = vtanh.pop %v2549
  %v2570 = vmul.f32 %v2550, 0.5
  %v2571 = vmul.f32 %v2551, 0.5
  %v2572 = vtanh.pop %v2570
  %v2573 = vtanh.pop %v2571
  %v2574 = vmul.f32 %v2572, 0.5
  %v2575 = vmul.f32 %v2573, 0.5
  %v2576 = vadd.f32 %v2574, 0.5
  %v2577 = vadd.f32 %v2575, 0.5
  %v2578 = vmul.f32 %v2566, %v2289
  %v2579 = vmul.f32 %v2567, %v2290
  %v2580 = vmul.f32 %v2558, %v2568
  %v2581 = vmul.f32 %v2559, %v2569
  %v2582 = vadd.f32 %v2578, %v2580
  %v2583 = vadd.f32 %v2579, %v2581
  %v2584 = vtanh.pop %v2582
  %v2585 = vtanh.pop %v2583
  %v2586 = vmul.f32 %v2576, %v2584
  %v2587 = vmul.f32 %v2577, %v2585
  %v2588 = vpack.c.bf16 %v2587, %v2586
  %v2589 = vld [vmem:[%s708] sm:$0xff]
  %v2590 = vld [vmem:[%s708 + $0x8] sm:$0xff]
  %v2591 = vld [vmem:[%s708 + $0x10] sm:$0xff]
  %v2592 = vld [vmem:[%s708 + $0x18] sm:$0xff]
  %v2593 = vld [vmem:[%s708 + $0x20] sm:$0xff]
  %v2594 = vld [vmem:[%s708 + $0x28] sm:$0xff]
  %v2595 = vld [vmem:[%s708 + $0x30] sm:$0xff]
  %v2596 = vld [vmem:[%s708 + $0x38] sm:$0xff]
  %2597 = vmatprep.subr.bf16.mxu0 0
  %2598 = vmatpush1.bf16.msra.mxu0 %v2413
  %2599 = vmatprep.subr.bf16.mxu0 0
  %2600 = vmatpush1.bf16.msra.mxu0 0
  %2601 = vmatprep.subr.bf16.mxu0 0
  %2602 = vmatpush1.bf16.msra.mxu0 0
  %2603 = vmatprep.subr.bf16.mxu0 0
  %2604 = vmatpush1.bf16.msra.mxu0 0
  %2605 = vmatprep.subr.bf16.mxu0 0
  %2606 = vmatpush1.bf16.msra.mxu0 0
  %2607 = vmatprep.subr.bf16.mxu0 0
  %2608 = vmatpush1.bf16.msra.mxu0 0
  %2609 = vmatprep.subr.bf16.mxu0 0
  %2610 = vmatpush1.bf16.msra.mxu0 0
  %2611 = vmatprep.subr.bf16.mxu0 0
  %2612 = vmatpush1.bf16.msra.mxu0 0
  %2613 = vmatprep.subr.bf16.mxu0 0
  %2614 = vmatpush1.bf16.msra.mxu0 0
  %2615 = vmatprep.subr.bf16.mxu0 0
  %2616 = vmatpush1.bf16.msra.mxu0 0
  %2617 = vmatprep.subr.bf16.mxu0 0
  %2618 = vmatpush1.bf16.msra.mxu0 0
  %2619 = vmatprep.subr.bf16.mxu0 0
  %2620 = vmatpush1.bf16.msra.mxu0 0
  %2621 = vmatprep.subr.bf16.mxu0 0
  %2622 = vmatpush1.bf16.msra.mxu0 0
  %2623 = vmatprep.subr.bf16.mxu0 0
  %2624 = vmatpush1.bf16.msra.mxu0 0
  %2625 = vmatprep.subr.bf16.mxu0 0
  %2626 = vmatpush1.bf16.msra.mxu0 0
  %2627 = vmatprep.subr.bf16.mxu0 0
  %2628 = vmatpush1.bf16.msra.mxu0 0
  %2629 = vmatprep.mubr.bf16.mxu0 0
  %2630 = vmatmul.mubr.bf16.gmra.mrb[0].mxu0 %v764
  %v2631 = vpop.f32.mrb[0].mxu0
  %v2632 = vadd.f32 0.0, %v2631
  %v2633 = vpop.f32.mrb[0].mxu0
  %v2634 = vpop.f32.mrb[0].mxu0
  %v2635 = vadd.f32 0.0, %v2634
  %v2636 = vpop.f32.mrb[0].mxu0
  %2637 = vmatprep.mubr.bf16.mxu0 0
  %2638 = vmatmul.mubr.bf16.gmra.mrb[0].mxu0 %v767
  %v2639 = vpop.f32.mrb[0].mxu0
  %v2640 = vadd.f32 0.0, %v2639
  %v2641 = vpop.f32.mrb[0].mxu0
  %v2642 = vpop.f32.mrb[0].mxu0
  %v2643 = vadd.f32 0.0, %v2642
  %v2644 = vpop.f32.mrb[0].mxu0
  %2645 = vmatprep.mubr.bf16.mxu0 0
  %2646 = vmatmul.mubr.bf16.gmra.mrb[0].mxu0 %v770
  %v2647 = vpop.f32.mrb[0].mxu0
  %v2648 = vadd.f32 0.0, %v2647
  %v2649 = vpop.f32.mrb[0].mxu0
  %v2650 = vpop.f32.mrb[0].mxu0
  %v2651 = vadd.f32 0.0, %v2650
  %v2652 = vpop.f32.mrb[0].mxu0
  %2653 = vmatprep.mubr.bf16.mxu0 0
  %2654 = vmatmul.mubr.bf16.gmra.mrb[0].mxu0 %v773
  %v2655 = vpop.f32.mrb[0].mxu0
  %v2656 = vadd.f32 0.0, %v2655
  %v2657 = vpop.f32.mrb[0].mxu0
  %v2658 = vpop.f32.mrb[0].mxu0
  %v2659 = vadd.f32 0.0, %v2658
  %v2660 = vpop.f32.mrb[0].mxu0
  %2661 = vdwg.mxu0
  %v2662 = vadd.f32 %v2589, %v2632
  %v2663 = vadd.f32 %v2590, %v2635
  %v2664 = vadd.f32 %v2591, %v2640
  %v2665 = vadd.f32 %v2592, %v2643
  %v2666 = vadd.f32 %v2593, %v2648
  %v2667 = vadd.f32 %v2594, %v2651
  %v2668 = vadd.f32 %v2595, %v2656
  %v2669 = vadd.f32 %v2596, %v2659
  %v2670 = vmul.f32 %v2662, 0.5
  %v2671 = vmul.f32 %v2663, 0.5
  %v2672 = vtanh.pop %v2670
  %v2673 = vtanh.pop %v2671
  %v2674 = vmul.f32 %v2672, 0.5
  %v2675 = vmul.f32 %v2673, 0.5
  %v2676 = vadd.f32 %v2674, 0.5
  %v2677 = vadd.f32 %v2675, 0.5
  %v2678 = vmul.f32 %v2664, 0.5
  %v2679 = vmul.f32 %v2665, 0.5
  %v2680 = vtanh.pop %v2678
  %v2681 = vtanh.pop %v2679
  %v2682 = vmul.f32 %v2680, 0.5
  %v2683 = vmul.f32 %v2681, 0.5
  %v2684 = vadd.f32 %v2682, 0.5
  %v2685 = vadd.f32 %v2683, 0.5
  %v2686 = vtanh.pop %v2666
  %v2687 = vtanh.pop %v2667
  %v2688 = vmul.f32 %v2668, 0.5
  %v2689 = vmul.f32 %v2669, 0.5
  %v2690 = vtanh.pop %v2688
  %v2691 = vtanh.pop %v2689
  %v2692 = vmul.f32 %v2690, 0.5
  %v2693 = vmul.f32 %v2691, 0.5
  %v2694 = vadd.f32 %v2692, 0.5
  %v2695 = vadd.f32 %v2693, 0.5
  %v2696 = vmul.f32 %v2684, %v2407
  %v2697 = vmul.f32 %v2685, %v2408
  %v2698 = vmul.f32 %v2676, %v2686
  %v2699 = vmul.f32 %v2677, %v2687
  %v2700 = vadd.f32 %v2696, %v2698
  %v2701 = vadd.f32 %v2697, %v2699
  %v2702 = vtanh.pop %v2700
  %v2703 = vtanh.pop %v2701
  %v2704 = vmul.f32 %v2694, %v2702
  %v2705 = vmul.f32 %v2695, %v2703
  %v2706 = vpack.c.bf16 %v2705, %v2704
  %2707 = vmatprep.subr.bf16.mxu0 0
  %2708 = vmatpush1.bf16.msra.mxu0 %v2706
  %2709 = vmatprep.subr.bf16.mxu0 0
  %2710 = vmatpush1.bf16.msra.mxu0 0
  %2711 = vmatprep.subr.bf16.mxu0 0
  %2712 = vmatpush1.bf16.msra.mxu0 0
  %2713 = vmatprep.subr.bf16.mxu0 0
  %2714 = vmatpush1.bf16.msra.mxu0 0
  %2715 = vmatprep.subr.bf16.mxu0 0
  %2716 = vmatpush1.bf16.msra.mxu0 0
  %2717 = vmatprep.subr.bf16.mxu0 0
  %2718 = vmatpush1.bf16.msra.mxu0 0
  %2719 = vmatprep.subr.bf16.mxu0 0
  %2720 = vmatpush1.bf16.msra.mxu0 0
  %2721 = vmatprep.subr.bf16.mxu0 0
  %2722 = vmatpush1.bf16.msra.mxu0 0
  %2723 = vmatprep.subr.bf16.mxu0 0
  %2724 = vmatpush1.bf16.msra.mxu0 0
  %2725 = vmatprep.subr.bf16.mxu0 0
  %2726 = vmatpush1.bf16.msra.mxu0 0
  %2727 = vmatprep.subr.bf16.mxu0 0
  %2728 = vmatpush1.bf16.msra.mxu0 0
  %2729 = vmatprep.subr.bf16.mxu0 0
  %2730 = vmatpush1.bf16.msra.mxu0 0
  %2731 = vmatprep.subr.bf16.mxu0 0
  %2732 = vmatpush1.bf16.msra.mxu0 0
  %2733 = vmatprep.subr.bf16.mxu0 0
  %2734 = vmatpush1.bf16.msra.mxu0 0
  %2735 = vmatprep.subr.bf16.mxu0 0
  %2736 = vmatpush1.bf16.msra.mxu0 0
  %2737 = vmatprep.subr.bf16.mxu0 0
  %2738 = vmatpush1.bf16.msra.mxu0 0
  %2739 = vmatprep.mubr.bf16.mxu0 0
  %2740 = vmatmul.mubr.bf16.gmra.mrb[0].mxu0 %v906
  %v2741 = vpop.f32.mrb[0].mxu0
  %v2742 = vadd.f32 0.0, %v2741
  %v2743 = vpop.f32.mrb[0].mxu0
  %v2744 = vpop.f32.mrb[0].mxu0
  %v2745 = vadd.f32 0.0, %v2744
  %v2746 = vpop.f32.mrb[0].mxu0
  %2747 = vmatprep.mubr.bf16.mxu0 0
  %2748 = vmatmul.mubr.bf16.gmra.mrb[0].mxu0 %v909
  %v2749 = vpop.f32.mrb[0].mxu0
  %v2750 = vadd.f32 0.0, %v2749
  %v2751 = vpop.f32.mrb[0].mxu0
  %v2752 = vpop.f32.mrb[0].mxu0
  %v2753 = vadd.f32 0.0, %v2752
  %v2754 = vpop.f32.mrb[0].mxu0
  %2755 = vmatprep.mubr.bf16.mxu0 0
  %2756 = vmatmul.mubr.bf16.gmra.mrb[0].mxu0 %v912
  %v2757 = vpop.f32.mrb[0].mxu0
  %v2758 = vadd.f32 0.0, %v2757
  %v2759 = vpop.f32.mrb[0].mxu0
  %v2760 = vpop.f32.mrb[0].mxu0
  %v2761 = vadd.f32 0.0, %v2760
  %v2762 = vpop.f32.mrb[0].mxu0
  %2763 = vmatprep.mubr.bf16.mxu0 0
  %2764 = vmatmul.mubr.bf16.gmra.mrb[0].mxu0 %v915
  %v2765 = vpop.f32.mrb[0].mxu0
  %v2766 = vadd.f32 0.0, %v2765
  %v2767 = vpop.f32.mrb[0].mxu0
  %v2768 = vpop.f32.mrb[0].mxu0
  %v2769 = vadd.f32 0.0, %v2768
  %v2770 = vpop.f32.mrb[0].mxu0
  %2771 = vdwg.mxu0
  %2772 = vmatprep.subr.bf16.mxu0 0
  %2773 = vmatpush1.bf16.msra.mxu0 %v2588
  %2774 = vmatprep.subr.bf16.mxu0 0
  %2775 = vmatpush1.bf16.msra.mxu0 0
  %2776 = vmatprep.subr.bf16.mxu0 0
  %2777 = vmatpush1.bf16.msra.mxu0 0
  %2778 = vmatprep.subr.bf16.mxu0 0
  %2779 = vmatpush1.bf16.msra.mxu0 0
  %2780 = vmatprep.subr.bf16.mxu0 0
  %2781 = vmatpush1.bf16.msra.mxu0 0
  %2782 = vmatprep.subr.bf16.mxu0 0
  %2783 = vmatpush1.bf16.msra.mxu0 0
  %2784 = vmatprep.subr.bf16.mxu0 0
  %2785 = vmatpush1.bf16.msra.mxu0 0
  %2786 = vmatprep.subr.bf16.mxu0 0
  %2787 = vmatpush1.bf16.msra.mxu0 0
  %2788 = vmatprep.subr.bf16.mxu0 0
  %2789 = vmatpush1.bf16.msra.mxu0 0
  %2790 = vmatprep.subr.bf16.mxu0 0
  %2791 = vmatpush1.bf16.msra.mxu0 0
  %2792 = vmatprep.subr.bf16.mxu0 0
  %2793 = vmatpush1.bf16.msra.mxu0 0
  %2794 = vmatprep.subr.bf16.mxu0 0
  %2795 = vmatpush1.bf16.msra.mxu0 0
  %2796 = vmatprep.subr.bf16.mxu0 0
  %2797 = vmatpush1.bf16.msra.mxu0 0
  %2798 = vmatprep.subr.bf16.mxu0 0
  %2799 = vmatpush1.bf16.msra.mxu0 0
  %2800 = vmatprep.subr.bf16.mxu0 0
  %2801 = vmatpush1.bf16.msra.mxu0 0
  %2802 = vmatprep.subr.bf16.mxu0 0
  %2803 = vmatpush1.bf16.msra.mxu0 0
  %2804 = vmatprep.mubr.bf16.mxu0 0
  %2805 = vmatmul.mubr.bf16.gmra.mrb[0].mxu0 %v1003
  %v2806 = vpop.f32.mrb[0].mxu0
  %v2807 = vadd.f32 %v2742, %v2806
  %v2808 = vpop.f32.mrb[0].mxu0
  %v2809 = vpop.f32.mrb[0].mxu0
  %v2810 = vadd.f32 %v2745, %v2809
  %v2811 = vpop.f32.mrb[0].mxu0
  %2812 = vmatprep.mubr.bf16.mxu0 0
  %2813 = vmatmul.mubr.bf16.gmra.mrb[0].mxu0 %v1006
  %v2814 = vpop.f32.mrb[0].mxu0
  %v2815 = vadd.f32 %v2750, %v2814
  %v2816 = vpop.f32.mrb[0].mxu0
  %v2817 = vpop.f32.mrb[0].mxu0
  %v2818 = vadd.f32 %v2753, %v2817
  %v2819 = vpop.f32.mrb[0].mxu0
  %2820 = vmatprep.mubr.bf16.mxu0 0
  %2821 = vmatmul.mubr.bf16.gmra.mrb[0].mxu0 %v1009
  %v2822 = vpop.f32.mrb[0].mxu0
  %v2823 = vadd.f32 %v2758, %v2822
  %v2824 = vpop.f32.mrb[0].mxu0
  %v2825 = vpop.f32.mrb[0].mxu0
  %v2826 = vadd.f32 %v2761, %v2825
  %v2827 = vpop.f32.mrb[0].mxu0
  %2828 = vmatprep.mubr.bf16.mxu0 0
  %2829 = vmatmul.mubr.bf16.gmra.mrb[0].mxu0 %v1012
  %v2830 = vpop.f32.mrb[0].mxu0
  %v2831 = vadd.f32 %v2766, %v2830
  %v2832 = vpop.f32.mrb[0].mxu0
  %v2833 = vpop.f32.mrb[0].mxu0
  %v2834 = vadd.f32 %v2769, %v2833
  %v2835 = vpop.f32.mrb[0].mxu0
  %2836 = vdwg.mxu0
  %v2837 = vadd.f32 %v2807, %v116
  %v2838 = vadd.f32 %v2810, %v121
  %v2839 = vadd.f32 %v2815, %v126
  %v2840 = vadd.f32 %v2818, %v131
  %v2841 = vadd.f32 %v2823, %v136
  %v2842 = vadd.f32 %v2826, %v141
  %v2843 = vadd.f32 %v2831, %v146
  %v2844 = vadd.f32 %v2834, %v151
  %v2845 = vmul.f32 %v2837, 0.5
  %v2846 = vmul.f32 %v2838, 0.5
  %v2847 = vtanh.pop %v2845
  %v2848 = vtanh.pop %v2846
  %v2849 = vmul.f32 %v2847, 0.5
  %v2850 = vmul.f32 %v2848, 0.5
  %v2851 = vadd.f32 %v2849, 0.5
  %v2852 = vadd.f32 %v2850, 0.5
  %v2853 = vmul.f32 %v2839, 0.5
  %v2854 = vmul.f32 %v2840, 0.5
  %v2855 = vtanh.pop %v2853
  %v2856 = vtanh.pop %v2854
  %v2857 = vmul.f32 %v2855, 0.5
  %v2858 = vmul.f32 %v2856, 0.5
  %v2859 = vadd.f32 %v2857, 0.5
  %v2860 = vadd.f32 %v2858, 0.5
  %v2861 = vtanh.pop %v2841
  %v2862 = vtanh.pop %v2842
  %v2863 = vmul.f32 %v2843, 0.5
  %v2864 = vmul.f32 %v2844, 0.5
  %v2865 = vtanh.pop %v2863
  %v2866 = vtanh.pop %v2864
  %v2867 = vmul.f32 %v2865, 0.5
  %v2868 = vmul.f32 %v2866, 0.5
  %v2869 = vadd.f32 %v2867, 0.5
  %v2870 = vadd.f32 %v2868, 0.5
  %v2871 = vmul.f32 %v2859, %v2582
  %v2872 = vmul.f32 %v2860, %v2583
  %v2873 = vmul.f32 %v2851, %v2861
  %v2874 = vmul.f32 %v2852, %v2862
  %v2875 = vadd.f32 %v2871, %v2873
  %v2876 = vadd.f32 %v2872, %v2874
  %v2877 = vtanh.pop %v2875
  %v2878 = vtanh.pop %v2876
  %v2879 = vmul.f32 %v2869, %v2877
  %v2880 = vmul.f32 %v2870, %v2878
  %v2881 = vpack.c.bf16 %v2880, %v2879
  %v2882 = vld [vmem:[%s725] sm:$0xff]
  %v2883 = vld [vmem:[%s725 + $0x8] sm:$0xff]
  %v2884 = vld [vmem:[%s725 + $0x10] sm:$0xff]
  %v2885 = vld [vmem:[%s725 + $0x18] sm:$0xff]
  %v2886 = vld [vmem:[%s725 + $0x20] sm:$0xff]
  %v2887 = vld [vmem:[%s725 + $0x28] sm:$0xff]
  %v2888 = vld [vmem:[%s725 + $0x30] sm:$0xff]
  %v2889 = vld [vmem:[%s725 + $0x38] sm:$0xff]
  %2890 = vmatprep.subr.bf16.mxu0 0
  %2891 = vmatpush1.bf16.msra.mxu0 %v2706
  %2892 = vmatprep.subr.bf16.mxu0 0
  %2893 = vmatpush1.bf16.msra.mxu0 0
  %2894 = vmatprep.subr.bf16.mxu0 0
  %2895 = vmatpush1.bf16.msra.mxu0 0
  %2896 = vmatprep.subr.bf16.mxu0 0
  %2897 = vmatpush1.bf16.msra.mxu0 0
  %2898 = vmatprep.subr.bf16.mxu0 0
  %2899 = vmatpush1.bf16.msra.mxu0 0
  %2900 = vmatprep.subr.bf16.mxu0 0
  %2901 = vmatpush1.bf16.msra.mxu0 0
  %2902 = vmatprep.subr.bf16.mxu0 0
  %2903 = vmatpush1.bf16.msra.mxu0 0
  %2904 = vmatprep.subr.bf16.mxu0 0
  %2905 = vmatpush1.bf16.msra.mxu0 0
  %2906 = vmatprep.subr.bf16.mxu0 0
  %2907 = vmatpush1.bf16.msra.mxu0 0
  %2908 = vmatprep.subr.bf16.mxu0 0
  %2909 = vmatpush1.bf16.msra.mxu0 0
  %2910 = vmatprep.subr.bf16.mxu0 0
  %2911 = vmatpush1.bf16.msra.mxu0 0
  %2912 = vmatprep.subr.bf16.mxu0 0
  %2913 = vmatpush1.bf16.msra.mxu0 0
  %2914 = vmatprep.subr.bf16.mxu0 0
  %2915 = vmatpush1.bf16.msra.mxu0 0
  %2916 = vmatprep.subr.bf16.mxu0 0
  %2917 = vmatpush1.bf16.msra.mxu0 0
  %2918 = vmatprep.subr.bf16.mxu0 0
  %2919 = vmatpush1.bf16.msra.mxu0 0
  %2920 = vmatprep.subr.bf16.mxu0 0
  %2921 = vmatpush1.bf16.msra.mxu0 0
  %2922 = vmatprep.mubr.bf16.mxu0 0
  %2923 = vmatmul.mubr.bf16.gmra.mrb[0].mxu0 %v764
  %v2924 = vpop.f32.mrb[0].mxu0
  %v2925 = vadd.f32 0.0, %v2924
  %v2926 = vpop.f32.mrb[0].mxu0
  %v2927 = vpop.f32.mrb[0].mxu0
  %v2928 = vadd.f32 0.0, %v2927
  %v2929 = vpop.f32.mrb[0].mxu0
  %2930 = vmatprep.mubr.bf16.mxu0 0
  %2931 = vmatmul.mubr.bf16.gmra.mrb[0].mxu0 %v767
  %v2932 = vpop.f32.mrb[0].mxu0
  %v2933 = vadd.f32 0.0, %v2932
  %v2934 = vpop.f32.mrb[0].mxu0
  %v2935 = vpop.f32.mrb[0].mxu0
  %v2936 = vadd.f32 0.0, %v2935
  %v2937 = vpop.f32.mrb[0].mxu0
  %2938 = vmatprep.mubr.bf16.mxu0 0
  %2939 = vmatmul.mubr.bf16.gmra.mrb[0].mxu0 %v770
  %v2940 = vpop.f32.mrb[0].mxu0
  %v2941 = vadd.f32 0.0, %v2940
  %v2942 = vpop.f32.mrb[0].mxu0
  %v2943 = vpop.f32.mrb[0].mxu0
  %v2944 = vadd.f32 0.0, %v2943
  %v2945 = vpop.f32.mrb[0].mxu0
  %2946 = vmatprep.mubr.bf16.mxu0 0
  %2947 = vmatmul.mubr.bf16.gmra.mrb[0].mxu0 %v773
  %v2948 = vpop.f32.mrb[0].mxu0
  %v2949 = vadd.f32 0.0, %v2948
  %v2950 = vpop.f32.mrb[0].mxu0
  %v2951 = vpop.f32.mrb[0].mxu0
  %v2952 = vadd.f32 0.0, %v2951
  %v2953 = vpop.f32.mrb[0].mxu0
  %2954 = vdwg.mxu0
  %v2955 = vadd.f32 %v2882, %v2925
  %v2956 = vadd.f32 %v2883, %v2928
  %v2957 = vadd.f32 %v2884, %v2933
  %v2958 = vadd.f32 %v2885, %v2936
  %v2959 = vadd.f32 %v2886, %v2941
  %v2960 = vadd.f32 %v2887, %v2944
  %v2961 = vadd.f32 %v2888, %v2949
  %v2962 = vadd.f32 %v2889, %v2952
  %v2963 = vmul.f32 %v2955, 0.5
  %v2964 = vmul.f32 %v2956, 0.5
  %v2965 = vtanh.pop %v2963
  %v2966 = vtanh.pop %v2964
  %v2967 = vmul.f32 %v2965, 0.5
  %v2968 = vmul.f32 %v2966, 0.5
  %v2969 = vadd.f32 %v2967, 0.5
  %v2970 = vadd.f32 %v2968, 0.5
  %v2971 = vmul.f32 %v2957, 0.5
  %v2972 = vmul.f32 %v2958, 0.5
  %v2973 = vtanh.pop %v2971
  %v2974 = vtanh.pop %v2972
  %v2975 = vmul.f32 %v2973, 0.5
  %v2976 = vmul.f32 %v2974, 0.5
  %v2977 = vadd.f32 %v2975, 0.5
  %v2978 = vadd.f32 %v2976, 0.5
  %v2979 = vtanh.pop %v2959
  %v2980 = vtanh.pop %v2960
  %v2981 = vmul.f32 %v2961, 0.5
  %v2982 = vmul.f32 %v2962, 0.5
  %v2983 = vtanh.pop %v2981
  %v2984 = vtanh.pop %v2982
  %v2985 = vmul.f32 %v2983, 0.5
  %v2986 = vmul.f32 %v2984, 0.5
  %v2987 = vadd.f32 %v2985, 0.5
  %v2988 = vadd.f32 %v2986, 0.5
  %v2989 = vmul.f32 %v2977, %v2700
  %v2990 = vmul.f32 %v2978, %v2701
  %v2991 = vmul.f32 %v2969, %v2979
  %v2992 = vmul.f32 %v2970, %v2980
  %v2993 = vadd.f32 %v2989, %v2991
  %v2994 = vadd.f32 %v2990, %v2992
  %v2995 = vtanh.pop %v2993
  %v2996 = vtanh.pop %v2994
  %v2997 = vmul.f32 %v2987, %v2995
  %v2998 = vmul.f32 %v2988, %v2996
  %v2999 = vpack.c.bf16 %v2998, %v2997
  %3000 = vmatprep.subr.bf16.mxu0 0
  %3001 = vmatpush1.bf16.msra.mxu0 %v2999
  %3002 = vmatprep.subr.bf16.mxu0 0
  %3003 = vmatpush1.bf16.msra.mxu0 0
  %3004 = vmatprep.subr.bf16.mxu0 0
  %3005 = vmatpush1.bf16.msra.mxu0 0
  %3006 = vmatprep.subr.bf16.mxu0 0
  %3007 = vmatpush1.bf16.msra.mxu0 0
  %3008 = vmatprep.subr.bf16.mxu0 0
  %3009 = vmatpush1.bf16.msra.mxu0 0
  %3010 = vmatprep.subr.bf16.mxu0 0
  %3011 = vmatpush1.bf16.msra.mxu0 0
  %3012 = vmatprep.subr.bf16.mxu0 0
  %3013 = vmatpush1.bf16.msra.mxu0 0
  %3014 = vmatprep.subr.bf16.mxu0 0
  %3015 = vmatpush1.bf16.msra.mxu0 0
  %3016 = vmatprep.subr.bf16.mxu0 0
  %3017 = vmatpush1.bf16.msra.mxu0 0
  %3018 = vmatprep.subr.bf16.mxu0 0
  %3019 = vmatpush1.bf16.msra.mxu0 0
  %3020 = vmatprep.subr.bf16.mxu0 0
  %3021 = vmatpush1.bf16.msra.mxu0 0
  %3022 = vmatprep.subr.bf16.mxu0 0
  %3023 = vmatpush1.bf16.msra.mxu0 0
  %3024 = vmatprep.subr.bf16.mxu0 0
  %3025 = vmatpush1.bf16.msra.mxu0 0
  %3026 = vmatprep.subr.bf16.mxu0 0
  %3027 = vmatpush1.bf16.msra.mxu0 0
  %3028 = vmatprep.subr.bf16.mxu0 0
  %3029 = vmatpush1.bf16.msra.mxu0 0
  %3030 = vmatprep.subr.bf16.mxu0 0
  %3031 = vmatpush1.bf16.msra.mxu0 0
  %3032 = vmatprep.mubr.bf16.mxu0 0
  %3033 = vmatmul.mubr.bf16.gmra.mrb[0].mxu0 %v906
  %v3034 = vpop.f32.mrb[0].mxu0
  %v3035 = vadd.f32 0.0, %v3034
  %v3036 = vpop.f32.mrb[0].mxu0
  %v3037 = vpop.f32.mrb[0].mxu0
  %v3038 = vadd.f32 0.0, %v3037
  %v3039 = vpop.f32.mrb[0].mxu0
  %3040 = vmatprep.mubr.bf16.mxu0 0
  %3041 = vmatmul.mubr.bf16.gmra.mrb[0].mxu0 %v909
  %v3042 = vpop.f32.mrb[0].mxu0
  %v3043 = vadd.f32 0.0, %v3042
  %v3044 = vpop.f32.mrb[0].mxu0
  %v3045 = vpop.f32.mrb[0].mxu0
  %v3046 = vadd.f32 0.0, %v3045
  %v3047 = vpop.f32.mrb[0].mxu0
  %3048 = vmatprep.mubr.bf16.mxu0 0
  %3049 = vmatmul.mubr.bf16.gmra.mrb[0].mxu0 %v912
  %v3050 = vpop.f32.mrb[0].mxu0
  %v3051 = vadd.f32 0.0, %v3050
  %v3052 = vpop.f32.mrb[0].mxu0
  %v3053 = vpop.f32.mrb[0].mxu0
  %v3054 = vadd.f32 0.0, %v3053
  %v3055 = vpop.f32.mrb[0].mxu0
  %3056 = vmatprep.mubr.bf16.mxu0 0
  %3057 = vmatmul.mubr.bf16.gmra.mrb[0].mxu0 %v915
  %v3058 = vpop.f32.mrb[0].mxu0
  %v3059 = vadd.f32 0.0, %v3058
  %v3060 = vpop.f32.mrb[0].mxu0
  %v3061 = vpop.f32.mrb[0].mxu0
  %v3062 = vadd.f32 0.0, %v3061
  %v3063 = vpop.f32.mrb[0].mxu0
  %3064 = vdwg.mxu0
  %3065 = vmatprep.subr.bf16.mxu0 0
  %3066 = vmatpush1.bf16.msra.mxu0 %v2881
  %3067 = vmatprep.subr.bf16.mxu0 0
  %3068 = vmatpush1.bf16.msra.mxu0 0
  %3069 = vmatprep.subr.bf16.mxu0 0
  %3070 = vmatpush1.bf16.msra.mxu0 0
  %3071 = vmatprep.subr.bf16.mxu0 0
  %3072 = vmatpush1.bf16.msra.mxu0 0
  %3073 = vmatprep.subr.bf16.mxu0 0
  %3074 = vmatpush1.bf16.msra.mxu0 0
  %3075 = vmatprep.subr.bf16.mxu0 0
  %3076 = vmatpush1.bf16.msra.mxu0 0
  %3077 = vmatprep.subr.bf16.mxu0 0
  %3078 = vmatpush1.bf16.msra.mxu0 0
  %3079 = vmatprep.subr.bf16.mxu0 0
  %3080 = vmatpush1.bf16.msra.mxu0 0
  %3081 = vmatprep.subr.bf16.mxu0 0
  %3082 = vmatpush1.bf16.msra.mxu0 0
  %3083 = vmatprep.subr.bf16.mxu0 0
  %3084 = vmatpush1.bf16.msra.mxu0 0
  %3085 = vmatprep.subr.bf16.mxu0 0
  %3086 = vmatpush1.bf16.msra.mxu0 0
  %3087 = vmatprep.subr.bf16.mxu0 0
  %3088 = vmatpush1.bf16.msra.mxu0 0
  %3089 = vmatprep.subr.bf16.mxu0 0
  %3090 = vmatpush1.bf16.msra.mxu0 0
  %3091 = vmatprep.subr.bf16.mxu0 0
  %3092 = vmatpush1.bf16.msra.mxu0 0
  %3093 = vmatprep.subr.bf16.mxu0 0
  %3094 = vmatpush1.bf16.msra.mxu0 0
  %3095 = vmatprep.subr.bf16.mxu0 0
  %3096 = vmatpush1.bf16.msra.mxu0 0
  %3097 = vmatprep.mubr.bf16.mxu0 0
  %3098 = vmatmul.mubr.bf16.gmra.mrb[0].mxu0 %v1003
  %v3099 = vpop.f32.mrb[0].mxu0
  %v3100 = vadd.f32 %v3035, %v3099
  %v3101 = vpop.f32.mrb[0].mxu0
  %v3102 = vpop.f32.mrb[0].mxu0
  %v3103 = vadd.f32 %v3038, %v3102
  %v3104 = vpop.f32.mrb[0].mxu0
  %3105 = vmatprep.mubr.bf16.mxu0 0
  %3106 = vmatmul.mubr.bf16.gmra.mrb[0].mxu0 %v1006
  %v3107 = vpop.f32.mrb[0].mxu0
  %v3108 = vadd.f32 %v3043, %v3107
  %v3109 = vpop.f32.mrb[0].mxu0
  %v3110 = vpop.f32.mrb[0].mxu0
  %v3111 = vadd.f32 %v3046, %v3110
  %v3112 = vpop.f32.mrb[0].mxu0
  %3113 = vmatprep.mubr.bf16.mxu0 0
  %3114 = vmatmul.mubr.bf16.gmra.mrb[0].mxu0 %v1009
  %v3115 = vpop.f32.mrb[0].mxu0
  %v3116 = vadd.f32 %v3051, %v3115
  %v3117 = vpop.f32.mrb[0].mxu0
  %v3118 = vpop.f32.mrb[0].mxu0
  %v3119 = vadd.f32 %v3054, %v3118
  %v3120 = vpop.f32.mrb[0].mxu0
  %3121 = vmatprep.mubr.bf16.mxu0 0
  %3122 = vmatmul.mubr.bf16.gmra.mrb[0].mxu0 %v1012
  %v3123 = vpop.f32.mrb[0].mxu0
  %v3124 = vadd.f32 %v3059, %v3123
  %v3125 = vpop.f32.mrb[0].mxu0
  %v3126 = vpop.f32.mrb[0].mxu0
  %v3127 = vadd.f32 %v3062, %v3126
  %v3128 = vpop.f32.mrb[0].mxu0
  %3129 = vdwg.mxu0
  %v3130 = vadd.f32 %v3100, %v116
  %v3131 = vadd.f32 %v3103, %v121
  %v3132 = vadd.f32 %v3108, %v126
  %v3133 = vadd.f32 %v3111, %v131
  %v3134 = vadd.f32 %v3116, %v136
  %v3135 = vadd.f32 %v3119, %v141
  %v3136 = vadd.f32 %v3124, %v146
  %v3137 = vadd.f32 %v3127, %v151
  %v3138 = vmul.f32 %v3130, 0.5
  %v3139 = vmul.f32 %v3131, 0.5
  %v3140 = vtanh.pop %v3138
  %v3141 = vtanh.pop %v3139
  %v3142 = vmul.f32 %v3140, 0.5
  %v3143 = vmul.f32 %v3141, 0.5
  %v3144 = vadd.f32 %v3142, 0.5
  %v3145 = vadd.f32 %v3143, 0.5
  %v3146 = vmul.f32 %v3132, 0.5
  %v3147 = vmul.f32 %v3133, 0.5
  %v3148 = vtanh.pop %v3146
  %v3149 = vtanh.pop %v3147
  %v3150 = vmul.f32 %v3148, 0.5
  %v3151 = vmul.f32 %v3149, 0.5
  %v3152 = vadd.f32 %v3150, 0.5
  %v3153 = vadd.f32 %v3151, 0.5
  %v3154 = vtanh.pop %v3134
  %v3155 = vtanh.pop %v3135
  %v3156 = vmul.f32 %v3136, 0.5
  %v3157 = vmul.f32 %v3137, 0.5
  %v3158 = vtanh.pop %v3156
  %v3159 = vtanh.pop %v3157
  %v3160 = vmul.f32 %v3158, 0.5
  %v3161 = vmul.f32 %v3159, 0.5
  %v3162 = vadd.f32 %v3160, 0.5
  %v3163 = vadd.f32 %v3161, 0.5
  %v3164 = vmul.f32 %v3152, %v2875
  %v3165 = vmul.f32 %v3153, %v2876
  %v3166 = vmul.f32 %v3144, %v3154
  %v3167 = vmul.f32 %v3145, %v3155
  %v3168 = vadd.f32 %v3164, %v3166
  %v3169 = vadd.f32 %v3165, %v3167
  %v3170 = vtanh.pop %v3168
  %v3171 = vtanh.pop %v3169
  %v3172 = vmul.f32 %v3162, %v3170
  %v3173 = vmul.f32 %v3163, %v3171
  %v3174 = vld [vmem:[%s7] sm:$0xf]
  %v3175 = vld [vmem:[%s7 + $0x4] sm:$0x1]
  %v3176 = vpack.c.bf16 %v3173, %v3172
  %v3177 = vld [vmem:[%s8] sm:$0xff]
  %v3178 = vld [vmem:[%s8 + $0x8] sm:$0x3]
  %3180 = vset.pattern.permute.xlu0 0
  %3181 = vperm.xlu0 %3180, %v3177
  %v3182 = vpop.permute.xlu0 %3181
  %3185 = vset.pattern.permute.xlu0 0
  %3186 = vperm.xlu0 %3185, %v3178
  %v3187 = vpop.permute.xlu0 %3186
  %v3191 = vunpack.c.l.b16 %v3174
  %v3192 = vunpack.c.l.b16 %v3175
  %v3193 = vpack.c.b16 %v3192, %v3191
  %v3195 = vsel %vm762, %v3193, 0
  %3197 = vmatprep.subr.bf16.mxu0 0
  %3198 = vmatpush1.bf16.msra.mxu0 %v3176
  %3199 = vmatprep.subr.bf16.mxu0 0
  %3200 = vmatpush1.bf16.msra.mxu0 0
  %3201 = vmatprep.subr.bf16.mxu0 0
  %3202 = vmatpush1.bf16.msra.mxu0 0
  %3203 = vmatprep.subr.bf16.mxu0 0
  %3204 = vmatpush1.bf16.msra.mxu0 0
  %3205 = vmatprep.subr.bf16.mxu0 0
  %3206 = vmatpush1.bf16.msra.mxu0 0
  %3207 = vmatprep.subr.bf16.mxu0 0
  %3208 = vmatpush1.bf16.msra.mxu0 0
  %3209 = vmatprep.subr.bf16.mxu0 0
  %3210 = vmatpush1.bf16.msra.mxu0 0
  %3211 = vmatprep.subr.bf16.mxu0 0
  %3212 = vmatpush1.bf16.msra.mxu0 0
  %3213 = vmatprep.subr.bf16.mxu0 0
  %3214 = vmatpush1.bf16.msra.mxu0 0
  %3215 = vmatprep.subr.bf16.mxu0 0
  %3216 = vmatpush1.bf16.msra.mxu0 0
  %3217 = vmatprep.subr.bf16.mxu0 0
  %3218 = vmatpush1.bf16.msra.mxu0 0
  %3219 = vmatprep.subr.bf16.mxu0 0
  %3220 = vmatpush1.bf16.msra.mxu0 0
  %3221 = vmatprep.subr.bf16.mxu0 0
  %3222 = vmatpush1.bf16.msra.mxu0 0
  %3223 = vmatprep.subr.bf16.mxu0 0
  %3224 = vmatpush1.bf16.msra.mxu0 0
  %3225 = vmatprep.subr.bf16.mxu0 0
  %3226 = vmatpush1.bf16.msra.mxu0 0
  %3227 = vmatprep.subr.bf16.mxu0 0
  %3228 = vmatpush1.bf16.msra.mxu0 0
  %3229 = vmatprep.mubr.bf16.mxu0 0
  %3230 = vmatmul.mubr.bf16.gmra.mrb[0].mxu0 %v3195
  %v3231 = vpop.f32.mrb[0].mxu0
  %v3232 = vadd.f32 %v3182, %v3231
  %v3233 = vpop.f32.mrb[0].mxu0
  %v3234 = vpop.f32.mrb[0].mxu0
  %v3235 = vadd.f32 %v3187, %v3234
  %v3236 = vpop.f32.mrb[0].mxu0
  %3237 = vdwg.mxu0
  %3238 = vst [vmem:[%s9] sm:$0xff] %v3232
  %3239 = vst [vmem:[%s9 + $0x8] sm:$0x3] %v3235
  // Predicated region
  $region38: #{mnist_rnn_forward.1} parent=0 // pred_check
    _
  $region39: #{mnist_rnn_forward.1} parent=0 // pred_check_branch
    %3241 = sbr.rel (0) target = $region41
  $region40: #{mnist_rnn_forward.1} parent=0 // pred_region
    _
  $region41: #{mnist_rnn_forward.1} parent=0 // pred_fallthru
    _
  // Predicated region
  $region42: #{mnist_rnn_forward.1} parent=0 // pred_check
    _
  $region43: #{mnist_rnn_forward.1} parent=0 // pred_check_branch
    %3243 = sbr.rel (0) target = $region45
  $region44: #{mnist_rnn_forward.1} parent=0 // pred_region
    _
  $region45: #{mnist_rnn_forward.1} parent=0 // pred_fallthru
    _

</llo_original>
